<compile_context>
chip_gen: v7x
topology: tpu7x:2x2x1
jax: 0.10.0
libtpu: 0.0.40
codegen_flags: <defaults>
</compile_context>

<pallas_src>
import math
import numpy as np
import jax
import jax.numpy as jnp
from jax import lax
from jax.experimental import pallas as pl
from jax.experimental.pallas import tpu as pltpu


# ----------------------------------------------------------------------------
# In-kernel helpers (pure value math; activations are (H, W*C) f32 slabs)
# ----------------------------------------------------------------------------
def _conv3x3_relu_slab(a, w_ref, b_ref):
    """3x3 VALID conv + bias + ReLU on a lane-dense slab.

    a:     (H, W*Cin) f32 value
    w_ref: (3, W*Cin, (W-2)*Cout) VMEM ref -- block-banded weights, one matrix
           per kernel row kh (the 3 kw taps are folded into the band).
    b_ref: (1, (W-2)*Cout) VMEM ref -- bias pre-tiled across output columns.
    returns (H-2, (W-2)*Cout) f32 value
    """
    ho = a.shape[0] - 2
    acc = jnp.dot(a[0:ho, :], w_ref[0], preferred_element_type=jnp.float32)
    acc = acc + jnp.dot(a[1:1 + ho, :], w_ref[1],
                        preferred_element_type=jnp.float32)
    acc = acc + jnp.dot(a[2:2 + ho, :], w_ref[2],
                        preferred_element_type=jnp.float32)
    return jnp.maximum(acc + b_ref[...], 0.0)


def _maxpool2x2_slab(y, hp, wp, c):
    """2x2 / stride-2 floor-mode max pool on a (Ho, Wo*C) slab -> (Hp, Wp*C)."""
    yc = y[:2 * hp, :2 * wp * c]                      # floor-mode crop (static)
    t = yc.reshape(2 * hp, wp, 2 * c)                 # adjacent W-pixels side by side
    wmax = jnp.maximum(t[:, :, :c], t[:, :, c:])      # (2Hp, Wp, C)
    h4 = wmax.reshape(hp, 2, wp, c)                   # split untiled leading dim
    hm = jnp.maximum(h4[:, 0], h4[:, 1])              # (Hp, Wp, C)
    return hm.reshape(hp, wp * c)


def _build_kernel(level_cfgs):
    """One fused kernel: all levels for one batch element per grid step."""
    n_levels = len(level_cfgs)

    def kernel(*refs):
        x_ref = refs[0]
        wrefs = refs[1:1 + 4 * n_levels]      # (W1, b1, W2, b2) per level
        orefs = refs[1 + 4 * n_levels:]       # one lane-dense output per level
        a = x_ref[...].astype(jnp.float32)    # (H, W*Cin)
        for li, cfg in enumerate(level_cfgs):
            w1, b1, w2, b2 = wrefs[4 * li:4 * li + 4]
            a = _conv3x3_relu_slab(a, w1, b1)
            a = _conv3x3_relu_slab(a, w2, b2)
            orefs[li][...] = a.astype(orefs[li].dtype)
            if cfg["pool"]:
                a = _maxpool2x2_slab(a, cfg["hp"], cfg["wp"], cfg["cout"])

    return kernel


# ----------------------------------------------------------------------------
# Wrapper: block-banded weight construction + single pallas_call
# ----------------------------------------------------------------------------
def _block_conv_weights(w_hwio, w_in):
    """HWIO (3,3,Cin,Cout) -> (3, w_in*Cin, (w_in-2)*Cout) banded matrices.

    W_kh[(j+kw)*Cin + c, j*Cout + d] = w_hwio[kh, kw, c, d]
    """
    wo = w_in - 2
    mats = []
    for kh in range(3):
        acc = None
        for kw in range(3):
            sel = jnp.eye(w_in, wo, k=-kw, dtype=jnp.float32)   # sel[j+kw, j]=1
            blk = jnp.kron(sel, w_hwio[kh, kw].astype(jnp.float32))
            acc = blk if acc is None else acc + blk
        mats.append(acc)
    return jnp.stack(mats, axis=0)


def build_unet_downsample(params, in_ch, in_hw):
    """Precompute block weights and return (jitted forward, block_params)."""
    H0, W0 = in_hw
    n_levels = len(params)

    level_cfgs = []
    block_params = []
    h, w = H0, W0
    for li, ((w1, b1), (w2, b2)) in enumerate(params):
        cout = int(w1.shape[-1])
        block_params += [
            _block_conv_weights(w1, w),
            jnp.tile(b1.astype(jnp.float32), (w - 2,)).reshape(1, (w - 2) * cout),
            _block_conv_weights(w2, w - 2),
            jnp.tile(b2.astype(jnp.float32), (w - 4,)).reshape(1, (w - 4) * cout),
        ]
        ho, wo = h - 4, w - 4
        pool = li < n_levels - 1
        level_cfgs.append(dict(cout=cout, ho=ho, wo=wo, pool=pool,
                               hp=ho // 2, wp=wo // 2))
        if pool:
            h, w = ho // 2, wo // 2
    block_params = tuple(block_params)

    kernel = _build_kernel(level_cfgs)

    # Weight/bias specs: full-array blocks, constant index_map (loaded once).
    weight_specs = [
        pl.BlockSpec(arr.shape, lambda n, _nd=arr.ndim: (0,) * _nd)
        for arr in block_params
    ]

    def forward(x_nchw, bparams):
        N = x_nchw.shape[0]
        # Single boundary layout change: NCHW -> lane-dense (N, H, W*Cin) slab.
        x_slab = jnp.transpose(x_nchw, (0, 2, 3, 1)).reshape(N, H0, W0 * in_ch)

        in_specs = [pl.BlockSpec((None, H0, W0 * in_ch),
                                 lambda n: (n, 0, 0))] + weight_specs
        out_shapes = tuple(
            jax.ShapeDtypeStruct((N, c["ho"], c["wo"] * c["cout"]), x_nchw.dtype)
            for c in level_cfgs)
        out_specs = tuple(
            pl.BlockSpec((None, c["ho"], c["wo"] * c["cout"]),
                         lambda n: (n, 0, 0))
            for c in level_cfgs)

        outs = pl.pallas_call(
            kernel,
            out_shape=out_shapes,
            grid=(N,),
            in_specs=in_specs,
            out_specs=out_specs,
            compiler_params=pltpu.CompilerParams(
                dimension_semantics=("parallel",)),
        )(x_slab, *bparams)

        # Single boundary layout change per output: slab -> NCHW.
        results = [
            jnp.transpose(o.reshape(N, c["ho"], c["wo"], c["cout"]), (0, 3, 1, 2))
            for o, c in zip(outs, level_cfgs)
        ]
        return results[-1], results[:-1]

    return jax.jit(forward), block_params


# ----------------------------------------------------------------------------
# Pure-JAX reference (for correctness check)
# ----------------------------------------------------------------------------
def _ref_conv3x3_relu(x_nhwc, w_hwio, b):
    y = lax.conv_general_dilated(
        x_nhwc, w_hwio, window_strides=(1, 1), padding="VALID",
        dimension_numbers=("NHWC", "HWIO", "NHWC"))
    return jnp.maximum(y + b[None, None, None, :], 0.0)


def _ref_maxpool2x2(x_nhwc):
    return lax.reduce_window(x_nhwc, -jnp.inf, lax.max,
                             (1, 2, 2, 1), (1, 2, 2, 1), "VALID")


def unet_downsample_reference(x_nchw, params):
    x = jnp.transpose(x_nchw, (0, 2, 3, 1))
    contracting_path = []
    total_layers = len(params)
    for idx, level_params in enumerate(params):
        for (w_hwio, b) in level_params:
            x = _ref_conv3x3_relu(x, w_hwio, b)
        if idx < total_layers - 1:
            contracting_path.append(jnp.transpose(x, (0, 3, 1, 2)))
            x = _ref_maxpool2x2(x)
    return jnp.transpose(x, (0, 3, 1, 2)), contracting_path


# ----------------------------------------------------------------------------
# Deterministic parameter init (PyTorch Conv2d-style uniform bounds)
# ----------------------------------------------------------------------------
def init_params(key, ipchan, chnlist):
    params = []
    for idx, outc in enumerate(chnlist):
        inc = ipchan if idx == 0 else chnlist[idx - 1]
        level = []
        for j in range(2):                  # loops=2 convs per level
            cin = inc if j == 0 else outc
            key, kw_, kb_ = jax.random.split(key, 3)
            bound = 1.0 / math.sqrt(cin * 3 * 3)
            w_oihw = jax.random.uniform(kw_, (outc, cin, 3, 3),
                                        jnp.float32, -bound, bound)
            b = jax.random.uniform(kb_, (outc,), jnp.float32, -bound, bound)
            w_hwio = jnp.transpose(w_oihw, (2, 3, 1, 0))   # OIHW -> HWIO
            level.append((w_hwio, b))
        params.append(level)
    return params


# ----------------------------------------------------------------------------
# Main
# ----------------------------------------------------------------------------
if __name__ == "__main__":
    key = jax.random.PRNGKey(0)
    kx, kp = jax.random.split(key)

    # Small UNet config: ipchan=4, chnlist=[8, 16, 32], spatial 36x36, batch 2.
    N, ipchan, Hin, Win = 2, 4, 36, 36
    chnlist = [8, 16, 32]

    x_nchw = jax.random.normal(kx, (N, ipchan, Hin, Win), jnp.float32)
    params = init_params(kp, ipchan, chnlist)

    forward, block_params = build_unet_downsample(params, ipchan, (Hin, Win))

    out, skips = forward(x_nchw, block_params)
    out = jax.block_until_ready(out)
    skips = [jax.block_until_ready(s) for s in skips]

    ref_out, ref_skips = unet_downsample_reference(x_nchw, params)

    # Shape checks (PyTorch semantics: NCHW, VALID 3x3 convs, floor 2x2 pool).
    assert out.shape == (N, chnlist[-1], 2, 2), out.shape
    assert skips[0].shape == (N, chnlist[0], 32, 32), skips[0].shape
    assert skips[1].shape == (N, chnlist[1], 12, 12), skips[1].shape

    np.testing.assert_allclose(np.asarray(out), np.asarray(ref_out),
                               rtol=2e-3, atol=2e-3)
    for s, rs in zip(skips, ref_skips):
        np.testing.assert_allclose(np.asarray(s), np.asarray(rs),
                                   rtol=2e-3, atol=2e-3)

    print("KERNEL_OK")
</pallas_src>

<mosaic_0001>
module attributes {stable_mosaic.version = 11 : i64} {
  func.func @kernel(%arg0: i32, %arg1: memref<1x36x144xf32, #tpu.memory_space<vmem>>, %arg2: memref<3x144x272xf32, #tpu.memory_space<vmem>>, %arg3: memref<1x272xf32, #tpu.memory_space<vmem>>, %arg4: memref<3x272x256xf32, #tpu.memory_space<vmem>>, %arg5: memref<1x256xf32, #tpu.memory_space<vmem>>, %arg6: memref<3x128x224xf32, #tpu.memory_space<vmem>>, %arg7: memref<1x224xf32, #tpu.memory_space<vmem>>, %arg8: memref<3x224x192xf32, #tpu.memory_space<vmem>>, %arg9: memref<1x192xf32, #tpu.memory_space<vmem>>, %arg10: memref<3x96x128xf32, #tpu.memory_space<vmem>>, %arg11: memref<1x128xf32, #tpu.memory_space<vmem>>, %arg12: memref<3x128x64xf32, #tpu.memory_space<vmem>>, %arg13: memref<1x64xf32, #tpu.memory_space<vmem>>, %arg14: memref<1x32x256xf32, #tpu.memory_space<vmem>>, %arg15: memref<1x12x192xf32, #tpu.memory_space<vmem>>, %arg16: memref<1x2x64xf32, #tpu.memory_space<vmem>>) attributes {dimension_semantics = [#tpu.dimension_semantics<parallel>], iteration_bounds = array<i64: 2>, scalar_prefetch = 0 : i64, scratch_operands = 0 : i64, tpu.core_type = #tpu.core_type<tc>, window_params = [{transform_indices = @transform_0, window_bounds = array<i64: 1, 36, 144>}, {pipeline_mode = #tpu.pipeline_mode<synchronous>, transform_indices = @transform_1, window_bounds = array<i64: 3, 144, 272>}, {pipeline_mode = #tpu.pipeline_mode<synchronous>, transform_indices = @transform_2, window_bounds = array<i64: 1, 272>}, {pipeline_mode = #tpu.pipeline_mode<synchronous>, transform_indices = @transform_3, window_bounds = array<i64: 3, 272, 256>}, {pipeline_mode = #tpu.pipeline_mode<synchronous>, transform_indices = @transform_4, window_bounds = array<i64: 1, 256>}, {pipeline_mode = #tpu.pipeline_mode<synchronous>, transform_indices = @transform_5, window_bounds = array<i64: 3, 128, 224>}, {pipeline_mode = #tpu.pipeline_mode<synchronous>, transform_indices = @transform_6, window_bounds = array<i64: 1, 224>}, {pipeline_mode = #tpu.pipeline_mode<synchronous>, transform_indices = @transform_7, window_bounds = array<i64: 3, 224, 192>}, {pipeline_mode = #tpu.pipeline_mode<synchronous>, transform_indices = @transform_8, window_bounds = array<i64: 1, 192>}, {pipeline_mode = #tpu.pipeline_mode<synchronous>, transform_indices = @transform_9, window_bounds = array<i64: 3, 96, 128>}, {pipeline_mode = #tpu.pipeline_mode<synchronous>, transform_indices = @transform_10, window_bounds = array<i64: 1, 128>}, {pipeline_mode = #tpu.pipeline_mode<synchronous>, transform_indices = @transform_11, window_bounds = array<i64: 3, 128, 64>}, {pipeline_mode = #tpu.pipeline_mode<synchronous>, transform_indices = @transform_12, window_bounds = array<i64: 1, 64>}, {transform_indices = @transform_13, window_bounds = array<i64: 1, 32, 256>}, {transform_indices = @transform_14, window_bounds = array<i64: 1, 12, 192>}, {transform_indices = @transform_15, window_bounds = array<i64: 1, 2, 64>}]} {
    %c0 = arith.constant 0 : index
    %c0_0 = arith.constant 0 : index
    %c0_1 = arith.constant 0 : index
    %0 = vector.load %arg1[%c0, %c0_0, %c0_1] : memref<1x36x144xf32, #tpu.memory_space<vmem>>, vector<1x36x144xf32>
    %1 = vector.shape_cast %0 : vector<1x36x144xf32> to vector<36x144xf32>
    %2 = vector.extract_strided_slice %1 {offsets = [0, 0], sizes = [34, 144], strides = [1, 1]} : vector<36x144xf32> to vector<34x144xf32>
    %c0_2 = arith.constant 0 : index
    %c0_3 = arith.constant 0 : index
    %c0_4 = arith.constant 0 : index
    %3 = vector.load %arg2[%c0_2, %c0_3, %c0_4] : memref<3x144x272xf32, #tpu.memory_space<vmem>>, vector<1x144x272xf32>
    %4 = vector.shape_cast %3 : vector<1x144x272xf32> to vector<144x272xf32>
    %cst = arith.constant dense<0.000000e+00> : vector<34x272xf32>
    %5 = tpu.matmul %2, %4, %cst {dimension_numbers = #tpu.dot_dimension_numbers<[1], [0], [0], [1], [0, 0, 1, 1], [], []>} : vector<34x144xf32>, vector<144x272xf32>, vector<34x272xf32> -> vector<34x272xf32>
    %6 = vector.extract_strided_slice %1 {offsets = [1, 0], sizes = [34, 144], strides = [1, 1]} : vector<36x144xf32> to vector<34x144xf32>
    %c1 = arith.constant 1 : index
    %c0_5 = arith.constant 0 : index
    %c0_6 = arith.constant 0 : index
    %7 = vector.load %arg2[%c1, %c0_5, %c0_6] : memref<3x144x272xf32, #tpu.memory_space<vmem>>, vector<1x144x272xf32>
    %8 = vector.shape_cast %7 : vector<1x144x272xf32> to vector<144x272xf32>
    %cst_7 = arith.constant dense<0.000000e+00> : vector<34x272xf32>
    %9 = tpu.matmul %6, %8, %cst_7 {dimension_numbers = #tpu.dot_dimension_numbers<[1], [0], [0], [1], [0, 0, 1, 1], [], []>} : vector<34x144xf32>, vector<144x272xf32>, vector<34x272xf32> -> vector<34x272xf32>
    %10 = arith.addf %5, %9 : vector<34x272xf32>
    %11 = vector.extract_strided_slice %1 {offsets = [2, 0], sizes = [34, 144], strides = [1, 1]} : vector<36x144xf32> to vector<34x144xf32>
    %c2 = arith.constant 2 : index
    %c0_8 = arith.constant 0 : index
    %c0_9 = arith.constant 0 : index
    %12 = vector.load %arg2[%c2, %c0_8, %c0_9] : memref<3x144x272xf32, #tpu.memory_space<vmem>>, vector<1x144x272xf32>
    %13 = vector.shape_cast %12 : vector<1x144x272xf32> to vector<144x272xf32>
    %cst_10 = arith.constant dense<0.000000e+00> : vector<34x272xf32>
    %14 = tpu.matmul %11, %13, %cst_10 {dimension_numbers = #tpu.dot_dimension_numbers<[1], [0], [0], [1], [0, 0, 1, 1], [], []>} : vector<34x144xf32>, vector<144x272xf32>, vector<34x272xf32> -> vector<34x272xf32>
    %15 = arith.addf %10, %14 : vector<34x272xf32>
    %c0_11 = arith.constant 0 : index
    %c0_12 = arith.constant 0 : index
    %16 = vector.load %arg3[%c0_11, %c0_12] : memref<1x272xf32, #tpu.memory_space<vmem>>, vector<1x272xf32>
    %17 = vector.broadcast %16 : vector<1x272xf32> to vector<34x272xf32>
    %18 = arith.addf %15, %17 : vector<34x272xf32>
    %cst_13 = arith.constant 0.000000e+00 : f32
    %19 = vector.broadcast %cst_13 : f32 to vector<34x272xf32>
    %20 = arith.maximumf %18, %19 : vector<34x272xf32>
    %21 = vector.extract_strided_slice %20 {offsets = [0, 0], sizes = [32, 272], strides = [1, 1]} : vector<34x272xf32> to vector<32x272xf32>
    %c0_14 = arith.constant 0 : index
    %c0_15 = arith.constant 0 : index
    %c0_16 = arith.constant 0 : index
    %22 = vector.load %arg4[%c0_14, %c0_15, %c0_16] : memref<3x272x256xf32, #tpu.memory_space<vmem>>, vector<1x272x256xf32>
    %23 = vector.shape_cast %22 : vector<1x272x256xf32> to vector<272x256xf32>
    %cst_17 = arith.constant dense<0.000000e+00> : vector<32x256xf32>
    %24 = tpu.matmul %21, %23, %cst_17 {dimension_numbers = #tpu.dot_dimension_numbers<[1], [0], [0], [1], [0, 0, 1, 1], [], []>} : vector<32x272xf32>, vector<272x256xf32>, vector<32x256xf32> -> vector<32x256xf32>
    %25 = vector.extract_strided_slice %20 {offsets = [1, 0], sizes = [32, 272], strides = [1, 1]} : vector<34x272xf32> to vector<32x272xf32>
    %c1_18 = arith.constant 1 : index
    %c0_19 = arith.constant 0 : index
    %c0_20 = arith.constant 0 : index
    %26 = vector.load %arg4[%c1_18, %c0_19, %c0_20] : memref<3x272x256xf32, #tpu.memory_space<vmem>>, vector<1x272x256xf32>
    %27 = vector.shape_cast %26 : vector<1x272x256xf32> to vector<272x256xf32>
    %cst_21 = arith.constant dense<0.000000e+00> : vector<32x256xf32>
    %28 = tpu.matmul %25, %27, %cst_21 {dimension_numbers = #tpu.dot_dimension_numbers<[1], [0], [0], [1], [0, 0, 1, 1], [], []>} : vector<32x272xf32>, vector<272x256xf32>, vector<32x256xf32> -> vector<32x256xf32>
    %29 = arith.addf %24, %28 : vector<32x256xf32>
    %30 = vector.extract_strided_slice %20 {offsets = [2, 0], sizes = [32, 272], strides = [1, 1]} : vector<34x272xf32> to vector<32x272xf32>
    %c2_22 = arith.constant 2 : index
    %c0_23 = arith.constant 0 : index
    %c0_24 = arith.constant 0 : index
    %31 = vector.load %arg4[%c2_22, %c0_23, %c0_24] : memref<3x272x256xf32, #tpu.memory_space<vmem>>, vector<1x272x256xf32>
    %32 = vector.shape_cast %31 : vector<1x272x256xf32> to vector<272x256xf32>
    %cst_25 = arith.constant dense<0.000000e+00> : vector<32x256xf32>
    %33 = tpu.matmul %30, %32, %cst_25 {dimension_numbers = #tpu.dot_dimension_numbers<[1], [0], [0], [1], [0, 0, 1, 1], [], []>} : vector<32x272xf32>, vector<272x256xf32>, vector<32x256xf32> -> vector<32x256xf32>
    %34 = arith.addf %29, %33 : vector<32x256xf32>
    %c0_26 = arith.constant 0 : index
    %c0_27 = arith.constant 0 : index
    %35 = vector.load %arg5[%c0_26, %c0_27] : memref<1x256xf32, #tpu.memory_space<vmem>>, vector<1x256xf32>
    %36 = vector.broadcast %35 : vector<1x256xf32> to vector<32x256xf32>
    %37 = arith.addf %34, %36 : vector<32x256xf32>
    %cst_28 = arith.constant 0.000000e+00 : f32
    %38 = vector.broadcast %cst_28 : f32 to vector<32x256xf32>
    %39 = arith.maximumf %37, %38 : vector<32x256xf32>
    %c0_29 = arith.constant 0 : index
    %c0_30 = arith.constant 0 : index
    %c0_31 = arith.constant 0 : index
    %40 = vector.load %arg14[%c0_29, %c0_30, %c0_31] : memref<1x32x256xf32, #tpu.memory_space<vmem>>, vector<1x32x256xf32>
    %41 = vector.shape_cast %40 : vector<1x32x256xf32> to vector<32x256xf32>
    %42 = vector.shape_cast %39 : vector<32x256xf32> to vector<1x32x256xf32>
    tpu.vector_store %arg14[%c0_29, %c0_30, %c0_31], %42 {strides = array<i32>} : memref<1x32x256xf32, #tpu.memory_space<vmem>>, vector<1x32x256xf32>,
    %43 = vector.shape_cast %39 : vector<32x256xf32> to vector<32x16x16xf32>
    %44 = vector.extract_strided_slice %43 {offsets = [0, 0, 0], sizes = [32, 16, 8], strides = [1, 1, 1]} : vector<32x16x16xf32> to vector<32x16x8xf32>
    %45 = vector.extract_strided_slice %43 {offsets = [0, 0, 8], sizes = [32, 16, 8], strides = [1, 1, 1]} : vector<32x16x16xf32> to vector<32x16x8xf32>
    %46 = arith.maximumf %44, %45 : vector<32x16x8xf32>
    %47 = vector.shape_cast %46 : vector<32x16x8xf32> to vector<16x2x16x8xf32>
    %48 = vector.extract_strided_slice %47 {offsets = [0, 0, 0, 0], sizes = [16, 1, 16, 8], strides = [1, 1, 1, 1]} : vector<16x2x16x8xf32> to vector<16x1x16x8xf32>
    %49 = vector.shape_cast %48 : vector<16x1x16x8xf32> to vector<16x16x8xf32>
    %50 = vector.extract_strided_slice %47 {offsets = [0, 1, 0, 0], sizes = [16, 1, 16, 8], strides = [1, 1, 1, 1]} : vector<16x2x16x8xf32> to vector<16x1x16x8xf32>
    %51 = vector.shape_cast %50 : vector<16x1x16x8xf32> to vector<16x16x8xf32>
    %52 = arith.maximumf %49, %51 : vector<16x16x8xf32>
    %53 = vector.shape_cast %52 : vector<16x16x8xf32> to vector<16x128xf32>
    %54 = vector.extract_strided_slice %53 {offsets = [0, 0], sizes = [14, 128], strides = [1, 1]} : vector<16x128xf32> to vector<14x128xf32>
    %c0_32 = arith.constant 0 : index
    %c0_33 = arith.constant 0 : index
    %c0_34 = arith.constant 0 : index
    %55 = vector.load %arg6[%c0_32, %c0_33, %c0_34] : memref<3x128x224xf32, #tpu.memory_space<vmem>>, vector<1x128x224xf32>
    %56 = vector.shape_cast %55 : vector<1x128x224xf32> to vector<128x224xf32>
    %cst_35 = arith.constant dense<0.000000e+00> : vector<14x224xf32>
    %57 = tpu.matmul %54, %56, %cst_35 {dimension_numbers = #tpu.dot_dimension_numbers<[1], [0], [0], [1], [0, 0, 1, 1], [], []>} : vector<14x128xf32>, vector<128x224xf32>, vector<14x224xf32> -> vector<14x224xf32>
    %58 = vector.extract_strided_slice %53 {offsets = [1, 0], sizes = [14, 128], strides = [1, 1]} : vector<16x128xf32> to vector<14x128xf32>
    %c1_36 = arith.constant 1 : index
    %c0_37 = arith.constant 0 : index
    %c0_38 = arith.constant 0 : index
    %59 = vector.load %arg6[%c1_36, %c0_37, %c0_38] : memref<3x128x224xf32, #tpu.memory_space<vmem>>, vector<1x128x224xf32>
    %60 = vector.shape_cast %59 : vector<1x128x224xf32> to vector<128x224xf32>
    %cst_39 = arith.constant dense<0.000000e+00> : vector<14x224xf32>
    %61 = tpu.matmul %58, %60, %cst_39 {dimension_numbers = #tpu.dot_dimension_numbers<[1], [0], [0], [1], [0, 0, 1, 1], [], []>} : vector<14x128xf32>, vector<128x224xf32>, vector<14x224xf32> -> vector<14x224xf32>
    %62 = arith.addf %57, %61 : vector<14x224xf32>
    %63 = vector.extract_strided_slice %53 {offsets = [2, 0], sizes = [14, 128], strides = [1, 1]} : vector<16x128xf32> to vector<14x128xf32>
    %c2_40 = arith.constant 2 : index
    %c0_41 = arith.constant 0 : index
    %c0_42 = arith.constant 0 : index
    %64 = vector.load %arg6[%c2_40, %c0_41, %c0_42] : memref<3x128x224xf32, #tpu.memory_space<vmem>>, vector<1x128x224xf32>
    %65 = vector.shape_cast %64 : vector<1x128x224xf32> to vector<128x224xf32>
    %cst_43 = arith.constant dense<0.000000e+00> : vector<14x224xf32>
    %66 = tpu.matmul %63, %65, %cst_43 {dimension_numbers = #tpu.dot_dimension_numbers<[1], [0], [0], [1], [0, 0, 1, 1], [], []>} : vector<14x128xf32>, vector<128x224xf32>, vector<14x224xf32> -> vector<14x224xf32>
    %67 = arith.addf %62, %66 : vector<14x224xf32>
    %c0_44 = arith.constant 0 : index
    %c0_45 = arith.constant 0 : index
    %68 = vector.load %arg7[%c0_44, %c0_45] : memref<1x224xf32, #tpu.memory_space<vmem>>, vector<1x224xf32>
    %69 = vector.broadcast %68 : vector<1x224xf32> to vector<14x224xf32>
    %70 = arith.addf %67, %69 : vector<14x224xf32>
    %cst_46 = arith.constant 0.000000e+00 : f32
    %71 = vector.broadcast %cst_46 : f32 to vector<14x224xf32>
    %72 = arith.maximumf %70, %71 : vector<14x224xf32>
    %73 = vector.extract_strided_slice %72 {offsets = [0, 0], sizes = [12, 224], strides = [1, 1]} : vector<14x224xf32> to vector<12x224xf32>
    %c0_47 = arith.constant 0 : index
    %c0_48 = arith.constant 0 : index
    %c0_49 = arith.constant 0 : index
    %74 = vector.load %arg8[%c0_47, %c0_48, %c0_49] : memref<3x224x192xf32, #tpu.memory_space<vmem>>, vector<1x224x192xf32>
    %75 = vector.shape_cast %74 : vector<1x224x192xf32> to vector<224x192xf32>
    %cst_50 = arith.constant dense<0.000000e+00> : vector<12x192xf32>
    %76 = tpu.matmul %73, %75, %cst_50 {dimension_numbers = #tpu.dot_dimension_numbers<[1], [0], [0], [1], [0, 0, 1, 1], [], []>} : vector<12x224xf32>, vector<224x192xf32>, vector<12x192xf32> -> vector<12x192xf32>
    %77 = vector.extract_strided_slice %72 {offsets = [1, 0], sizes = [12, 224], strides = [1, 1]} : vector<14x224xf32> to vector<12x224xf32>
    %c1_51 = arith.constant 1 : index
    %c0_52 = arith.constant 0 : index
    %c0_53 = arith.constant 0 : index
    %78 = vector.load %arg8[%c1_51, %c0_52, %c0_53] : memref<3x224x192xf32, #tpu.memory_space<vmem>>, vector<1x224x192xf32>
    %79 = vector.shape_cast %78 : vector<1x224x192xf32> to vector<224x192xf32>
    %cst_54 = arith.constant dense<0.000000e+00> : vector<12x192xf32>
    %80 = tpu.matmul %77, %79, %cst_54 {dimension_numbers = #tpu.dot_dimension_numbers<[1], [0], [0], [1], [0, 0, 1, 1], [], []>} : vector<12x224xf32>, vector<224x192xf32>, vector<12x192xf32> -> vector<12x192xf32>
    %81 = arith.addf %76, %80 : vector<12x192xf32>
    %82 = vector.extract_strided_slice %72 {offsets = [2, 0], sizes = [12, 224], strides = [1, 1]} : vector<14x224xf32> to vector<12x224xf32>
    %c2_55 = arith.constant 2 : index
    %c0_56 = arith.constant 0 : index
    %c0_57 = arith.constant 0 : index
    %83 = vector.load %arg8[%c2_55, %c0_56, %c0_57] : memref<3x224x192xf32, #tpu.memory_space<vmem>>, vector<1x224x192xf32>
    %84 = vector.shape_cast %83 : vector<1x224x192xf32> to vector<224x192xf32>
    %cst_58 = arith.constant dense<0.000000e+00> : vector<12x192xf32>
    %85 = tpu.matmul %82, %84, %cst_58 {dimension_numbers = #tpu.dot_dimension_numbers<[1], [0], [0], [1], [0, 0, 1, 1], [], []>} : vector<12x224xf32>, vector<224x192xf32>, vector<12x192xf32> -> vector<12x192xf32>
    %86 = arith.addf %81, %85 : vector<12x192xf32>
    %c0_59 = arith.constant 0 : index
    %c0_60 = arith.constant 0 : index
    %87 = vector.load %arg9[%c0_59, %c0_60] : memref<1x192xf32, #tpu.memory_space<vmem>>, vector<1x192xf32>
    %88 = vector.broadcast %87 : vector<1x192xf32> to vector<12x192xf32>
    %89 = arith.addf %86, %88 : vector<12x192xf32>
    %cst_61 = arith.constant 0.000000e+00 : f32
    %90 = vector.broadcast %cst_61 : f32 to vector<12x192xf32>
    %91 = arith.maximumf %89, %90 : vector<12x192xf32>
    %c0_62 = arith.constant 0 : index
    %c0_63 = arith.constant 0 : index
    %c0_64 = arith.constant 0 : index
    %92 = vector.load %arg15[%c0_62, %c0_63, %c0_64] : memref<1x12x192xf32, #tpu.memory_space<vmem>>, vector<1x12x192xf32>
    %93 = vector.shape_cast %92 : vector<1x12x192xf32> to vector<12x192xf32>
    %94 = vector.shape_cast %91 : vector<12x192xf32> to vector<1x12x192xf32>
    tpu.vector_store %arg15[%c0_62, %c0_63, %c0_64], %94 {strides = array<i32>} : memref<1x12x192xf32, #tpu.memory_space<vmem>>, vector<1x12x192xf32>,
    %95 = vector.shape_cast %91 : vector<12x192xf32> to vector<12x6x32xf32>
    %96 = vector.extract_strided_slice %95 {offsets = [0, 0, 0], sizes = [12, 6, 16], strides = [1, 1, 1]} : vector<12x6x32xf32> to vector<12x6x16xf32>
    %97 = vector.extract_strided_slice %95 {offsets = [0, 0, 16], sizes = [12, 6, 16], strides = [1, 1, 1]} : vector<12x6x32xf32> to vector<12x6x16xf32>
    %98 = arith.maximumf %96, %97 : vector<12x6x16xf32>
    %99 = vector.shape_cast %98 : vector<12x6x16xf32> to vector<6x2x6x16xf32>
    %100 = vector.extract_strided_slice %99 {offsets = [0, 0, 0, 0], sizes = [6, 1, 6, 16], strides = [1, 1, 1, 1]} : vector<6x2x6x16xf32> to vector<6x1x6x16xf32>
    %101 = vector.shape_cast %100 : vector<6x1x6x16xf32> to vector<6x6x16xf32>
    %102 = vector.extract_strided_slice %99 {offsets = [0, 1, 0, 0], sizes = [6, 1, 6, 16], strides = [1, 1, 1, 1]} : vector<6x2x6x16xf32> to vector<6x1x6x16xf32>
    %103 = vector.shape_cast %102 : vector<6x1x6x16xf32> to vector<6x6x16xf32>
    %104 = arith.maximumf %101, %103 : vector<6x6x16xf32>
    %105 = vector.shape_cast %104 : vector<6x6x16xf32> to vector<6x96xf32>
    %106 = vector.extract_strided_slice %105 {offsets = [0, 0], sizes = [4, 96], strides = [1, 1]} : vector<6x96xf32> to vector<4x96xf32>
    %c0_65 = arith.constant 0 : index
    %c0_66 = arith.constant 0 : index
    %c0_67 = arith.constant 0 : index
    %107 = vector.load %arg10[%c0_65, %c0_66, %c0_67] : memref<3x96x128xf32, #tpu.memory_space<vmem>>, vector<1x96x128xf32>
    %108 = vector.shape_cast %107 : vector<1x96x128xf32> to vector<96x128xf32>
    %cst_68 = arith.constant dense<0.000000e+00> : vector<4x128xf32>
    %109 = tpu.matmul %106, %108, %cst_68 {dimension_numbers = #tpu.dot_dimension_numbers<[1], [0], [0], [1], [0, 0, 1, 1], [], []>} : vector<4x96xf32>, vector<96x128xf32>, vector<4x128xf32> -> vector<4x128xf32>
    %110 = vector.extract_strided_slice %105 {offsets = [1, 0], sizes = [4, 96], strides = [1, 1]} : vector<6x96xf32> to vector<4x96xf32>
    %c1_69 = arith.constant 1 : index
    %c0_70 = arith.constant 0 : index
    %c0_71 = arith.constant 0 : index
    %111 = vector.load %arg10[%c1_69, %c0_70, %c0_71] : memref<3x96x128xf32, #tpu.memory_space<vmem>>, vector<1x96x128xf32>
    %112 = vector.shape_cast %111 : vector<1x96x128xf32> to vector<96x128xf32>
    %cst_72 = arith.constant dense<0.000000e+00> : vector<4x128xf32>
    %113 = tpu.matmul %110, %112, %cst_72 {dimension_numbers = #tpu.dot_dimension_numbers<[1], [0], [0], [1], [0, 0, 1, 1], [], []>} : vector<4x96xf32>, vector<96x128xf32>, vector<4x128xf32> -> vector<4x128xf32>
    %114 = arith.addf %109, %113 : vector<4x128xf32>
    %115 = vector.extract_strided_slice %105 {offsets = [2, 0], sizes = [4, 96], strides = [1, 1]} : vector<6x96xf32> to vector<4x96xf32>
    %c2_73 = arith.constant 2 : index
    %c0_74 = arith.constant 0 : index
    %c0_75 = arith.constant 0 : index
    %116 = vector.load %arg10[%c2_73, %c0_74, %c0_75] : memref<3x96x128xf32, #tpu.memory_space<vmem>>, vector<1x96x128xf32>
    %117 = vector.shape_cast %116 : vector<1x96x128xf32> to vector<96x128xf32>
    %cst_76 = arith.constant dense<0.000000e+00> : vector<4x128xf32>
    %118 = tpu.matmul %115, %117, %cst_76 {dimension_numbers = #tpu.dot_dimension_numbers<[1], [0], [0], [1], [0, 0, 1, 1], [], []>} : vector<4x96xf32>, vector<96x128xf32>, vector<4x128xf32> -> vector<4x128xf32>
    %119 = arith.addf %114, %118 : vector<4x128xf32>
    %c0_77 = arith.constant 0 : index
    %c0_78 = arith.constant 0 : index
    %120 = vector.load %arg11[%c0_77, %c0_78] : memref<1x128xf32, #tpu.memory_space<vmem>>, vector<1x128xf32>
    %121 = vector.broadcast %120 : vector<1x128xf32> to vector<4x128xf32>
    %122 = arith.addf %119, %121 : vector<4x128xf32>
    %cst_79 = arith.constant 0.000000e+00 : f32
    %123 = vector.broadcast %cst_79 : f32 to vector<4x128xf32>
    %124 = arith.maximumf %122, %123 : vector<4x128xf32>
    %125 = vector.extract_strided_slice %124 {offsets = [0, 0], sizes = [2, 128], strides = [1, 1]} : vector<4x128xf32> to vector<2x128xf32>
    %c0_80 = arith.constant 0 : index
    %c0_81 = arith.constant 0 : index
    %c0_82 = arith.constant 0 : index
    %126 = vector.load %arg12[%c0_80, %c0_81, %c0_82] : memref<3x128x64xf32, #tpu.memory_space<vmem>>, vector<1x128x64xf32>
    %127 = vector.shape_cast %126 : vector<1x128x64xf32> to vector<128x64xf32>
    %cst_83 = arith.constant dense<0.000000e+00> : vector<2x64xf32>
    %128 = tpu.matmul %125, %127, %cst_83 {dimension_numbers = #tpu.dot_dimension_numbers<[1], [0], [0], [1], [0, 0, 1, 1], [], []>} : vector<2x128xf32>, vector<128x64xf32>, vector<2x64xf32> -> vector<2x64xf32>
    %129 = vector.extract_strided_slice %124 {offsets = [1, 0], sizes = [2, 128], strides = [1, 1]} : vector<4x128xf32> to vector<2x128xf32>
    %c1_84 = arith.constant 1 : index
    %c0_85 = arith.constant 0 : index
    %c0_86 = arith.constant 0 : index
    %130 = vector.load %arg12[%c1_84, %c0_85, %c0_86] : memref<3x128x64xf32, #tpu.memory_space<vmem>>, vector<1x128x64xf32>
    %131 = vector.shape_cast %130 : vector<1x128x64xf32> to vector<128x64xf32>
    %cst_87 = arith.constant dense<0.000000e+00> : vector<2x64xf32>
    %132 = tpu.matmul %129, %131, %cst_87 {dimension_numbers = #tpu.dot_dimension_numbers<[1], [0], [0], [1], [0, 0, 1, 1], [], []>} : vector<2x128xf32>, vector<128x64xf32>, vector<2x64xf32> -> vector<2x64xf32>
    %133 = arith.addf %128, %132 : vector<2x64xf32>
    %134 = vector.extract_strided_slice %124 {offsets = [2, 0], sizes = [2, 128], strides = [1, 1]} : vector<4x128xf32> to vector<2x128xf32>
    %c2_88 = arith.constant 2 : index
    %c0_89 = arith.constant 0 : index
    %c0_90 = arith.constant 0 : index
    %135 = vector.load %arg12[%c2_88, %c0_89, %c0_90] : memref<3x128x64xf32, #tpu.memory_space<vmem>>, vector<1x128x64xf32>
    %136 = vector.shape_cast %135 : vector<1x128x64xf32> to vector<128x64xf32>
    %cst_91 = arith.constant dense<0.000000e+00> : vector<2x64xf32>
    %137 = tpu.matmul %134, %136, %cst_91 {dimension_numbers = #tpu.dot_dimension_numbers<[1], [0], [0], [1], [0, 0, 1, 1], [], []>} : vector<2x128xf32>, vector<128x64xf32>, vector<2x64xf32> -> vector<2x64xf32>
    %138 = arith.addf %133, %137 : vector<2x64xf32>
    %c0_92 = arith.constant 0 : index
    %c0_93 = arith.constant 0 : index
    %139 = vector.load %arg13[%c0_92, %c0_93] : memref<1x64xf32, #tpu.memory_space<vmem>>, vector<1x64xf32>
    %140 = vector.broadcast %139 : vector<1x64xf32> to vector<2x64xf32>
    %141 = arith.addf %138, %140 : vector<2x64xf32>
    %cst_94 = arith.constant 0.000000e+00 : f32
    %142 = vector.broadcast %cst_94 : f32 to vector<2x64xf32>
    %143 = arith.maximumf %141, %142 : vector<2x64xf32>
    %c0_95 = arith.constant 0 : index
    %c0_96 = arith.constant 0 : index
    %c0_97 = arith.constant 0 : index
    %144 = vector.load %arg16[%c0_95, %c0_96, %c0_97] : memref<1x2x64xf32, #tpu.memory_space<vmem>>, vector<1x2x64xf32>
    %145 = vector.shape_cast %144 : vector<1x2x64xf32> to vector<2x64xf32>
    %146 = vector.shape_cast %143 : vector<2x64xf32> to vector<1x2x64xf32>
    tpu.vector_store %arg16[%c0_95, %c0_96, %c0_97], %146 {strides = array<i32>} : memref<1x2x64xf32, #tpu.memory_space<vmem>>, vector<1x2x64xf32>,
    return
  }
  func.func @transform_0(%arg0: i32) -> (i32, i32, i32) {
    %c0_i32 = arith.constant 0 : i32
    %c0_i32_0 = arith.constant 0 : i32
    %c0_i32_1 = arith.constant 0 : i32
    return %arg0, %c0_i32, %c0_i32_0 : i32, i32, i32
  }
  func.func @transform_1(%arg0: i32) -> (i32, i32, i32) {
    %c0_i32 = arith.constant 0 : i32
    %c0_i32_0 = arith.constant 0 : i32
    %c0_i32_1 = arith.constant 0 : i32
    %c0_i32_2 = arith.constant 0 : i32
    return %c0_i32, %c0_i32_0, %c0_i32_1 : i32, i32, i32
  }
  func.func @transform_2(%arg0: i32) -> (i32, i32) {
    %c0_i32 = arith.constant 0 : i32
    %c0_i32_0 = arith.constant 0 : i32
    %c0_i32_1 = arith.constant 0 : i32
    return %c0_i32, %c0_i32_0 : i32, i32
  }
  func.func @transform_3(%arg0: i32) -> (i32, i32, i32) {
    %c0_i32 = arith.constant 0 : i32
    %c0_i32_0 = arith.constant 0 : i32
    %c0_i32_1 = arith.constant 0 : i32
    %c0_i32_2 = arith.constant 0 : i32
    return %c0_i32, %c0_i32_0, %c0_i32_1 : i32, i32, i32
  }
  func.func @transform_4(%arg0: i32) -> (i32, i32) {
    %c0_i32 = arith.constant 0 : i32
    %c0_i32_0 = arith.constant 0 : i32
    %c0_i32_1 = arith.constant 0 : i32
    return %c0_i32, %c0_i32_0 : i32, i32
  }
  func.func @transform_5(%arg0: i32) -> (i32, i32, i32) {
    %c0_i32 = arith.constant 0 : i32
    %c0_i32_0 = arith.constant 0 : i32
    %c0_i32_1 = arith.constant 0 : i32
    %c0_i32_2 = arith.constant 0 : i32
    return %c0_i32, %c0_i32_0, %c0_i32_1 : i32, i32, i32
  }
  func.func @transform_6(%arg0: i32) -> (i32, i32) {
    %c0_i32 = arith.constant 0 : i32
    %c0_i32_0 = arith.constant 0 : i32
    %c0_i32_1 = arith.constant 0 : i32
    return %c0_i32, %c0_i32_0 : i32, i32
  }
  func.func @transform_7(%arg0: i32) -> (i32, i32, i32) {
    %c0_i32 = arith.constant 0 : i32
    %c0_i32_0 = arith.constant 0 : i32
    %c0_i32_1 = arith.constant 0 : i32
    %c0_i32_2 = arith.constant 0 : i32
    return %c0_i32, %c0_i32_0, %c0_i32_1 : i32, i32, i32
  }
  func.func @transform_8(%arg0: i32) -> (i32, i32) {
    %c0_i32 = arith.constant 0 : i32
    %c0_i32_0 = arith.constant 0 : i32
    %c0_i32_1 = arith.constant 0 : i32
    return %c0_i32, %c0_i32_0 : i32, i32
  }
  func.func @transform_9(%arg0: i32) -> (i32, i32, i32) {
    %c0_i32 = arith.constant 0 : i32
    %c0_i32_0 = arith.constant 0 : i32
    %c0_i32_1 = arith.constant 0 : i32
    %c0_i32_2 = arith.constant 0 : i32
    return %c0_i32, %c0_i32_0, %c0_i32_1 : i32, i32, i32
  }
  func.func @transform_10(%arg0: i32) -> (i32, i32) {
    %c0_i32 = arith.constant 0 : i32
    %c0_i32_0 = arith.constant 0 : i32
    %c0_i32_1 = arith.constant 0 : i32
    return %c0_i32, %c0_i32_0 : i32, i32
  }
  func.func @transform_11(%arg0: i32) -> (i32, i32, i32) {
    %c0_i32 = arith.constant 0 : i32
    %c0_i32_0 = arith.constant 0 : i32
    %c0_i32_1 = arith.constant 0 : i32
    %c0_i32_2 = arith.constant 0 : i32
    return %c0_i32, %c0_i32_0, %c0_i32_1 : i32, i32, i32
  }
  func.func @transform_12(%arg0: i32) -> (i32, i32) {
    %c0_i32 = arith.constant 0 : i32
    %c0_i32_0 = arith.constant 0 : i32
    %c0_i32_1 = arith.constant 0 : i32
    return %c0_i32, %c0_i32_0 : i32, i32
  }
  func.func @transform_13(%arg0: i32) -> (i32, i32, i32) {
    %c0_i32 = arith.constant 0 : i32
    %c0_i32_0 = arith.constant 0 : i32
    %c0_i32_1 = arith.constant 0 : i32
    return %arg0, %c0_i32, %c0_i32_0 : i32, i32, i32
  }
  func.func @transform_14(%arg0: i32) -> (i32, i32, i32) {
    %c0_i32 = arith.constant 0 : i32
    %c0_i32_0 = arith.constant 0 : i32
    %c0_i32_1 = arith.constant 0 : i32
    return %arg0, %c0_i32, %c0_i32_0 : i32, i32, i32
  }
  func.func @transform_15(%arg0: i32) -> (i32, i32, i32) {
    %c0_i32 = arith.constant 0 : i32
    %c0_i32_0 = arith.constant 0 : i32
    %c0_i32_1 = arith.constant 0 : i32
    return %arg0, %c0_i32, %c0_i32_0 : i32, i32, i32
  }
}

</mosaic_0001>

<llo_original>
// kernel: forward.1
$region0: #{forward.1}
  #allocation0 [shape = 'u32[]', space=smem, size = 0x4, offset = 0x4, fixed_abs, tag = 'smem constant byte address 0x4 - core index']
  #allocation1 [shape = 'u32[144,128]{1,0:T(1,128)}', space=vmem, size = 0x12000, scoped, tag = 'internal scratch']
  %s0 = inlined_call_operand.vmem [shape: f32[2,36,144], index: 0, kind: input, shape index: {}]
  %s1 = inlined_call_operand.vmem [shape: f32[3,144,272], index: 1, kind: input, shape index: {}]
  %s2 = inlined_call_operand.vmem [shape: f32[1,272], index: 2, kind: input, shape index: {}]
  %s3 = inlined_call_operand.vmem [shape: f32[3,272,256], index: 3, kind: input, shape index: {}]
  %s4 = inlined_call_operand.vmem [shape: f32[1,256], index: 4, kind: input, shape index: {}]
  %s5 = inlined_call_operand.vmem [shape: f32[3,128,224], index: 5, kind: input, shape index: {}]
  %s6 = inlined_call_operand.vmem [shape: f32[1,224], index: 6, kind: input, shape index: {}]
  %s7 = inlined_call_operand.vmem [shape: f32[3,224,192], index: 7, kind: input, shape index: {}]
  %s8 = inlined_call_operand.vmem [shape: f32[1,192], index: 8, kind: input, shape index: {}]
  %s9 = inlined_call_operand.vmem [shape: f32[3,96,128], index: 9, kind: input, shape index: {}]
  %s10 = inlined_call_operand.vmem [shape: f32[1,128], index: 10, kind: input, shape index: {}]
  %s11 = inlined_call_operand.vmem [shape: f32[3,128,64], index: 11, kind: input, shape index: {}]
  %s12 = inlined_call_operand.vmem [shape: f32[1,64], index: 12, kind: input, shape index: {}]
  %s13 = inlined_call_operand.vmem [shape: f32[2,32,256], index: 13, kind: output, shape index: {0}]
  %s14 = inlined_call_operand.vmem [shape: f32[2,12,192], index: 14, kind: output, shape index: {1}]
  %s15 = inlined_call_operand.vmem [shape: f32[2,2,64], index: 15, kind: output, shape index: {2}]
  %16 = xla_tuple %s13, %s14, %s15
  %s17 = sld [smem:[#allocation0]]
  $region101: #{forward.1} parent=0
    _
  %s19 = ssub.s32 1, %s17
  %s20 = scalar_select 0, %s19, %s17
  loop: start=0, step=1, limit=4
  $region2: #{forward.1} parent=0 // loop_pre_header
    _
  $region3: #{forward.1} parent=0 // loop_header
    %s22 = sphi 0, %s26
    %p23 = scmp.ge.s32.totalorder %s22, 4
    %s32 = sphi 0, %s34
    %s35 = sphi 0, %s32
    %s36 = sphi 0, %s35
    %s52 = sphi 0, %s36
    %s56 = sphi 0, %s56
    %s58 = sphi 0, %s56
    %s59 = sphi 0, %s58
    %s73 = sphi 0, %s59
    %s77 = sphi 0, %s77
    %s79 = sphi 0, %s77
    %s80 = sphi 0, %s79
    %s94 = sphi 0, %s80
    %s98 = sphi 0, %s98
    %s100 = sphi 0, %s98
    %s101 = sphi 0, %s100
    %s115 = sphi 0, %s101
    %s119 = sphi 0, %s119
    %s121 = sphi 0, %s119
    %s122 = sphi 0, %s121
    %s136 = sphi 0, %s122
    %s140 = sphi 0, %s140
    %s142 = sphi 0, %s140
    %s143 = sphi 0, %s142
    %s157 = sphi 0, %s143
    %s161 = sphi 0, %s161
    %s163 = sphi 0, %s161
    %s164 = sphi 0, %s163
    %s178 = sphi 0, %s164
    %s182 = sphi 0, %s182
    %s184 = sphi 0, %s182
    %s185 = sphi 0, %s184
    %s199 = sphi 0, %s185
    %s203 = sphi 0, %s203
    %s205 = sphi 0, %s203
    %s206 = sphi 0, %s205
    %s220 = sphi 0, %s206
    %s224 = sphi 0, %s224
    %s226 = sphi 0, %s224
    %s227 = sphi 0, %s226
    %s241 = sphi 0, %s227
    %s245 = sphi 0, %s245
    %s247 = sphi 0, %s245
    %s248 = sphi 0, %s247
    %s262 = sphi 0, %s248
    %s266 = sphi 0, %s266
    %s268 = sphi 0, %s266
    %s269 = sphi 0, %s268
    %s283 = sphi 0, %s269
    %s287 = sphi 0, %s287
    %s289 = sphi 0, %s287
    %s290 = sphi 0, %s289
    %s304 = sphi 0, %s290
    %s310 = sphi 0, %s312
    %s313 = sphi 0, %s310
    %s314 = sphi 0, %s313
    %s330 = sphi 0, %s314
    %s336 = sphi 0, %s338
    %s339 = sphi 0, %s336
    %s340 = sphi 0, %s339
    %s356 = sphi 0, %s340
    %s362 = sphi 0, %s364
    %s365 = sphi 0, %s362
    %s366 = sphi 0, %s365
    %s382 = sphi 0, %s366
  $region4: #{forward.1} parent=0 // loop_header_branch
    %25 = sbr.rel (%p23) target = $region8
  $region5: #{forward.1} parent=0 // loop_body
    %s27 = ssub.s32 %s22, 1
    %s28 = ssub.s32 %s22, 2
    %s29 = sadd.s32 %s22, 1
    %s30 = ssub.s32 %s22, %s29
    %p31 = scmp.eq.s32.totalorder %s30, 0
    %s33 = sadd.s32 %s32, 1
    %s34 = scalar_select %p31, %s32, %s33
    %p37 = pneg %p31
    %p38 = scmp.eq.s32.totalorder %s22, 1
    %p39 = por %p37, %p38
    %p40 = scmp.ne.s32.totalorder %s32, %s35
    %p41 = scmp.eq.s32.totalorder %s22, 0
    %p42 = por %p40, %p41
    %p43 = scmp.ne.s32.totalorder %s32, %s35
    %p44 = scmp.eq.s32.totalorder %s27, 1
    %p45 = por %p43, %p44
    %p46 = scmp.ne.s32.totalorder %s35, %s36
    %p47 = scmp.eq.s32.totalorder %s27, 0
    %p48 = por %p46, %p47
    %p49 = scmp.ne.s32.totalorder %s35, %s36
    %p50 = scmp.eq.s32.totalorder %s28, 1
    %p51 = por %p49, %p50
    %p53 = scmp.ne.s32.totalorder %s36, %s52
    %p54 = scmp.eq.s32.totalorder %s28, 0
    %p55 = por %p53, %p54
    %s57 = sadd.s32 %s56, 1
    %p60 = scmp.eq.s32.totalorder %s22, 1
    %p61 = scmp.ne.s32.totalorder %s56, %s58
    %p62 = scmp.eq.s32.totalorder %s22, 0
    %p63 = por %p61, %p62
    %p64 = scmp.ne.s32.totalorder %s56, %s58
    %p65 = scmp.eq.s32.totalorder %s27, 1
    %p66 = por %p64, %p65
    %p67 = scmp.ne.s32.totalorder %s58, %s59
    %p68 = scmp.eq.s32.totalorder %s27, 0
    %p69 = por %p67, %p68
    %p70 = scmp.ne.s32.totalorder %s58, %s59
    %p71 = scmp.eq.s32.totalorder %s28, 1
    %p72 = por %p70, %p71
    %p74 = scmp.ne.s32.totalorder %s59, %s73
    %p75 = scmp.eq.s32.totalorder %s28, 0
    %p76 = por %p74, %p75
    %s78 = sadd.s32 %s77, 1
    %p81 = scmp.eq.s32.totalorder %s22, 1
    %p82 = scmp.ne.s32.totalorder %s77, %s79
    %p83 = scmp.eq.s32.totalorder %s22, 0
    %p84 = por %p82, %p83
    %p85 = scmp.ne.s32.totalorder %s77, %s79
    %p86 = scmp.eq.s32.totalorder %s27, 1
    %p87 = por %p85, %p86
    %p88 = scmp.ne.s32.totalorder %s79, %s80
    %p89 = scmp.eq.s32.totalorder %s27, 0
    %p90 = por %p88, %p89
    %p91 = scmp.ne.s32.totalorder %s79, %s80
    %p92 = scmp.eq.s32.totalorder %s28, 1
    %p93 = por %p91, %p92
    %p95 = scmp.ne.s32.totalorder %s80, %s94
    %p96 = scmp.eq.s32.totalorder %s28, 0
    %p97 = por %p95, %p96
    %s99 = sadd.s32 %s98, 1
    %p102 = scmp.eq.s32.totalorder %s22, 1
    %p103 = scmp.ne.s32.totalorder %s98, %s100
    %p104 = scmp.eq.s32.totalorder %s22, 0
    %p105 = por %p103, %p104
    %p106 = scmp.ne.s32.totalorder %s98, %s100
    %p107 = scmp.eq.s32.totalorder %s27, 1
    %p108 = por %p106, %p107
    %p109 = scmp.ne.s32.totalorder %s100, %s101
    %p110 = scmp.eq.s32.totalorder %s27, 0
    %p111 = por %p109, %p110
    %p112 = scmp.ne.s32.totalorder %s100, %s101
    %p113 = scmp.eq.s32.totalorder %s28, 1
    %p114 = por %p112, %p113
    %p116 = scmp.ne.s32.totalorder %s101, %s115
    %p117 = scmp.eq.s32.totalorder %s28, 0
    %p118 = por %p116, %p117
    %s120 = sadd.s32 %s119, 1
    %p123 = scmp.eq.s32.totalorder %s22, 1
    %p124 = scmp.ne.s32.totalorder %s119, %s121
    %p125 = scmp.eq.s32.totalorder %s22, 0
    %p126 = por %p124, %p125
    %p127 = scmp.ne.s32.totalorder %s119, %s121
    %p128 = scmp.eq.s32.totalorder %s27, 1
    %p129 = por %p127, %p128
    %p130 = scmp.ne.s32.totalorder %s121, %s122
    %p131 = scmp.eq.s32.totalorder %s27, 0
    %p132 = por %p130, %p131
    %p133 = scmp.ne.s32.totalorder %s121, %s122
    %p134 = scmp.eq.s32.totalorder %s28, 1
    %p135 = por %p133, %p134
    %p137 = scmp.ne.s32.totalorder %s122, %s136
    %p138 = scmp.eq.s32.totalorder %s28, 0
    %p139 = por %p137, %p138
    %s141 = sadd.s32 %s140, 1
    %p144 = scmp.eq.s32.totalorder %s22, 1
    %p145 = scmp.ne.s32.totalorder %s140, %s142
    %p146 = scmp.eq.s32.totalorder %s22, 0
    %p147 = por %p145, %p146
    %p148 = scmp.ne.s32.totalorder %s140, %s142
    %p149 = scmp.eq.s32.totalorder %s27, 1
    %p150 = por %p148, %p149
    %p151 = scmp.ne.s32.totalorder %s142, %s143
    %p152 = scmp.eq.s32.totalorder %s27, 0
    %p153 = por %p151, %p152
    %p154 = scmp.ne.s32.totalorder %s142, %s143
    %p155 = scmp.eq.s32.totalorder %s28, 1
    %p156 = por %p154, %p155
    %p158 = scmp.ne.s32.totalorder %s143, %s157
    %p159 = scmp.eq.s32.totalorder %s28, 0
    %p160 = por %p158, %p159
    %s162 = sadd.s32 %s161, 1
    %p165 = scmp.eq.s32.totalorder %s22, 1
    %p166 = scmp.ne.s32.totalorder %s161, %s163
    %p167 = scmp.eq.s32.totalorder %s22, 0
    %p168 = por %p166, %p167
    %p169 = scmp.ne.s32.totalorder %s161, %s163
    %p170 = scmp.eq.s32.totalorder %s27, 1
    %p171 = por %p169, %p170
    %p172 = scmp.ne.s32.totalorder %s163, %s164
    %p173 = scmp.eq.s32.totalorder %s27, 0
    %p174 = por %p172, %p173
    %p175 = scmp.ne.s32.totalorder %s163, %s164
    %p176 = scmp.eq.s32.totalorder %s28, 1
    %p177 = por %p175, %p176
    %p179 = scmp.ne.s32.totalorder %s164, %s178
    %p180 = scmp.eq.s32.totalorder %s28, 0
    %p181 = por %p179, %p180
    %s183 = sadd.s32 %s182, 1
    %p186 = scmp.eq.s32.totalorder %s22, 1
    %p187 = scmp.ne.s32.totalorder %s182, %s184
    %p188 = scmp.eq.s32.totalorder %s22, 0
    %p189 = por %p187, %p188
    %p190 = scmp.ne.s32.totalorder %s182, %s184
    %p191 = scmp.eq.s32.totalorder %s27, 1
    %p192 = por %p190, %p191
    %p193 = scmp.ne.s32.totalorder %s184, %s185
    %p194 = scmp.eq.s32.totalorder %s27, 0
    %p195 = por %p193, %p194
    %p196 = scmp.ne.s32.totalorder %s184, %s185
    %p197 = scmp.eq.s32.totalorder %s28, 1
    %p198 = por %p196, %p197
    %p200 = scmp.ne.s32.totalorder %s185, %s199
    %p201 = scmp.eq.s32.totalorder %s28, 0
    %p202 = por %p200, %p201
    %s204 = sadd.s32 %s203, 1
    %p207 = scmp.eq.s32.totalorder %s22, 1
    %p208 = scmp.ne.s32.totalorder %s203, %s205
    %p209 = scmp.eq.s32.totalorder %s22, 0
    %p210 = por %p208, %p209
    %p211 = scmp.ne.s32.totalorder %s203, %s205
    %p212 = scmp.eq.s32.totalorder %s27, 1
    %p213 = por %p211, %p212
    %p214 = scmp.ne.s32.totalorder %s205, %s206
    %p215 = scmp.eq.s32.totalorder %s27, 0
    %p216 = por %p214, %p215
    %p217 = scmp.ne.s32.totalorder %s205, %s206
    %p218 = scmp.eq.s32.totalorder %s28, 1
    %p219 = por %p217, %p218
    %p221 = scmp.ne.s32.totalorder %s206, %s220
    %p222 = scmp.eq.s32.totalorder %s28, 0
    %p223 = por %p221, %p222
    %s225 = sadd.s32 %s224, 1
    %p228 = scmp.eq.s32.totalorder %s22, 1
    %p229 = scmp.ne.s32.totalorder %s224, %s226
    %p230 = scmp.eq.s32.totalorder %s22, 0
    %p231 = por %p229, %p230
    %p232 = scmp.ne.s32.totalorder %s224, %s226
    %p233 = scmp.eq.s32.totalorder %s27, 1
    %p234 = por %p232, %p233
    %p235 = scmp.ne.s32.totalorder %s226, %s227
    %p236 = scmp.eq.s32.totalorder %s27, 0
    %p237 = por %p235, %p236
    %p238 = scmp.ne.s32.totalorder %s226, %s227
    %p239 = scmp.eq.s32.totalorder %s28, 1
    %p240 = por %p238, %p239
    %p242 = scmp.ne.s32.totalorder %s227, %s241
    %p243 = scmp.eq.s32.totalorder %s28, 0
    %p244 = por %p242, %p243
    %s246 = sadd.s32 %s245, 1
    %p249 = scmp.eq.s32.totalorder %s22, 1
    %p250 = scmp.ne.s32.totalorder %s245, %s247
    %p251 = scmp.eq.s32.totalorder %s22, 0
    %p252 = por %p250, %p251
    %p253 = scmp.ne.s32.totalorder %s245, %s247
    %p254 = scmp.eq.s32.totalorder %s27, 1
    %p255 = por %p253, %p254
    %p256 = scmp.ne.s32.totalorder %s247, %s248
    %p257 = scmp.eq.s32.totalorder %s27, 0
    %p258 = por %p256, %p257
    %p259 = scmp.ne.s32.totalorder %s247, %s248
    %p260 = scmp.eq.s32.totalorder %s28, 1
    %p261 = por %p259, %p260
    %p263 = scmp.ne.s32.totalorder %s248, %s262
    %p264 = scmp.eq.s32.totalorder %s28, 0
    %p265 = por %p263, %p264
    %s267 = sadd.s32 %s266, 1
    %p270 = scmp.eq.s32.totalorder %s22, 1
    %p271 = scmp.ne.s32.totalorder %s266, %s268
    %p272 = scmp.eq.s32.totalorder %s22, 0
    %p273 = por %p271, %p272
    %p274 = scmp.ne.s32.totalorder %s266, %s268
    %p275 = scmp.eq.s32.totalorder %s27, 1
    %p276 = por %p274, %p275
    %p277 = scmp.ne.s32.totalorder %s268, %s269
    %p278 = scmp.eq.s32.totalorder %s27, 0
    %p279 = por %p277, %p278
    %p280 = scmp.ne.s32.totalorder %s268, %s269
    %p281 = scmp.eq.s32.totalorder %s28, 1
    %p282 = por %p280, %p281
    %p284 = scmp.ne.s32.totalorder %s269, %s283
    %p285 = scmp.eq.s32.totalorder %s28, 0
    %p286 = por %p284, %p285
    %s288 = sadd.s32 %s287, 1
    %p291 = scmp.eq.s32.totalorder %s22, 1
    %p292 = scmp.ne.s32.totalorder %s287, %s289
    %p293 = scmp.eq.s32.totalorder %s22, 0
    %p294 = por %p292, %p293
    %p295 = scmp.ne.s32.totalorder %s287, %s289
    %p296 = scmp.eq.s32.totalorder %s27, 1
    %p297 = por %p295, %p296
    %p298 = scmp.ne.s32.totalorder %s289, %s290
    %p299 = scmp.eq.s32.totalorder %s27, 0
    %p300 = por %p298, %p299
    %p301 = scmp.ne.s32.totalorder %s289, %s290
    %p302 = scmp.eq.s32.totalorder %s28, 1
    %p303 = por %p301, %p302
    %p305 = scmp.ne.s32.totalorder %s290, %s304
    %p306 = scmp.eq.s32.totalorder %s28, 0
    %p307 = por %p305, %p306
    %s308 = ssub.s32 %s22, %s29
    %p309 = scmp.eq.s32.totalorder %s308, 0
    %s311 = sadd.s32 %s310, 1
    %s312 = scalar_select %p309, %s310, %s311
    %p315 = pneg %p309
    %p316 = scmp.eq.s32.totalorder %s22, 1
    %p317 = por %p315, %p316
    %p318 = scmp.ne.s32.totalorder %s310, %s313
    %p319 = scmp.eq.s32.totalorder %s22, 0
    %p320 = por %p318, %p319
    %p321 = scmp.ne.s32.totalorder %s310, %s313
    %p322 = scmp.eq.s32.totalorder %s27, 1
    %p323 = por %p321, %p322
    %p324 = scmp.ne.s32.totalorder %s313, %s314
    %p325 = scmp.eq.s32.totalorder %s27, 0
    %p326 = por %p324, %p325
    %p327 = scmp.ne.s32.totalorder %s313, %s314
    %p328 = scmp.eq.s32.totalorder %s28, 1
    %p329 = por %p327, %p328
    %p331 = scmp.ne.s32.totalorder %s314, %s330
    %p332 = scmp.eq.s32.totalorder %s28, 0
    %p333 = por %p331, %p332
    %s334 = ssub.s32 %s22, %s29
    %p335 = scmp.eq.s32.totalorder %s334, 0
    %s337 = sadd.s32 %s336, 1
    %s338 = scalar_select %p335, %s336, %s337
    %p341 = pneg %p335
    %p342 = scmp.eq.s32.totalorder %s22, 1
    %p343 = por %p341, %p342
    %p344 = scmp.ne.s32.totalorder %s336, %s339
    %p345 = scmp.eq.s32.totalorder %s22, 0
    %p346 = por %p344, %p345
    %p347 = scmp.ne.s32.totalorder %s336, %s339
    %p348 = scmp.eq.s32.totalorder %s27, 1
    %p349 = por %p347, %p348
    %p350 = scmp.ne.s32.totalorder %s339, %s340
    %p351 = scmp.eq.s32.totalorder %s27, 0
    %p352 = por %p350, %p351
    %p353 = scmp.ne.s32.totalorder %s339, %s340
    %p354 = scmp.eq.s32.totalorder %s28, 1
    %p355 = por %p353, %p354
    %p357 = scmp.ne.s32.totalorder %s340, %s356
    %p358 = scmp.eq.s32.totalorder %s28, 0
    %p359 = por %p357, %p358
    %s360 = ssub.s32 %s22, %s29
    %p361 = scmp.eq.s32.totalorder %s360, 0
    %s363 = sadd.s32 %s362, 1
    %s364 = scalar_select %p361, %s362, %s363
    %p367 = pneg %p361
    %p368 = scmp.eq.s32.totalorder %s22, 1
    %p369 = por %p367, %p368
    %p370 = scmp.ne.s32.totalorder %s362, %s365
    %p371 = scmp.eq.s32.totalorder %s22, 0
    %p372 = por %p370, %p371
    %p373 = scmp.ne.s32.totalorder %s362, %s365
    %p374 = scmp.eq.s32.totalorder %s27, 1
    %p375 = por %p373, %p374
    %p376 = scmp.ne.s32.totalorder %s365, %s366
    %p377 = scmp.eq.s32.totalorder %s27, 0
    %p378 = por %p376, %p377
    %p379 = scmp.ne.s32.totalorder %s365, %s366
    %p380 = scmp.eq.s32.totalorder %s28, 1
    %p381 = por %p379, %p380
    %p383 = scmp.ne.s32.totalorder %s366, %s382
    %p384 = scmp.eq.s32.totalorder %s28, 0
    %p385 = por %p383, %p384
    %p386 = scmp.le.s32.totalorder 1, %s22
    %p387 = scmp.lt.s32.totalorder %s22, 3
    %p388 = pnand %p386, %p387
    %p389 = pneg %p388
    // Predicated region
    $region9: #{forward.1} parent=5 // pred_check
      _
    $region10: #{forward.1} parent=5 // pred_check_branch
      %391 = sbr.rel (%p388) target = $region12
    $region11: #{forward.1} parent=5 // pred_region
      %s392 = ssub.s32 %s22, 1
      // Predicated region
      $region13: #{forward.1} parent=11 // pred_check
        %p393 = pneg %p69
      $region14: #{forward.1} parent=11 // pred_check_branch
        %395 = sbr.rel (%p393) target = $region16
      $region15: #{forward.1} parent=11 // pred_region
        _
      $region16: #{forward.1} parent=11 // pred_fallthru
        _
      // Predicated region
      $region17: #{forward.1} parent=11 // pred_check
        %p396 = pneg %p90
      $region18: #{forward.1} parent=11 // pred_check_branch
        %398 = sbr.rel (%p396) target = $region20
      $region19: #{forward.1} parent=11 // pred_region
        _
      $region20: #{forward.1} parent=11 // pred_fallthru
        _
      // Predicated region
      $region21: #{forward.1} parent=11 // pred_check
        %p399 = pneg %p111
      $region22: #{forward.1} parent=11 // pred_check_branch
        %401 = sbr.rel (%p399) target = $region24
      $region23: #{forward.1} parent=11 // pred_region
        _
      $region24: #{forward.1} parent=11 // pred_fallthru
        _
      // Predicated region
      $region25: #{forward.1} parent=11 // pred_check
        %p402 = pneg %p132
      $region26: #{forward.1} parent=11 // pred_check_branch
        %404 = sbr.rel (%p402) target = $region28
      $region27: #{forward.1} parent=11 // pred_region
        _
      $region28: #{forward.1} parent=11 // pred_fallthru
        _
      // Predicated region
      $region29: #{forward.1} parent=11 // pred_check
        %p405 = pneg %p153
      $region30: #{forward.1} parent=11 // pred_check_branch
        %407 = sbr.rel (%p405) target = $region32
      $region31: #{forward.1} parent=11 // pred_region
        _
      $region32: #{forward.1} parent=11 // pred_fallthru
        _
      // Predicated region
      $region33: #{forward.1} parent=11 // pred_check
        %p408 = pneg %p174
      $region34: #{forward.1} parent=11 // pred_check_branch
        %410 = sbr.rel (%p408) target = $region36
      $region35: #{forward.1} parent=11 // pred_region
        _
      $region36: #{forward.1} parent=11 // pred_fallthru
        _
      // Predicated region
      $region37: #{forward.1} parent=11 // pred_check
        %p411 = pneg %p195
      $region38: #{forward.1} parent=11 // pred_check_branch
        %413 = sbr.rel (%p411) target = $region40
      $region39: #{forward.1} parent=11 // pred_region
        _
      $region40: #{forward.1} parent=11 // pred_fallthru
        _
      // Predicated region
      $region41: #{forward.1} parent=11 // pred_check
        %p414 = pneg %p216
      $region42: #{forward.1} parent=11 // pred_check_branch
        %416 = sbr.rel (%p414) target = $region44
      $region43: #{forward.1} parent=11 // pred_region
        _
      $region44: #{forward.1} parent=11 // pred_fallthru
        _
      // Predicated region
      $region45: #{forward.1} parent=11 // pred_check
        %p417 = pneg %p237
      $region46: #{forward.1} parent=11 // pred_check_branch
        %419 = sbr.rel (%p417) target = $region48
      $region47: #{forward.1} parent=11 // pred_region
        _
      $region48: #{forward.1} parent=11 // pred_fallthru
        _
      // Predicated region
      $region49: #{forward.1} parent=11 // pred_check
        %p420 = pneg %p258
      $region50: #{forward.1} parent=11 // pred_check_branch
        %422 = sbr.rel (%p420) target = $region52
      $region51: #{forward.1} parent=11 // pred_region
        _
      $region52: #{forward.1} parent=11 // pred_fallthru
        _
      // Predicated region
      $region53: #{forward.1} parent=11 // pred_check
        %p423 = pneg %p279
      $region54: #{forward.1} parent=11 // pred_check_branch
        %425 = sbr.rel (%p423) target = $region56
      $region55: #{forward.1} parent=11 // pred_region
        _
      $region56: #{forward.1} parent=11 // pred_fallthru
        _
      // Predicated region
      $region57: #{forward.1} parent=11 // pred_check
        %p426 = pneg %p300
      $region58: #{forward.1} parent=11 // pred_check_branch
        %428 = sbr.rel (%p426) target = $region60
      $region59: #{forward.1} parent=11 // pred_region
        _
      $region60: #{forward.1} parent=11 // pred_fallthru
        _
    $region12: #{forward.1} parent=5 // pred_fallthru
      _
    %p429 = scmp.lt.s32.totalorder %s22, 2
    // Predicated region
    $region61: #{forward.1} parent=5 // pred_check
      %p430 = pneg %p429
    $region62: #{forward.1} parent=5 // pred_check_branch
      %432 = sbr.rel (%p430) target = $region64
    $region63: #{forward.1} parent=5 // pred_region
      // Predicated region
      $region65: #{forward.1} parent=63 // pred_check
        %p433 = pneg %p42
      $region66: #{forward.1} parent=63 // pred_check_branch
        %435 = sbr.rel (%p433) target = $region68
      $region67: #{forward.1} parent=63 // pred_region
        %p436 = scmp.lt.s32.totalorder %s22, 1
        %s437 = scalar_select %p436, %s22, 1
        %s438 = smul.addr %s437, 10
        %s439 = smul.addr %s438, 8
        %s440 = scalar_lea.vmem %s0, %s439
      $region68: #{forward.1} parent=63 // pred_fallthru
        _
    $region64: #{forward.1} parent=5 // pred_fallthru
      _
    %p441 = scmp.le.s32.totalorder 1, %s22
    %p442 = scmp.lt.s32.totalorder %s22, 3
    %p443 = pnand %p441, %p442
    %p444 = pneg %p443
    // Predicated region
    $region69: #{forward.1} parent=5 // pred_check
      _
    $region70: #{forward.1} parent=5 // pred_check_branch
      %446 = sbr.rel (%p443) target = $region72
    $region71: #{forward.1} parent=5 // pred_region
      %s447 = ssub.s32 %s22, 1
      %p448 = scmp.lt.s32.totalorder %s27, 1
      %s449 = scalar_select %p448, %s27, 1
      %s450 = smul.addr %s449, 10
      %s451 = smul.addr %s450, 8
      %s452 = scalar_lea.vmem %s0, %s451
      %p453 = pneg %p48
      %p454 = pneg %p45
      %p455 = pneg %p69
      %p456 = pneg %p66
      %p457 = pneg %p90
      %p458 = pneg %p87
      %p459 = pneg %p111
      %p460 = pneg %p108
      %p461 = pneg %p132
      %p462 = pneg %p129
      %p463 = pneg %p153
      %p464 = pneg %p150
      %p465 = pneg %p174
      %p466 = pneg %p171
      %p467 = pneg %p195
      %p468 = pneg %p192
      %p469 = pneg %p216
      %p470 = pneg %p213
      %p471 = pneg %p237
      %p472 = pneg %p234
      %p473 = pneg %p258
      %p474 = pneg %p255
      %p475 = pneg %p279
      %p476 = pneg %p276
      %p477 = pneg %p300
      %p478 = pneg %p297
      %p479 = pneg %p326
      %p480 = pneg %p323
      %p481 = scmp.lt.s32.totalorder %s27, 1
      %s482 = scalar_select %p481, %s27, 1
      %s483 = smul.addr %s482, 8
      %s484 = smul.addr %s483, 8
      %s485 = scalar_lea.vmem %s13, %s484
      %p486 = pneg %p352
      %p487 = pneg %p349
      %p488 = scmp.lt.s32.totalorder %s27, 1
      %s489 = scalar_select %p488, %s27, 1
      %s490 = smul.addr %s489, 4
      %s491 = smul.addr %s490, 8
      %s492 = scalar_lea.vmem %s14, %s491
      %p493 = pneg %p378
      %p494 = pneg %p375
      %p495 = scmp.lt.s32.totalorder %s27, 1
      %s496 = scalar_select %p495, %s27, 1
      %s497 = smul.addr %s496, 2
      %s498 = scalar_lea.vmem %s15, %s497
      %p499 = scmp.lt.s32.totalorder %s27, 1
      %s500 = scalar_select %p499, %s27, 1
      %s501 = smul.addr %s500, 10
      %s502 = smul.addr %s501, 8
      %s503 = scalar_lea.vmem %s0, %s502
      %p504 = scmp.lt.s32.totalorder %s27, 1
      %s505 = scalar_select %p504, %s27, 1
      %s506 = smul.addr %s505, 8
      %s507 = smul.addr %s506, 8
      %s508 = scalar_lea.vmem %s13, %s507
      %p509 = scmp.lt.s32.totalorder %s27, 1
      %s510 = scalar_select %p509, %s27, 1
      %s511 = smul.addr %s510, 4
      %s512 = smul.addr %s511, 8
      %s513 = scalar_lea.vmem %s14, %s512
      %p514 = scmp.lt.s32.totalorder %s27, 1
      %s515 = scalar_select %p514, %s27, 1
      %s516 = smul.addr %s515, 2
      %s517 = scalar_lea.vmem %s15, %s516
      %v518 = vld [vmem:[%s503] sm:$0xff]
      %v519 = vld [vmem:[%s503 + $0x8] sm:$0xff]
      %v520 = vld [vmem:[%s503 + $0x10] sm:$0xff]
      %v521 = vld [vmem:[%s503 + $0x18] sm:$0xff]
      %v522 = vld [vmem:[%s503 + $0x20] sm:$0xff]
      %v523 = vld [vmem:[%s503 + $0x28] sm:$0xff]
      %v524 = vld [vmem:[%s503 + $0x30] sm:$0xff]
      %v525 = vld [vmem:[%s503 + $0x38] sm:$0xff]
      %v526 = vld [vmem:[%s503 + $0x40] sm:$0xf]
      %v527 = vld [vmem:[%s503 + $0x48] sm:$0xf]
      %v528 = vld [vmem:[%s1] sm:$0xff]
      %v529 = vld [vmem:[%s1 + $0x8] sm:$0xff]
      %v530 = vld [vmem:[%s1 + $0x10] sm:$0xff]
      %v531 = vld [vmem:[%s1 + $0x18] sm:$0xff]
      %v532 = vld [vmem:[%s1 + $0x20] sm:$0xff]
      %v533 = vld [vmem:[%s1 + $0x28] sm:$0xff]
      %v534 = vld [vmem:[%s1 + $0x30] sm:$0xff]
      %v535 = vld [vmem:[%s1 + $0x38] sm:$0xff]
      %v536 = vld [vmem:[%s1 + $0x40] sm:$0xff]
      %v537 = vld [vmem:[%s1 + $0x48] sm:$0xff]
      %v538 = vld [vmem:[%s1 + $0x50] sm:$0xff]
      %v539 = vld [vmem:[%s1 + $0x58] sm:$0xff]
      %v540 = vld [vmem:[%s1 + $0x60] sm:$0xff]
      %v541 = vld [vmem:[%s1 + $0x68] sm:$0xff]
      %v542 = vld [vmem:[%s1 + $0x70] sm:$0xff]
      %v543 = vld [vmem:[%s1 + $0x78] sm:$0xff]
      %v544 = vld [vmem:[%s1 + $0x80] sm:$0xff]
      %v545 = vld [vmem:[%s1 + $0x88] sm:$0xff]
      %v546 = vld [vmem:[%s1 + $0x90] sm:$0xff]
      %v547 = vld [vmem:[%s1 + $0x98] sm:$0xff]
      %v548 = vld [vmem:[%s1 + $0xa0] sm:$0xff]
      %v549 = vld [vmem:[%s1 + $0xa8] sm:$0xff]
      %v550 = vld [vmem:[%s1 + $0xb0] sm:$0xff]
      %v551 = vld [vmem:[%s1 + $0xb8] sm:$0xff]
      %v552 = vld [vmem:[%s1 + $0xc0] sm:$0xff]
      %v553 = vld [vmem:[%s1 + $0xc8] sm:$0xff]
      %v554 = vld [vmem:[%s1 + $0xd0] sm:$0xff]
      %v555 = vld [vmem:[%s1 + $0xd8] sm:$0xff]
      %v556 = vld [vmem:[%s1 + $0xe0] sm:$0xff]
      %v557 = vld [vmem:[%s1 + $0xe8] sm:$0xff]
      %v558 = vld [vmem:[%s1 + $0xf0] sm:$0xff]
      %v559 = vld [vmem:[%s1 + $0xf8] sm:$0xff]
      %v560 = vld [vmem:[%s1 + $0x100] sm:$0xff]
      %v561 = vld [vmem:[%s1 + $0x108] sm:$0xff]
      %v562 = vld [vmem:[%s1 + $0x110] sm:$0xff]
      %v563 = vld [vmem:[%s1 + $0x118] sm:$0xff]
      %v564 = vld [vmem:[%s1 + $0x120] sm:$0xff]
      %v565 = vld [vmem:[%s1 + $0x128] sm:$0xff]
      %v566 = vld [vmem:[%s1 + $0x130] sm:$0xff]
      %v567 = vld [vmem:[%s1 + $0x138] sm:$0xff]
      %v568 = vld [vmem:[%s1 + $0x140] sm:$0xff]
      %v569 = vld [vmem:[%s1 + $0x148] sm:$0xff]
      %v570 = vld [vmem:[%s1 + $0x150] sm:$0xff]
      %v571 = vld [vmem:[%s1 + $0x158] sm:$0xff]
      %v572 = vld [vmem:[%s1 + $0x160] sm:$0xff]
      %v573 = vld [vmem:[%s1 + $0x168] sm:$0xff]
      %v574 = vld [vmem:[%s1 + $0x170] sm:$0xff]
      %v575 = vld [vmem:[%s1 + $0x178] sm:$0xff]
      %v576 = vld [vmem:[%s1 + $0x180] sm:$0xff]
      %v577 = vld [vmem:[%s1 + $0x188] sm:$0xff]
      %v578 = vld [vmem:[%s1 + $0x190] sm:$0xff]
      %v579 = vld [vmem:[%s1 + $0x198] sm:$0xff]
      %v580 = vld [vmem:[%s1 + $0x1a0] sm:$0xff]
      %v581 = vld [vmem:[%s1 + $0x1a8] sm:$0xff]
      %s582 = scalar_lea.vmem %s1, 432
      %v583 = vld [vmem:[%s582] sm:$0xff]
      %v584 = vld [vmem:[%s582 + $0x8] sm:$0xff]
      %v585 = vld [vmem:[%s582 + $0x10] sm:$0xff]
      %v586 = vld [vmem:[%s582 + $0x18] sm:$0xff]
      %v587 = vld [vmem:[%s582 + $0x20] sm:$0xff]
      %v588 = vld [vmem:[%s582 + $0x28] sm:$0xff]
      %v589 = vld [vmem:[%s582 + $0x30] sm:$0xff]
      %v590 = vld [vmem:[%s582 + $0x38] sm:$0xff]
      %v591 = vld [vmem:[%s582 + $0x40] sm:$0xff]
      %v592 = vld [vmem:[%s582 + $0x48] sm:$0xff]
      %v593 = vld [vmem:[%s582 + $0x50] sm:$0xff]
      %v594 = vld [vmem:[%s582 + $0x58] sm:$0xff]
      %v595 = vld [vmem:[%s582 + $0x60] sm:$0xff]
      %v596 = vld [vmem:[%s582 + $0x68] sm:$0xff]
      %v597 = vld [vmem:[%s582 + $0x70] sm:$0xff]
      %v598 = vld [vmem:[%s582 + $0x78] sm:$0xff]
      %v599 = vld [vmem:[%s582 + $0x80] sm:$0xff]
      %v600 = vld [vmem:[%s582 + $0x88] sm:$0xff]
      %v601 = vld [vmem:[%s582 + $0x90] sm:$0xff]
      %v602 = vld [vmem:[%s582 + $0x98] sm:$0xff]
      %v603 = vld [vmem:[%s582 + $0xa0] sm:$0xff]
      %v604 = vld [vmem:[%s582 + $0xa8] sm:$0xff]
      %v605 = vld [vmem:[%s582 + $0xb0] sm:$0xff]
      %v606 = vld [vmem:[%s582 + $0xb8] sm:$0xff]
      %v607 = vld [vmem:[%s582 + $0xc0] sm:$0xff]
      %v608 = vld [vmem:[%s582 + $0xc8] sm:$0xff]
      %v609 = vld [vmem:[%s582 + $0xd0] sm:$0xff]
      %v610 = vld [vmem:[%s582 + $0xd8] sm:$0xff]
      %v611 = vld [vmem:[%s582 + $0xe0] sm:$0xff]
      %v612 = vld [vmem:[%s582 + $0xe8] sm:$0xff]
      %v613 = vld [vmem:[%s582 + $0xf0] sm:$0xff]
      %v614 = vld [vmem:[%s582 + $0xf8] sm:$0xff]
      %v615 = vld [vmem:[%s582 + $0x100] sm:$0xff]
      %v616 = vld [vmem:[%s582 + $0x108] sm:$0xff]
      %v617 = vld [vmem:[%s582 + $0x110] sm:$0xff]
      %v618 = vld [vmem:[%s582 + $0x118] sm:$0xff]
      %v619 = vld [vmem:[%s582 + $0x120] sm:$0xff]
      %v620 = vld [vmem:[%s582 + $0x128] sm:$0xff]
      %v621 = vld [vmem:[%s582 + $0x130] sm:$0xff]
      %v622 = vld [vmem:[%s582 + $0x138] sm:$0xff]
      %v623 = vld [vmem:[%s582 + $0x140] sm:$0xff]
      %v624 = vld [vmem:[%s582 + $0x148] sm:$0xff]
      %v625 = vld [vmem:[%s582 + $0x150] sm:$0xff]
      %v626 = vld [vmem:[%s582 + $0x158] sm:$0xff]
      %v627 = vld [vmem:[%s582 + $0x160] sm:$0xff]
      %v628 = vld [vmem:[%s582 + $0x168] sm:$0xff]
      %v629 = vld [vmem:[%s582 + $0x170] sm:$0xff]
      %v630 = vld [vmem:[%s582 + $0x178] sm:$0xff]
      %v631 = vld [vmem:[%s582 + $0x180] sm:$0xff]
      %v632 = vld [vmem:[%s582 + $0x188] sm:$0xff]
      %v633 = vld [vmem:[%s582 + $0x190] sm:$0xff]
      %v634 = vld [vmem:[%s582 + $0x198] sm:$0xff]
      %v635 = vld [vmem:[%s582 + $0x1a0] sm:$0xff]
      %v636 = vld [vmem:[%s582 + $0x1a8] sm:$0xff]
      %vm647 = vcmask 1046528
      %v648 = vrot.slane %v518, 1
      %v649 = vrot.slane %v520, 1
      %v650 = vsel %vm647, %v648, %v649
      %v651 = vrot.slane %v519, 1
      %v652 = vrot.slane %v521, 1
      %v653 = vsel %vm647, %v651, %v652
      %v654 = vrot.slane %v522, 1
      %v655 = vsel %vm647, %v649, %v654
      %v656 = vrot.slane %v523, 1
      %v657 = vsel %vm647, %v652, %v656
      %v658 = vrot.slane %v524, 1
      %v659 = vsel %vm647, %v654, %v658
      %v660 = vrot.slane %v525, 1
      %v661 = vsel %vm647, %v656, %v660
      %v662 = vrot.slane %v526, 1
      %v663 = vsel %vm647, %v658, %v662
      %v664 = vrot.slane %v527, 1
      %v665 = vsel %vm647, %v660, %v664
      %vm671 = vcmask 130048
      %v672 = vsel %vm671, %v653, 0
      %v674 = vsel %vm671, %v657, 0
      %v676 = vsel %vm671, %v661, 0
      %v678 = vsel %vm671, %v665, 0
      %v680 = vsel %vm671, %v664, 0
      %682 = vmatprep.subr.mxu0 %v584
      %683 = vmatpush1.msra.mxu0 %v583
      %684 = vmatprep.subr.mxu0 %v587
      %685 = vmatpush1.msra.mxu0 %v586
      %686 = vmatprep.subr.mxu0 %v590
      %687 = vmatpush1.msra.mxu0 %v589
      %688 = vmatprep.subr.mxu0 %v593
      %689 = vmatpush1.msra.mxu0 %v592
      %690 = vmatprep.subr.mxu0 %v596
      %691 = vmatpush1.msra.mxu0 %v595
      %692 = vmatprep.subr.mxu0 %v599
      %693 = vmatpush1.msra.mxu0 %v598
      %694 = vmatprep.subr.mxu0 %v602
      %695 = vmatpush1.msra.mxu0 %v601
      %696 = vmatprep.subr.mxu0 %v605
      %697 = vmatpush1.msra.mxu0 %v604
      %698 = vmatprep.subr.mxu0 %v608
      %699 = vmatpush1.msra.mxu0 %v607
      %700 = vmatprep.subr.mxu0 %v611
      %701 = vmatpush1.msra.mxu0 %v610
      %702 = vmatprep.subr.mxu0 %v614
      %703 = vmatpush1.msra.mxu0 %v613
      %704 = vmatprep.subr.mxu0 %v617
      %705 = vmatpush1.msra.mxu0 %v616
      %706 = vmatprep.subr.mxu0 %v620
      %707 = vmatpush1.msra.mxu0 %v619
      %708 = vmatprep.subr.mxu0 %v623
      %709 = vmatpush1.msra.mxu0 %v622
      %710 = vmatprep.subr.mxu0 %v626
      %711 = vmatpush1.msra.mxu0 %v625
      %712 = vmatprep.subr.mxu0 %v629
      %713 = vmatpush1.msra.mxu0 %v628
      %714 = vmatprep.subr.mxu0 %v632
      %715 = vmatpush1.msra.mxu0 %v631
      %716 = vmatprep.subr.mxu0 %v635
      %717 = vmatpush1.msra.mxu0 %v634
      %718 = vmatprep.subr.mxu0 0.0
      %719 = vmatpush1.msra.mxu0 0.0
      %720 = vmatprep.subr.mxu0 0.0
      %721 = vmatpush1.msra.mxu0 0.0
      %722 = vmatprep.subr.mxu0 0.0
      %723 = vmatpush1.msra.mxu0 0.0
      %724 = vmatprep.subr.mxu0 0.0
      %725 = vmatpush1.msra.mxu0 0.0
      %726 = vmatprep.subr.mxu0 0.0
      %727 = vmatpush1.msra.mxu0 0.0
      %728 = vmatprep.subr.mxu0 0.0
      %729 = vmatpush1.msra.mxu0 0.0
      %730 = vmatprep.subr.mxu0 0.0
      %731 = vmatpush1.msra.mxu0 0.0
      %732 = vmatprep.subr.mxu0 0.0
      %733 = vmatpush1.msra.mxu0 0.0
      %734 = vmatprep.subr.mxu0 0.0
      %735 = vmatpush1.msra.mxu0 0.0
      %736 = vmatprep.subr.mxu0 0.0
      %737 = vmatpush1.msra.mxu0 0.0
      %738 = vmatprep.subr.mxu0 0.0
      %739 = vmatpush1.msra.mxu0 0.0
      %740 = vmatprep.subr.mxu0 0.0
      %741 = vmatpush1.msra.mxu0 0.0
      %742 = vmatprep.subr.mxu0 0.0
      %743 = vmatpush1.msra.mxu0 0.0
      %744 = vmatprep.subr.mxu0 0.0
      %745 = vmatpush1.msra.mxu0 0.0
      %746 = vmatprep.mubr.f32.mxu0 %v672
      %747 = vmatmul.mubr.f32.gmra.mrb[0].mxu0 %v650
      %v748 = vpop.f32.mrb[0].mxu0
      %v749 = vadd.f32 0.0, %v748
      %v750 = vpop.f32.mrb[0].mxu0
      %v751 = vadd.f32 0.0, %v750
      %752 = vmatprep.mubr.f32.mxu0 %v674
      %753 = vmatmul.mubr.f32.gmra.mrb[0].mxu0 %v655
      %v754 = vpop.f32.mrb[0].mxu0
      %v755 = vadd.f32 0.0, %v754
      %v756 = vpop.f32.mrb[0].mxu0
      %v757 = vadd.f32 0.0, %v756
      %758 = vmatprep.mubr.f32.mxu0 %v676
      %759 = vmatmul.mubr.f32.gmra.mrb[0].mxu0 %v659
      %v760 = vpop.f32.mrb[0].mxu0
      %v761 = vadd.f32 0.0, %v760
      %v762 = vpop.f32.mrb[0].mxu0
      %v763 = vadd.f32 0.0, %v762
      %764 = vmatprep.mubr.f32.mxu0 %v678
      %765 = vmatmul.mubr.f32.gmra.mrb[0].mxu0 %v663
      %v766 = vpop.f32.mrb[0].mxu0
      %v767 = vadd.f32 0.0, %v766
      %v768 = vpop.f32.mrb[0].mxu0
      %v769 = vadd.f32 0.0, %v768
      %770 = vmatprep.mubr.f32.mxu0 %v680
      %771 = vmatmul.mubr.f32.gmra.mrb[0].mxu0 %v662
      %v772 = vpop.f32.mrb[0].mxu0
      %v773 = vadd.f32 0.0, %v772
      %v774 = vpop.f32.mrb[0].mxu0
      %v775 = vadd.f32 0.0, %v774
      %776 = vdwg.mxu0
      %777 = vmatprep.subr.mxu0 0.0
      %778 = vmatpush1.msra.mxu0 %v585
      %779 = vmatprep.subr.mxu0 0.0
      %780 = vmatpush1.msra.mxu0 %v588
      %781 = vmatprep.subr.mxu0 0.0
      %782 = vmatpush1.msra.mxu0 %v591
      %783 = vmatprep.subr.mxu0 0.0
      %784 = vmatpush1.msra.mxu0 %v594
      %785 = vmatprep.subr.mxu0 0.0
      %786 = vmatpush1.msra.mxu0 %v597
      %787 = vmatprep.subr.mxu0 0.0
      %788 = vmatpush1.msra.mxu0 %v600
      %789 = vmatprep.subr.mxu0 0.0
      %790 = vmatpush1.msra.mxu0 %v603
      %791 = vmatprep.subr.mxu0 0.0
      %792 = vmatpush1.msra.mxu0 %v606
      %793 = vmatprep.subr.mxu0 0.0
      %794 = vmatpush1.msra.mxu0 %v609
      %795 = vmatprep.subr.mxu0 0.0
      %796 = vmatpush1.msra.mxu0 %v612
      %797 = vmatprep.subr.mxu0 0.0
      %798 = vmatpush1.msra.mxu0 %v615
      %799 = vmatprep.subr.mxu0 0.0
      %800 = vmatpush1.msra.mxu0 %v618
      %801 = vmatprep.subr.mxu0 0.0
      %802 = vmatpush1.msra.mxu0 %v621
      %803 = vmatprep.subr.mxu0 0.0
      %804 = vmatpush1.msra.mxu0 %v624
      %805 = vmatprep.subr.mxu0 0.0
      %806 = vmatpush1.msra.mxu0 %v627
      %807 = vmatprep.subr.mxu0 0.0
      %808 = vmatpush1.msra.mxu0 %v630
      %809 = vmatprep.subr.mxu0 0.0
      %810 = vmatpush1.msra.mxu0 %v633
      %811 = vmatprep.subr.mxu0 0.0
      %812 = vmatpush1.msra.mxu0 %v636
      %813 = vmatprep.subr.mxu0 0.0
      %814 = vmatpush1.msra.mxu0 0.0
      %815 = vmatprep.subr.mxu0 0.0
      %816 = vmatpush1.msra.mxu0 0.0
      %817 = vmatprep.subr.mxu0 0.0
      %818 = vmatpush1.msra.mxu0 0.0
      %819 = vmatprep.subr.mxu0 0.0
      %820 = vmatpush1.msra.mxu0 0.0
      %821 = vmatprep.subr.mxu0 0.0
      %822 = vmatpush1.msra.mxu0 0.0
      %823 = vmatprep.subr.mxu0 0.0
      %824 = vmatpush1.msra.mxu0 0.0
      %825 = vmatprep.subr.mxu0 0.0
      %826 = vmatpush1.msra.mxu0 0.0
      %827 = vmatprep.subr.mxu0 0.0
      %828 = vmatpush1.msra.mxu0 0.0
      %829 = vmatprep.subr.mxu0 0.0
      %830 = vmatpush1.msra.mxu0 0.0
      %831 = vmatprep.subr.mxu0 0.0
      %832 = vmatpush1.msra.mxu0 0.0
      %833 = vmatprep.subr.mxu0 0.0
      %834 = vmatpush1.msra.mxu0 0.0
      %835 = vmatprep.subr.mxu0 0.0
      %836 = vmatpush1.msra.mxu0 0.0
      %837 = vmatprep.subr.mxu0 0.0
      %838 = vmatpush1.msra.mxu0 0.0
      %839 = vmatprep.subr.mxu0 0.0
      %840 = vmatpush1.msra.mxu0 0.0
      %841 = vmatprep.mubr.f32.mxu0 %v672
      %842 = vmatmul.mubr.f32.gmra.mrb[0].mxu0 %v650
      %v843 = vpop.f32.mrb[0].mxu0
      %v844 = vadd.f32 0.0, %v843
      %v845 = vpop.f32.mrb[0].mxu0
      %846 = vmatprep.mubr.f32.mxu0 %v674
      %847 = vmatmul.mubr.f32.gmra.mrb[0].mxu0 %v655
      %v848 = vpop.f32.mrb[0].mxu0
      %v849 = vadd.f32 0.0, %v848
      %v850 = vpop.f32.mrb[0].mxu0
      %851 = vmatprep.mubr.f32.mxu0 %v676
      %852 = vmatmul.mubr.f32.gmra.mrb[0].mxu0 %v659
      %v853 = vpop.f32.mrb[0].mxu0
      %v854 = vadd.f32 0.0, %v853
      %v855 = vpop.f32.mrb[0].mxu0
      %856 = vmatprep.mubr.f32.mxu0 %v678
      %857 = vmatmul.mubr.f32.gmra.mrb[0].mxu0 %v663
      %v858 = vpop.f32.mrb[0].mxu0
      %v859 = vadd.f32 0.0, %v858
      %v860 = vpop.f32.mrb[0].mxu0
      %861 = vmatprep.mubr.f32.mxu0 %v680
      %862 = vmatmul.mubr.f32.gmra.mrb[0].mxu0 %v662
      %v863 = vpop.f32.mrb[0].mxu0
      %v864 = vadd.f32 0.0, %v863
      %v865 = vpop.f32.mrb[0].mxu0
      %866 = vdwg.mxu0
      %v867 = vsel %vm671, %v519, 0
      %v869 = vsel %vm671, %v521, 0
      %v871 = vsel %vm671, %v523, 0
      %v873 = vsel %vm671, %v525, 0
      %v875 = vsel %vm671, %v527, 0
      %877 = vmatprep.subr.mxu0 %v529
      %878 = vmatpush1.msra.mxu0 %v528
      %879 = vmatprep.subr.mxu0 %v532
      %880 = vmatpush1.msra.mxu0 %v531
      %881 = vmatprep.subr.mxu0 %v535
      %882 = vmatpush1.msra.mxu0 %v534
      %883 = vmatprep.subr.mxu0 %v538
      %884 = vmatpush1.msra.mxu0 %v537
      %885 = vmatprep.subr.mxu0 %v541
      %886 = vmatpush1.msra.mxu0 %v540
      %887 = vmatprep.subr.mxu0 %v544
      %888 = vmatpush1.msra.mxu0 %v543
      %889 = vmatprep.subr.mxu0 %v547
      %890 = vmatpush1.msra.mxu0 %v546
      %891 = vmatprep.subr.mxu0 %v550
      %892 = vmatpush1.msra.mxu0 %v549
      %893 = vmatprep.subr.mxu0 %v553
      %894 = vmatpush1.msra.mxu0 %v552
      %895 = vmatprep.subr.mxu0 %v556
      %896 = vmatpush1.msra.mxu0 %v555
      %897 = vmatprep.subr.mxu0 %v559
      %898 = vmatpush1.msra.mxu0 %v558
      %899 = vmatprep.subr.mxu0 %v562
      %900 = vmatpush1.msra.mxu0 %v561
      %901 = vmatprep.subr.mxu0 %v565
      %902 = vmatpush1.msra.mxu0 %v564
      %903 = vmatprep.subr.mxu0 %v568
      %904 = vmatpush1.msra.mxu0 %v567
      %905 = vmatprep.subr.mxu0 %v571
      %906 = vmatpush1.msra.mxu0 %v570
      %907 = vmatprep.subr.mxu0 %v574
      %908 = vmatpush1.msra.mxu0 %v573
      %909 = vmatprep.subr.mxu0 %v577
      %910 = vmatpush1.msra.mxu0 %v576
      %911 = vmatprep.subr.mxu0 %v580
      %912 = vmatpush1.msra.mxu0 %v579
      %913 = vmatprep.subr.mxu0 0.0
      %914 = vmatpush1.msra.mxu0 0.0
      %915 = vmatprep.subr.mxu0 0.0
      %916 = vmatpush1.msra.mxu0 0.0
      %917 = vmatprep.subr.mxu0 0.0
      %918 = vmatpush1.msra.mxu0 0.0
      %919 = vmatprep.subr.mxu0 0.0
      %920 = vmatpush1.msra.mxu0 0.0
      %921 = vmatprep.subr.mxu0 0.0
      %922 = vmatpush1.msra.mxu0 0.0
      %923 = vmatprep.subr.mxu0 0.0
      %924 = vmatpush1.msra.mxu0 0.0
      %925 = vmatprep.subr.mxu0 0.0
      %926 = vmatpush1.msra.mxu0 0.0
      %927 = vmatprep.subr.mxu0 0.0
      %928 = vmatpush1.msra.mxu0 0.0
      %929 = vmatprep.subr.mxu0 0.0
      %930 = vmatpush1.msra.mxu0 0.0
      %931 = vmatprep.subr.mxu0 0.0
      %932 = vmatpush1.msra.mxu0 0.0
      %933 = vmatprep.subr.mxu0 0.0
      %934 = vmatpush1.msra.mxu0 0.0
      %935 = vmatprep.subr.mxu0 0.0
      %936 = vmatpush1.msra.mxu0 0.0
      %937 = vmatprep.subr.mxu0 0.0
      %938 = vmatpush1.msra.mxu0 0.0
      %939 = vmatprep.subr.mxu0 0.0
      %940 = vmatpush1.msra.mxu0 0.0
      %941 = vmatprep.mubr.f32.mxu0 %v867
      %942 = vmatmul.mubr.f32.gmra.mrb[0].mxu0 %v518
      %v943 = vpop.f32.mrb[0].mxu0
      %v944 = vadd.f32 %v749, %v943
      %v945 = vpop.f32.mrb[0].mxu0
      %v946 = vadd.f32 %v751, %v945
      %947 = vmatprep.mubr.f32.mxu0 %v869
      %948 = vmatmul.mubr.f32.gmra.mrb[0].mxu0 %v520
      %v949 = vpop.f32.mrb[0].mxu0
      %v950 = vadd.f32 %v755, %v949
      %v951 = vpop.f32.mrb[0].mxu0
      %v952 = vadd.f32 %v757, %v951
      %953 = vmatprep.mubr.f32.mxu0 %v871
      %954 = vmatmul.mubr.f32.gmra.mrb[0].mxu0 %v522
      %v955 = vpop.f32.mrb[0].mxu0
      %v956 = vadd.f32 %v761, %v955
      %v957 = vpop.f32.mrb[0].mxu0
      %v958 = vadd.f32 %v763, %v957
      %959 = vmatprep.mubr.f32.mxu0 %v873
      %960 = vmatmul.mubr.f32.gmra.mrb[0].mxu0 %v524
      %v961 = vpop.f32.mrb[0].mxu0
      %v962 = vadd.f32 %v767, %v961
      %v963 = vpop.f32.mrb[0].mxu0
      %v964 = vadd.f32 %v769, %v963
      %965 = vmatprep.mubr.f32.mxu0 %v875
      %966 = vmatmul.mubr.f32.gmra.mrb[0].mxu0 %v526
      %v967 = vpop.f32.mrb[0].mxu0
      %v968 = vadd.f32 %v773, %v967
      %v969 = vpop.f32.mrb[0].mxu0
      %v970 = vadd.f32 %v775, %v969
      %971 = vdwg.mxu0
      %972 = vmatprep.subr.mxu0 0.0
      %973 = vmatpush1.msra.mxu0 %v530
      %974 = vmatprep.subr.mxu0 0.0
      %975 = vmatpush1.msra.mxu0 %v533
      %976 = vmatprep.subr.mxu0 0.0
      %977 = vmatpush1.msra.mxu0 %v536
      %978 = vmatprep.subr.mxu0 0.0
      %979 = vmatpush1.msra.mxu0 %v539
      %980 = vmatprep.subr.mxu0 0.0
      %981 = vmatpush1.msra.mxu0 %v542
      %982 = vmatprep.subr.mxu0 0.0
      %983 = vmatpush1.msra.mxu0 %v545
      %984 = vmatprep.subr.mxu0 0.0
      %985 = vmatpush1.msra.mxu0 %v548
      %986 = vmatprep.subr.mxu0 0.0
      %987 = vmatpush1.msra.mxu0 %v551
      %988 = vmatprep.subr.mxu0 0.0
      %989 = vmatpush1.msra.mxu0 %v554
      %990 = vmatprep.subr.mxu0 0.0
      %991 = vmatpush1.msra.mxu0 %v557
      %992 = vmatprep.subr.mxu0 0.0
      %993 = vmatpush1.msra.mxu0 %v560
      %994 = vmatprep.subr.mxu0 0.0
      %995 = vmatpush1.msra.mxu0 %v563
      %996 = vmatprep.subr.mxu0 0.0
      %997 = vmatpush1.msra.mxu0 %v566
      %998 = vmatprep.subr.mxu0 0.0
      %999 = vmatpush1.msra.mxu0 %v569
      %1000 = vmatprep.subr.mxu0 0.0
      %1001 = vmatpush1.msra.mxu0 %v572
      %1002 = vmatprep.subr.mxu0 0.0
      %1003 = vmatpush1.msra.mxu0 %v575
      %1004 = vmatprep.subr.mxu0 0.0
      %1005 = vmatpush1.msra.mxu0 %v578
      %1006 = vmatprep.subr.mxu0 0.0
      %1007 = vmatpush1.msra.mxu0 %v581
      %1008 = vmatprep.subr.mxu0 0.0
      %1009 = vmatpush1.msra.mxu0 0.0
      %1010 = vmatprep.subr.mxu0 0.0
      %1011 = vmatpush1.msra.mxu0 0.0
      %1012 = vmatprep.subr.mxu0 0.0
      %1013 = vmatpush1.msra.mxu0 0.0
      %1014 = vmatprep.subr.mxu0 0.0
      %1015 = vmatpush1.msra.mxu0 0.0
      %1016 = vmatprep.subr.mxu0 0.0
      %1017 = vmatpush1.msra.mxu0 0.0
      %1018 = vmatprep.subr.mxu0 0.0
      %1019 = vmatpush1.msra.mxu0 0.0
      %1020 = vmatprep.subr.mxu0 0.0
      %1021 = vmatpush1.msra.mxu0 0.0
      %1022 = vmatprep.subr.mxu0 0.0
      %1023 = vmatpush1.msra.mxu0 0.0
      %1024 = vmatprep.subr.mxu0 0.0
      %1025 = vmatpush1.msra.mxu0 0.0
      %1026 = vmatprep.subr.mxu0 0.0
      %1027 = vmatpush1.msra.mxu0 0.0
      %1028 = vmatprep.subr.mxu0 0.0
      %1029 = vmatpush1.msra.mxu0 0.0
      %1030 = vmatprep.subr.mxu0 0.0
      %1031 = vmatpush1.msra.mxu0 0.0
      %1032 = vmatprep.subr.mxu0 0.0
      %1033 = vmatpush1.msra.mxu0 0.0
      %1034 = vmatprep.subr.mxu0 0.0
      %1035 = vmatpush1.msra.mxu0 0.0
      %1036 = vmatprep.mubr.f32.mxu0 %v867
      %1037 = vmatmul.mubr.f32.gmra.mrb[0].mxu0 %v518
      %v1038 = vpop.f32.mrb[0].mxu0
      %v1039 = vadd.f32 %v844, %v1038
      %v1040 = vpop.f32.mrb[0].mxu0
      %1041 = vmatprep.mubr.f32.mxu0 %v869
      %1042 = vmatmul.mubr.f32.gmra.mrb[0].mxu0 %v520
      %v1043 = vpop.f32.mrb[0].mxu0
      %v1044 = vadd.f32 %v849, %v1043
      %v1045 = vpop.f32.mrb[0].mxu0
      %1046 = vmatprep.mubr.f32.mxu0 %v871
      %1047 = vmatmul.mubr.f32.gmra.mrb[0].mxu0 %v522
      %v1048 = vpop.f32.mrb[0].mxu0
      %v1049 = vadd.f32 %v854, %v1048
      %v1050 = vpop.f32.mrb[0].mxu0
      %1051 = vmatprep.mubr.f32.mxu0 %v873
      %1052 = vmatmul.mubr.f32.gmra.mrb[0].mxu0 %v524
      %v1053 = vpop.f32.mrb[0].mxu0
      %v1054 = vadd.f32 %v859, %v1053
      %v1055 = vpop.f32.mrb[0].mxu0
      %1056 = vmatprep.mubr.f32.mxu0 %v875
      %1057 = vmatmul.mubr.f32.gmra.mrb[0].mxu0 %v526
      %v1058 = vpop.f32.mrb[0].mxu0
      %v1059 = vadd.f32 %v864, %v1058
      %v1060 = vpop.f32.mrb[0].mxu0
      %1061 = vdwg.mxu0
      %s1062 = scalar_lea.vmem %s1, 864
      %v1063 = vld [vmem:[%s1062] sm:$0xff]
      %v1064 = vld [vmem:[%s1062 + $0x8] sm:$0xff]
      %v1065 = vld [vmem:[%s1062 + $0x10] sm:$0xff]
      %v1066 = vld [vmem:[%s1062 + $0x18] sm:$0xff]
      %v1067 = vld [vmem:[%s1062 + $0x20] sm:$0xff]
      %v1068 = vld [vmem:[%s1062 + $0x28] sm:$0xff]
      %v1069 = vld [vmem:[%s1062 + $0x30] sm:$0xff]
      %v1070 = vld [vmem:[%s1062 + $0x38] sm:$0xff]
      %v1071 = vld [vmem:[%s1062 + $0x40] sm:$0xff]
      %v1072 = vld [vmem:[%s1062 + $0x48] sm:$0xff]
      %v1073 = vld [vmem:[%s1062 + $0x50] sm:$0xff]
      %v1074 = vld [vmem:[%s1062 + $0x58] sm:$0xff]
      %v1075 = vld [vmem:[%s1062 + $0x60] sm:$0xff]
      %v1076 = vld [vmem:[%s1062 + $0x68] sm:$0xff]
      %v1077 = vld [vmem:[%s1062 + $0x70] sm:$0xff]
      %v1078 = vld [vmem:[%s1062 + $0x78] sm:$0xff]
      %v1079 = vld [vmem:[%s1062 + $0x80] sm:$0xff]
      %v1080 = vld [vmem:[%s1062 + $0x88] sm:$0xff]
      %v1081 = vld [vmem:[%s1062 + $0x90] sm:$0xff]
      %v1082 = vld [vmem:[%s1062 + $0x98] sm:$0xff]
      %v1083 = vld [vmem:[%s1062 + $0xa0] sm:$0xff]
      %v1084 = vld [vmem:[%s1062 + $0xa8] sm:$0xff]
      %v1085 = vld [vmem:[%s1062 + $0xb0] sm:$0xff]
      %v1086 = vld [vmem:[%s1062 + $0xb8] sm:$0xff]
      %v1087 = vld [vmem:[%s1062 + $0xc0] sm:$0xff]
      %v1088 = vld [vmem:[%s1062 + $0xc8] sm:$0xff]
      %v1089 = vld [vmem:[%s1062 + $0xd0] sm:$0xff]
      %v1090 = vld [vmem:[%s1062 + $0xd8] sm:$0xff]
      %v1091 = vld [vmem:[%s1062 + $0xe0] sm:$0xff]
      %v1092 = vld [vmem:[%s1062 + $0xe8] sm:$0xff]
      %v1093 = vld [vmem:[%s1062 + $0xf0] sm:$0xff]
      %v1094 = vld [vmem:[%s1062 + $0xf8] sm:$0xff]
      %v1095 = vld [vmem:[%s1062 + $0x100] sm:$0xff]
      %v1096 = vld [vmem:[%s1062 + $0x108] sm:$0xff]
      %v1097 = vld [vmem:[%s1062 + $0x110] sm:$0xff]
      %v1098 = vld [vmem:[%s1062 + $0x118] sm:$0xff]
      %v1099 = vld [vmem:[%s1062 + $0x120] sm:$0xff]
      %v1100 = vld [vmem:[%s1062 + $0x128] sm:$0xff]
      %v1101 = vld [vmem:[%s1062 + $0x130] sm:$0xff]
      %v1102 = vld [vmem:[%s1062 + $0x138] sm:$0xff]
      %v1103 = vld [vmem:[%s1062 + $0x140] sm:$0xff]
      %v1104 = vld [vmem:[%s1062 + $0x148] sm:$0xff]
      %v1105 = vld [vmem:[%s1062 + $0x150] sm:$0xff]
      %v1106 = vld [vmem:[%s1062 + $0x158] sm:$0xff]
      %v1107 = vld [vmem:[%s1062 + $0x160] sm:$0xff]
      %v1108 = vld [vmem:[%s1062 + $0x168] sm:$0xff]
      %v1109 = vld [vmem:[%s1062 + $0x170] sm:$0xff]
      %v1110 = vld [vmem:[%s1062 + $0x178] sm:$0xff]
      %v1111 = vld [vmem:[%s1062 + $0x180] sm:$0xff]
      %v1112 = vld [vmem:[%s1062 + $0x188] sm:$0xff]
      %v1113 = vld [vmem:[%s1062 + $0x190] sm:$0xff]
      %v1114 = vld [vmem:[%s1062 + $0x198] sm:$0xff]
      %v1115 = vld [vmem:[%s1062 + $0x1a0] sm:$0xff]
      %v1116 = vld [vmem:[%s1062 + $0x1a8] sm:$0xff]
      %vm1117 = vcmask 1045504
      %v1118 = vrot.slane %v518, 2
      %v1119 = vrot.slane %v520, 2
      %v1120 = vsel %vm1117, %v1118, %v1119
      %v1121 = vrot.slane %v519, 2
      %v1122 = vrot.slane %v521, 2
      %v1123 = vsel %vm1117, %v1121, %v1122
      %v1124 = vrot.slane %v522, 2
      %v1125 = vsel %vm1117, %v1119, %v1124
      %v1126 = vrot.slane %v523, 2
      %v1127 = vsel %vm1117, %v1122, %v1126
      %v1128 = vrot.slane %v524, 2
      %v1129 = vsel %vm1117, %v1124, %v1128
      %v1130 = vrot.slane %v525, 2
      %v1131 = vsel %vm1117, %v1126, %v1130
      %v1132 = vrot.slane %v526, 2
      %v1133 = vsel %vm1117, %v1128, %v1132
      %v1134 = vrot.slane %v527, 2
      %v1135 = vsel %vm1117, %v1130, %v1134
      %v1141 = vsel %vm671, %v1123, 0
      %v1143 = vsel %vm671, %v1127, 0
      %v1145 = vsel %vm671, %v1131, 0
      %v1147 = vsel %vm671, %v1135, 0
      %v1149 = vsel %vm671, %v1134, 0
      %1151 = vmatprep.subr.mxu0 %v1064
      %1152 = vmatpush1.msra.mxu0 %v1063
      %1153 = vmatprep.subr.mxu0 %v1067
      %1154 = vmatpush1.msra.mxu0 %v1066
      %1155 = vmatprep.subr.mxu0 %v1070
      %1156 = vmatpush1.msra.mxu0 %v1069
      %1157 = vmatprep.subr.mxu0 %v1073
      %1158 = vmatpush1.msra.mxu0 %v1072
      %1159 = vmatprep.subr.mxu0 %v1076
      %1160 = vmatpush1.msra.mxu0 %v1075
      %1161 = vmatprep.subr.mxu0 %v1079
      %1162 = vmatpush1.msra.mxu0 %v1078
      %1163 = vmatprep.subr.mxu0 %v1082
      %1164 = vmatpush1.msra.mxu0 %v1081
      %1165 = vmatprep.subr.mxu0 %v1085
      %1166 = vmatpush1.msra.mxu0 %v1084
      %1167 = vmatprep.subr.mxu0 %v1088
      %1168 = vmatpush1.msra.mxu0 %v1087
      %1169 = vmatprep.subr.mxu0 %v1091
      %1170 = vmatpush1.msra.mxu0 %v1090
      %1171 = vmatprep.subr.mxu0 %v1094
      %1172 = vmatpush1.msra.mxu0 %v1093
      %1173 = vmatprep.subr.mxu0 %v1097
      %1174 = vmatpush1.msra.mxu0 %v1096
      %1175 = vmatprep.subr.mxu0 %v1100
      %1176 = vmatpush1.msra.mxu0 %v1099
      %1177 = vmatprep.subr.mxu0 %v1103
      %1178 = vmatpush1.msra.mxu0 %v1102
      %1179 = vmatprep.subr.mxu0 %v1106
      %1180 = vmatpush1.msra.mxu0 %v1105
      %1181 = vmatprep.subr.mxu0 %v1109
      %1182 = vmatpush1.msra.mxu0 %v1108
      %1183 = vmatprep.subr.mxu0 %v1112
      %1184 = vmatpush1.msra.mxu0 %v1111
      %1185 = vmatprep.subr.mxu0 %v1115
      %1186 = vmatpush1.msra.mxu0 %v1114
      %1187 = vmatprep.subr.mxu0 0.0
      %1188 = vmatpush1.msra.mxu0 0.0
      %1189 = vmatprep.subr.mxu0 0.0
      %1190 = vmatpush1.msra.mxu0 0.0
      %1191 = vmatprep.subr.mxu0 0.0
      %1192 = vmatpush1.msra.mxu0 0.0
      %1193 = vmatprep.subr.mxu0 0.0
      %1194 = vmatpush1.msra.mxu0 0.0
      %1195 = vmatprep.subr.mxu0 0.0
      %1196 = vmatpush1.msra.mxu0 0.0
      %1197 = vmatprep.subr.mxu0 0.0
      %1198 = vmatpush1.msra.mxu0 0.0
      %1199 = vmatprep.subr.mxu0 0.0
      %1200 = vmatpush1.msra.mxu0 0.0
      %1201 = vmatprep.subr.mxu0 0.0
      %1202 = vmatpush1.msra.mxu0 0.0
      %1203 = vmatprep.subr.mxu0 0.0
      %1204 = vmatpush1.msra.mxu0 0.0
      %1205 = vmatprep.subr.mxu0 0.0
      %1206 = vmatpush1.msra.mxu0 0.0
      %1207 = vmatprep.subr.mxu0 0.0
      %1208 = vmatpush1.msra.mxu0 0.0
      %1209 = vmatprep.subr.mxu0 0.0
      %1210 = vmatpush1.msra.mxu0 0.0
      %1211 = vmatprep.subr.mxu0 0.0
      %1212 = vmatpush1.msra.mxu0 0.0
      %1213 = vmatprep.subr.mxu0 0.0
      %1214 = vmatpush1.msra.mxu0 0.0
      %1215 = vmatprep.mubr.f32.mxu0 %v1141
      %1216 = vmatmul.mubr.f32.gmra.mrb[0].mxu0 %v1120
      %v1217 = vpop.f32.mrb[0].mxu0
      %v1218 = vadd.f32 0.0, %v1217
      %v1219 = vpop.f32.mrb[0].mxu0
      %v1220 = vadd.f32 0.0, %v1219
      %1221 = vmatprep.mubr.f32.mxu0 %v1143
      %1222 = vmatmul.mubr.f32.gmra.mrb[0].mxu0 %v1125
      %v1223 = vpop.f32.mrb[0].mxu0
      %v1224 = vadd.f32 0.0, %v1223
      %v1225 = vpop.f32.mrb[0].mxu0
      %v1226 = vadd.f32 0.0, %v1225
      %1227 = vmatprep.mubr.f32.mxu0 %v1145
      %1228 = vmatmul.mubr.f32.gmra.mrb[0].mxu0 %v1129
      %v1229 = vpop.f32.mrb[0].mxu0
      %v1230 = vadd.f32 0.0, %v1229
      %v1231 = vpop.f32.mrb[0].mxu0
      %v1232 = vadd.f32 0.0, %v1231
      %1233 = vmatprep.mubr.f32.mxu0 %v1147
      %1234 = vmatmul.mubr.f32.gmra.mrb[0].mxu0 %v1133
      %v1235 = vpop.f32.mrb[0].mxu0
      %v1236 = vadd.f32 0.0, %v1235
      %v1237 = vpop.f32.mrb[0].mxu0
      %v1238 = vadd.f32 0.0, %v1237
      %1239 = vmatprep.mubr.f32.mxu0 %v1149
      %1240 = vmatmul.mubr.f32.gmra.mrb[0].mxu0 %v1132
      %v1241 = vpop.f32.mrb[0].mxu0
      %v1242 = vadd.f32 0.0, %v1241
      %v1243 = vpop.f32.mrb[0].mxu0
      %v1244 = vadd.f32 0.0, %v1243
      %1245 = vdwg.mxu0
      %1246 = vmatprep.subr.mxu0 0.0
      %1247 = vmatpush1.msra.mxu0 %v1065
      %1248 = vmatprep.subr.mxu0 0.0
      %1249 = vmatpush1.msra.mxu0 %v1068
      %1250 = vmatprep.subr.mxu0 0.0
      %1251 = vmatpush1.msra.mxu0 %v1071
      %1252 = vmatprep.subr.mxu0 0.0
      %1253 = vmatpush1.msra.mxu0 %v1074
      %1254 = vmatprep.subr.mxu0 0.0
      %1255 = vmatpush1.msra.mxu0 %v1077
      %1256 = vmatprep.subr.mxu0 0.0
      %1257 = vmatpush1.msra.mxu0 %v1080
      %1258 = vmatprep.subr.mxu0 0.0
      %1259 = vmatpush1.msra.mxu0 %v1083
      %1260 = vmatprep.subr.mxu0 0.0
      %1261 = vmatpush1.msra.mxu0 %v1086
      %1262 = vmatprep.subr.mxu0 0.0
      %1263 = vmatpush1.msra.mxu0 %v1089
      %1264 = vmatprep.subr.mxu0 0.0
      %1265 = vmatpush1.msra.mxu0 %v1092
      %1266 = vmatprep.subr.mxu0 0.0
      %1267 = vmatpush1.msra.mxu0 %v1095
      %1268 = vmatprep.subr.mxu0 0.0
      %1269 = vmatpush1.msra.mxu0 %v1098
      %1270 = vmatprep.subr.mxu0 0.0
      %1271 = vmatpush1.msra.mxu0 %v1101
      %1272 = vmatprep.subr.mxu0 0.0
      %1273 = vmatpush1.msra.mxu0 %v1104
      %1274 = vmatprep.subr.mxu0 0.0
      %1275 = vmatpush1.msra.mxu0 %v1107
      %1276 = vmatprep.subr.mxu0 0.0
      %1277 = vmatpush1.msra.mxu0 %v1110
      %1278 = vmatprep.subr.mxu0 0.0
      %1279 = vmatpush1.msra.mxu0 %v1113
      %1280 = vmatprep.subr.mxu0 0.0
      %1281 = vmatpush1.msra.mxu0 %v1116
      %1282 = vmatprep.subr.mxu0 0.0
      %1283 = vmatpush1.msra.mxu0 0.0
      %1284 = vmatprep.subr.mxu0 0.0
      %1285 = vmatpush1.msra.mxu0 0.0
      %1286 = vmatprep.subr.mxu0 0.0
      %1287 = vmatpush1.msra.mxu0 0.0
      %1288 = vmatprep.subr.mxu0 0.0
      %1289 = vmatpush1.msra.mxu0 0.0
      %1290 = vmatprep.subr.mxu0 0.0
      %1291 = vmatpush1.msra.mxu0 0.0
      %1292 = vmatprep.subr.mxu0 0.0
      %1293 = vmatpush1.msra.mxu0 0.0
      %1294 = vmatprep.subr.mxu0 0.0
      %1295 = vmatpush1.msra.mxu0 0.0
      %1296 = vmatprep.subr.mxu0 0.0
      %1297 = vmatpush1.msra.mxu0 0.0
      %1298 = vmatprep.subr.mxu0 0.0
      %1299 = vmatpush1.msra.mxu0 0.0
      %1300 = vmatprep.subr.mxu0 0.0
      %1301 = vmatpush1.msra.mxu0 0.0
      %1302 = vmatprep.subr.mxu0 0.0
      %1303 = vmatpush1.msra.mxu0 0.0
      %1304 = vmatprep.subr.mxu0 0.0
      %1305 = vmatpush1.msra.mxu0 0.0
      %1306 = vmatprep.subr.mxu0 0.0
      %1307 = vmatpush1.msra.mxu0 0.0
      %1308 = vmatprep.subr.mxu0 0.0
      %1309 = vmatpush1.msra.mxu0 0.0
      %1310 = vmatprep.mubr.f32.mxu0 %v1141
      %1311 = vmatmul.mubr.f32.gmra.mrb[0].mxu0 %v1120
      %v1312 = vpop.f32.mrb[0].mxu0
      %v1313 = vadd.f32 0.0, %v1312
      %v1314 = vpop.f32.mrb[0].mxu0
      %1315 = vmatprep.mubr.f32.mxu0 %v1143
      %1316 = vmatmul.mubr.f32.gmra.mrb[0].mxu0 %v1125
      %v1317 = vpop.f32.mrb[0].mxu0
      %v1318 = vadd.f32 0.0, %v1317
      %v1319 = vpop.f32.mrb[0].mxu0
      %1320 = vmatprep.mubr.f32.mxu0 %v1145
      %1321 = vmatmul.mubr.f32.gmra.mrb[0].mxu0 %v1129
      %v1322 = vpop.f32.mrb[0].mxu0
      %v1323 = vadd.f32 0.0, %v1322
      %v1324 = vpop.f32.mrb[0].mxu0
      %1325 = vmatprep.mubr.f32.mxu0 %v1147
      %1326 = vmatmul.mubr.f32.gmra.mrb[0].mxu0 %v1133
      %v1327 = vpop.f32.mrb[0].mxu0
      %v1328 = vadd.f32 0.0, %v1327
      %v1329 = vpop.f32.mrb[0].mxu0
      %1330 = vmatprep.mubr.f32.mxu0 %v1149
      %1331 = vmatmul.mubr.f32.gmra.mrb[0].mxu0 %v1132
      %v1332 = vpop.f32.mrb[0].mxu0
      %v1333 = vadd.f32 0.0, %v1332
      %v1334 = vpop.f32.mrb[0].mxu0
      %1335 = vdwg.mxu0
      %v1336 = vadd.f32 %v944, %v1218
      %v1337 = vadd.f32 %v946, %v1220
      %v1338 = vadd.f32 %v1039, %v1313
      %v1339 = vadd.f32 %v950, %v1224
      %v1340 = vadd.f32 %v952, %v1226
      %v1341 = vadd.f32 %v1044, %v1318
      %v1342 = vadd.f32 %v956, %v1230
      %v1343 = vadd.f32 %v958, %v1232
      %v1344 = vadd.f32 %v1049, %v1323
      %v1345 = vadd.f32 %v962, %v1236
      %v1346 = vadd.f32 %v964, %v1238
      %v1347 = vadd.f32 %v1054, %v1328
      %v1348 = vadd.f32 %v968, %v1242
      %v1349 = vadd.f32 %v970, %v1244
      %v1350 = vadd.f32 %v1059, %v1333
      %v1351 = vld [vmem:[%s2] sm:$0x7]
      %v1353 = vlaneseq
      %v1354 = vshrl.u32 %v1353, 7
      %v1355 = vsub.s32 0, %v1354
      %v1356 = vrot.slane %v1351, %v1355
      %v1357 = vlaneseq
      %v1358 = vshrl.u32 %v1357, 7
      %v1359 = vsub.s32 1, %v1358
      %v1360 = vrot.slane %v1351, %v1359
      %v1361 = vlaneseq
      %v1362 = vshrl.u32 %v1361, 7
      %v1363 = vsub.s32 2, %v1362
      %v1364 = vrot.slane %v1351, %v1363
      %v1368 = vadd.f32 %v1336, %v1356
      %v1369 = vadd.f32 %v1337, %v1360
      %v1370 = vadd.f32 %v1338, %v1364
      %v1371 = vadd.f32 %v1339, %v1356
      %v1372 = vadd.f32 %v1340, %v1360
      %v1373 = vadd.f32 %v1341, %v1364
      %v1374 = vadd.f32 %v1342, %v1356
      %v1375 = vadd.f32 %v1343, %v1360
      %v1376 = vadd.f32 %v1344, %v1364
      %v1377 = vadd.f32 %v1345, %v1356
      %v1378 = vadd.f32 %v1346, %v1360
      %v1379 = vadd.f32 %v1347, %v1364
      %v1380 = vadd.f32 %v1348, %v1356
      %v1381 = vadd.f32 %v1349, %v1360
      %v1382 = vadd.f32 %v1350, %v1364
      %v1383 = vmax.f32 %v1368, 0.0
      %v1384 = vmax.f32 %v1369, 0.0
      %v1385 = vmax.f32 %v1370, 0.0
      %v1386 = vmax.f32 %v1371, 0.0
      %v1387 = vmax.f32 %v1372, 0.0
      %v1388 = vmax.f32 %v1373, 0.0
      %v1389 = vmax.f32 %v1374, 0.0
      %v1390 = vmax.f32 %v1375, 0.0
      %v1391 = vmax.f32 %v1376, 0.0
      %v1392 = vmax.f32 %v1377, 0.0
      %v1393 = vmax.f32 %v1378, 0.0
      %v1394 = vmax.f32 %v1379, 0.0
      %v1395 = vmax.f32 %v1380, 0.0
      %v1396 = vmax.f32 %v1381, 0.0
      %v1397 = vmax.f32 %v1382, 0.0
      %v1398 = vld [vmem:[%s3] sm:$0xff]
      %v1399 = vld [vmem:[%s3 + $0x8] sm:$0xff]
      %v1400 = vld [vmem:[%s3 + $0x10] sm:$0xff]
      %v1401 = vld [vmem:[%s3 + $0x18] sm:$0xff]
      %v1402 = vld [vmem:[%s3 + $0x20] sm:$0xff]
      %v1403 = vld [vmem:[%s3 + $0x28] sm:$0xff]
      %v1404 = vld [vmem:[%s3 + $0x30] sm:$0xff]
      %v1405 = vld [vmem:[%s3 + $0x38] sm:$0xff]
      %v1406 = vld [vmem:[%s3 + $0x40] sm:$0xff]
      %v1407 = vld [vmem:[%s3 + $0x48] sm:$0xff]
      %v1408 = vld [vmem:[%s3 + $0x50] sm:$0xff]
      %v1409 = vld [vmem:[%s3 + $0x58] sm:$0xff]
      %v1410 = vld [vmem:[%s3 + $0x60] sm:$0xff]
      %v1411 = vld [vmem:[%s3 + $0x68] sm:$0xff]
      %v1412 = vld [vmem:[%s3 + $0x70] sm:$0xff]
      %v1413 = vld [vmem:[%s3 + $0x78] sm:$0xff]
      %v1414 = vld [vmem:[%s3 + $0x80] sm:$0xff]
      %v1415 = vld [vmem:[%s3 + $0x88] sm:$0xff]
      %v1416 = vld [vmem:[%s3 + $0x90] sm:$0xff]
      %v1417 = vld [vmem:[%s3 + $0x98] sm:$0xff]
      %v1418 = vld [vmem:[%s3 + $0xa0] sm:$0xff]
      %v1419 = vld [vmem:[%s3 + $0xa8] sm:$0xff]
      %v1420 = vld [vmem:[%s3 + $0xb0] sm:$0xff]
      %v1421 = vld [vmem:[%s3 + $0xb8] sm:$0xff]
      %v1422 = vld [vmem:[%s3 + $0xc0] sm:$0xff]
      %v1423 = vld [vmem:[%s3 + $0xc8] sm:$0xff]
      %v1424 = vld [vmem:[%s3 + $0xd0] sm:$0xff]
      %v1425 = vld [vmem:[%s3 + $0xd8] sm:$0xff]
      %v1426 = vld [vmem:[%s3 + $0xe0] sm:$0xff]
      %v1427 = vld [vmem:[%s3 + $0xe8] sm:$0xff]
      %v1428 = vld [vmem:[%s3 + $0xf0] sm:$0xff]
      %v1429 = vld [vmem:[%s3 + $0xf8] sm:$0xff]
      %v1430 = vld [vmem:[%s3 + $0x100] sm:$0xff]
      %v1431 = vld [vmem:[%s3 + $0x108] sm:$0xff]
      %v1432 = vld [vmem:[%s3 + $0x110] sm:$0xff]
      %v1433 = vld [vmem:[%s3 + $0x118] sm:$0xff]
      %v1434 = vld [vmem:[%s3 + $0x120] sm:$0xff]
      %v1435 = vld [vmem:[%s3 + $0x128] sm:$0xff]
      %v1436 = vld [vmem:[%s3 + $0x130] sm:$0xff]
      %v1437 = vld [vmem:[%s3 + $0x138] sm:$0xff]
      %v1438 = vld [vmem:[%s3 + $0x140] sm:$0xff]
      %v1439 = vld [vmem:[%s3 + $0x148] sm:$0xff]
      %v1440 = vld [vmem:[%s3 + $0x150] sm:$0xff]
      %v1441 = vld [vmem:[%s3 + $0x158] sm:$0xff]
      %v1442 = vld [vmem:[%s3 + $0x160] sm:$0xff]
      %v1443 = vld [vmem:[%s3 + $0x168] sm:$0xff]
      %v1444 = vld [vmem:[%s3 + $0x170] sm:$0xff]
      %v1445 = vld [vmem:[%s3 + $0x178] sm:$0xff]
      %v1446 = vld [vmem:[%s3 + $0x180] sm:$0xff]
      %v1447 = vld [vmem:[%s3 + $0x188] sm:$0xff]
      %v1448 = vld [vmem:[%s3 + $0x190] sm:$0xff]
      %v1449 = vld [vmem:[%s3 + $0x198] sm:$0xff]
      %v1450 = vld [vmem:[%s3 + $0x1a0] sm:$0xff]
      %v1451 = vld [vmem:[%s3 + $0x1a8] sm:$0xff]
      %v1452 = vld [vmem:[%s3 + $0x1b0] sm:$0xff]
      %v1453 = vld [vmem:[%s3 + $0x1b8] sm:$0xff]
      %v1454 = vld [vmem:[%s3 + $0x1c0] sm:$0xff]
      %v1455 = vld [vmem:[%s3 + $0x1c8] sm:$0xff]
      %v1456 = vld [vmem:[%s3 + $0x1d0] sm:$0xff]
      %v1457 = vld [vmem:[%s3 + $0x1d8] sm:$0xff]
      %v1458 = vld [vmem:[%s3 + $0x1e0] sm:$0xff]
      %v1459 = vld [vmem:[%s3 + $0x1e8] sm:$0xff]
      %v1460 = vld [vmem:[%s3 + $0x1f0] sm:$0xff]
      %v1461 = vld [vmem:[%s3 + $0x1f8] sm:$0xff]
      %v1462 = vld [vmem:[%s3 + $0x200] sm:$0xff]
      %v1463 = vld [vmem:[%s3 + $0x208] sm:$0xff]
      %v1464 = vld [vmem:[%s3 + $0x210] sm:$0xff]
      %v1465 = vld [vmem:[%s3 + $0x218] sm:$0xff]
      %s1466 = scalar_lea.vmem %s3, 544
      %v1467 = vld [vmem:[%s1466] sm:$0xff]
      %v1468 = vld [vmem:[%s1466 + $0x8] sm:$0xff]
      %v1469 = vld [vmem:[%s1466 + $0x10] sm:$0xff]
      %v1470 = vld [vmem:[%s1466 + $0x18] sm:$0xff]
      %v1471 = vld [vmem:[%s1466 + $0x20] sm:$0xff]
      %v1472 = vld [vmem:[%s1466 + $0x28] sm:$0xff]
      %v1473 = vld [vmem:[%s1466 + $0x30] sm:$0xff]
      %v1474 = vld [vmem:[%s1466 + $0x38] sm:$0xff]
      %v1475 = vld [vmem:[%s1466 + $0x40] sm:$0xff]
      %v1476 = vld [vmem:[%s1466 + $0x48] sm:$0xff]
      %v1477 = vld [vmem:[%s1466 + $0x50] sm:$0xff]
      %v1478 = vld [vmem:[%s1466 + $0x58] sm:$0xff]
      %v1479 = vld [vmem:[%s1466 + $0x60] sm:$0xff]
      %v1480 = vld [vmem:[%s1466 + $0x68] sm:$0xff]
      %v1481 = vld [vmem:[%s1466 + $0x70] sm:$0xff]
      %v1482 = vld [vmem:[%s1466 + $0x78] sm:$0xff]
      %v1483 = vld [vmem:[%s1466 + $0x80] sm:$0xff]
      %v1484 = vld [vmem:[%s1466 + $0x88] sm:$0xff]
      %v1485 = vld [vmem:[%s1466 + $0x90] sm:$0xff]
      %v1486 = vld [vmem:[%s1466 + $0x98] sm:$0xff]
      %v1487 = vld [vmem:[%s1466 + $0xa0] sm:$0xff]
      %v1488 = vld [vmem:[%s1466 + $0xa8] sm:$0xff]
      %v1489 = vld [vmem:[%s1466 + $0xb0] sm:$0xff]
      %v1490 = vld [vmem:[%s1466 + $0xb8] sm:$0xff]
      %v1491 = vld [vmem:[%s1466 + $0xc0] sm:$0xff]
      %v1492 = vld [vmem:[%s1466 + $0xc8] sm:$0xff]
      %v1493 = vld [vmem:[%s1466 + $0xd0] sm:$0xff]
      %v1494 = vld [vmem:[%s1466 + $0xd8] sm:$0xff]
      %v1495 = vld [vmem:[%s1466 + $0xe0] sm:$0xff]
      %v1496 = vld [vmem:[%s1466 + $0xe8] sm:$0xff]
      %v1497 = vld [vmem:[%s1466 + $0xf0] sm:$0xff]
      %v1498 = vld [vmem:[%s1466 + $0xf8] sm:$0xff]
      %v1499 = vld [vmem:[%s1466 + $0x100] sm:$0xff]
      %v1500 = vld [vmem:[%s1466 + $0x108] sm:$0xff]
      %v1501 = vld [vmem:[%s1466 + $0x110] sm:$0xff]
      %v1502 = vld [vmem:[%s1466 + $0x118] sm:$0xff]
      %v1503 = vld [vmem:[%s1466 + $0x120] sm:$0xff]
      %v1504 = vld [vmem:[%s1466 + $0x128] sm:$0xff]
      %v1505 = vld [vmem:[%s1466 + $0x130] sm:$0xff]
      %v1506 = vld [vmem:[%s1466 + $0x138] sm:$0xff]
      %v1507 = vld [vmem:[%s1466 + $0x140] sm:$0xff]
      %v1508 = vld [vmem:[%s1466 + $0x148] sm:$0xff]
      %v1509 = vld [vmem:[%s1466 + $0x150] sm:$0xff]
      %v1510 = vld [vmem:[%s1466 + $0x158] sm:$0xff]
      %v1511 = vld [vmem:[%s1466 + $0x160] sm:$0xff]
      %v1512 = vld [vmem:[%s1466 + $0x168] sm:$0xff]
      %v1513 = vld [vmem:[%s1466 + $0x170] sm:$0xff]
      %v1514 = vld [vmem:[%s1466 + $0x178] sm:$0xff]
      %v1515 = vld [vmem:[%s1466 + $0x180] sm:$0xff]
      %v1516 = vld [vmem:[%s1466 + $0x188] sm:$0xff]
      %v1517 = vld [vmem:[%s1466 + $0x190] sm:$0xff]
      %v1518 = vld [vmem:[%s1466 + $0x198] sm:$0xff]
      %v1519 = vld [vmem:[%s1466 + $0x1a0] sm:$0xff]
      %v1520 = vld [vmem:[%s1466 + $0x1a8] sm:$0xff]
      %v1521 = vld [vmem:[%s1466 + $0x1b0] sm:$0xff]
      %v1522 = vld [vmem:[%s1466 + $0x1b8] sm:$0xff]
      %v1523 = vld [vmem:[%s1466 + $0x1c0] sm:$0xff]
      %v1524 = vld [vmem:[%s1466 + $0x1c8] sm:$0xff]
      %v1525 = vld [vmem:[%s1466 + $0x1d0] sm:$0xff]
      %v1526 = vld [vmem:[%s1466 + $0x1d8] sm:$0xff]
      %v1527 = vld [vmem:[%s1466 + $0x1e0] sm:$0xff]
      %v1528 = vld [vmem:[%s1466 + $0x1e8] sm:$0xff]
      %v1529 = vld [vmem:[%s1466 + $0x1f0] sm:$0xff]
      %v1530 = vld [vmem:[%s1466 + $0x1f8] sm:$0xff]
      %v1531 = vld [vmem:[%s1466 + $0x200] sm:$0xff]
      %v1532 = vld [vmem:[%s1466 + $0x208] sm:$0xff]
      %v1533 = vld [vmem:[%s1466 + $0x210] sm:$0xff]
      %v1534 = vld [vmem:[%s1466 + $0x218] sm:$0xff]
      %v1550 = vrot.slane %v1383, 1
      %v1551 = vrot.slane %v1386, 1
      %v1552 = vsel %vm647, %v1550, %v1551
      %v1553 = vrot.slane %v1384, 1
      %v1554 = vrot.slane %v1387, 1
      %v1555 = vsel %vm647, %v1553, %v1554
      %v1556 = vrot.slane %v1385, 1
      %v1557 = vrot.slane %v1388, 1
      %v1558 = vsel %vm647, %v1556, %v1557
      %v1559 = vrot.slane %v1389, 1
      %v1560 = vsel %vm647, %v1551, %v1559
      %v1561 = vrot.slane %v1390, 1
      %v1562 = vsel %vm647, %v1554, %v1561
      %v1563 = vrot.slane %v1391, 1
      %v1564 = vsel %vm647, %v1557, %v1563
      %v1565 = vrot.slane %v1392, 1
      %v1566 = vsel %vm647, %v1559, %v1565
      %v1567 = vrot.slane %v1393, 1
      %v1568 = vsel %vm647, %v1561, %v1567
      %v1569 = vrot.slane %v1394, 1
      %v1570 = vsel %vm647, %v1563, %v1569
      %v1571 = vrot.slane %v1395, 1
      %v1572 = vsel %vm647, %v1565, %v1571
      %v1573 = vrot.slane %v1396, 1
      %v1574 = vsel %vm647, %v1567, %v1573
      %v1575 = vrot.slane %v1397, 1
      %v1576 = vsel %vm647, %v1569, %v1575
      %v1585 = vsel %vm671, %v1558, 0
      %v1587 = vsel %vm671, %v1564, 0
      %v1589 = vsel %vm671, %v1570, 0
      %v1591 = vsel %vm671, %v1576, 0
      %1593 = vmatprep.subr.mxu0 %v1468
      %1594 = vmatpush1.msra.mxu0 %v1467
      %1595 = vmatprep.subr.mxu0 %v1470
      %1596 = vmatpush1.msra.mxu0 %v1469
      %1597 = vmatprep.subr.mxu0 %v1472
      %1598 = vmatpush1.msra.mxu0 %v1471
      %1599 = vmatprep.subr.mxu0 %v1474
      %1600 = vmatpush1.msra.mxu0 %v1473
      %1601 = vmatprep.subr.mxu0 %v1476
      %1602 = vmatpush1.msra.mxu0 %v1475
      %1603 = vmatprep.subr.mxu0 %v1478
      %1604 = vmatpush1.msra.mxu0 %v1477
      %1605 = vmatprep.subr.mxu0 %v1480
      %1606 = vmatpush1.msra.mxu0 %v1479
      %1607 = vmatprep.subr.mxu0 %v1482
      %1608 = vmatpush1.msra.mxu0 %v1481
      %1609 = vmatprep.subr.mxu0 %v1484
      %1610 = vmatpush1.msra.mxu0 %v1483
      %1611 = vmatprep.subr.mxu0 %v1486
      %1612 = vmatpush1.msra.mxu0 %v1485
      %1613 = vmatprep.subr.mxu0 %v1488
      %1614 = vmatpush1.msra.mxu0 %v1487
      %1615 = vmatprep.subr.mxu0 %v1490
      %1616 = vmatpush1.msra.mxu0 %v1489
      %1617 = vmatprep.subr.mxu0 %v1492
      %1618 = vmatpush1.msra.mxu0 %v1491
      %1619 = vmatprep.subr.mxu0 %v1494
      %1620 = vmatpush1.msra.mxu0 %v1493
      %1621 = vmatprep.subr.mxu0 %v1496
      %1622 = vmatpush1.msra.mxu0 %v1495
      %1623 = vmatprep.subr.mxu0 %v1498
      %1624 = vmatpush1.msra.mxu0 %v1497
      %1625 = vmatprep.subr.mxu0 %v1500
      %1626 = vmatpush1.msra.mxu0 %v1499
      %1627 = vmatprep.subr.mxu0 %v1502
      %1628 = vmatpush1.msra.mxu0 %v1501
      %1629 = vmatprep.subr.mxu0 %v1504
      %1630 = vmatpush1.msra.mxu0 %v1503
      %1631 = vmatprep.subr.mxu0 %v1506
      %1632 = vmatpush1.msra.mxu0 %v1505
      %1633 = vmatprep.subr.mxu0 %v1508
      %1634 = vmatpush1.msra.mxu0 %v1507
      %1635 = vmatprep.subr.mxu0 %v1510
      %1636 = vmatpush1.msra.mxu0 %v1509
      %1637 = vmatprep.subr.mxu0 %v1512
      %1638 = vmatpush1.msra.mxu0 %v1511
      %1639 = vmatprep.subr.mxu0 %v1514
      %1640 = vmatpush1.msra.mxu0 %v1513
      %1641 = vmatprep.subr.mxu0 %v1516
      %1642 = vmatpush1.msra.mxu0 %v1515
      %1643 = vmatprep.subr.mxu0 %v1518
      %1644 = vmatpush1.msra.mxu0 %v1517
      %1645 = vmatprep.subr.mxu0 %v1520
      %1646 = vmatpush1.msra.mxu0 %v1519
      %1647 = vmatprep.subr.mxu0 %v1522
      %1648 = vmatpush1.msra.mxu0 %v1521
      %1649 = vmatprep.subr.mxu0 %v1524
      %1650 = vmatpush1.msra.mxu0 %v1523
      %1651 = vmatprep.subr.mxu0 %v1526
      %1652 = vmatpush1.msra.mxu0 %v1525
      %1653 = vmatprep.subr.mxu0 %v1528
      %1654 = vmatpush1.msra.mxu0 %v1527
      %1655 = vmatprep.subr.mxu0 %v1530
      %1656 = vmatpush1.msra.mxu0 %v1529
      %1657 = vmatprep.mubr.f32.mxu0 %v1555
      %1658 = vmatmul.mubr.f32.gmra.mrb[0].mxu0 %v1552
      %v1659 = vpop.f32.mrb[0].mxu0
      %v1660 = vadd.f32 0.0, %v1659
      %v1661 = vpop.f32.mrb[0].mxu0
      %v1662 = vadd.f32 0.0, %v1661
      %1663 = vmatprep.mubr.f32.mxu0 %v1562
      %1664 = vmatmul.mubr.f32.gmra.mrb[0].mxu0 %v1560
      %v1665 = vpop.f32.mrb[0].mxu0
      %v1666 = vadd.f32 0.0, %v1665
      %v1667 = vpop.f32.mrb[0].mxu0
      %v1668 = vadd.f32 0.0, %v1667
      %1669 = vmatprep.mubr.f32.mxu0 %v1568
      %1670 = vmatmul.mubr.f32.gmra.mrb[0].mxu0 %v1566
      %v1671 = vpop.f32.mrb[0].mxu0
      %v1672 = vadd.f32 0.0, %v1671
      %v1673 = vpop.f32.mrb[0].mxu0
      %v1674 = vadd.f32 0.0, %v1673
      %1675 = vmatprep.mubr.f32.mxu0 %v1574
      %1676 = vmatmul.mubr.f32.gmra.mrb[0].mxu0 %v1572
      %v1677 = vpop.f32.mrb[0].mxu0
      %v1678 = vadd.f32 0.0, %v1677
      %v1679 = vpop.f32.mrb[0].mxu0
      %v1680 = vadd.f32 0.0, %v1679
      %1681 = vdwg.mxu0
      %1682 = vmatprep.subr.mxu0 %v1532
      %1683 = vmatpush1.msra.mxu0 %v1531
      %1684 = vmatprep.subr.mxu0 %v1534
      %1685 = vmatpush1.msra.mxu0 %v1533
      %1686 = vmatprep.subr.mxu0 0.0
      %1687 = vmatpush1.msra.mxu0 0.0
      %1688 = vmatprep.subr.mxu0 0.0
      %1689 = vmatpush1.msra.mxu0 0.0
      %1690 = vmatprep.subr.mxu0 0.0
      %1691 = vmatpush1.msra.mxu0 0.0
      %1692 = vmatprep.subr.mxu0 0.0
      %1693 = vmatpush1.msra.mxu0 0.0
      %1694 = vmatprep.subr.mxu0 0.0
      %1695 = vmatpush1.msra.mxu0 0.0
      %1696 = vmatprep.subr.mxu0 0.0
      %1697 = vmatpush1.msra.mxu0 0.0
      %1698 = vmatprep.subr.mxu0 0.0
      %1699 = vmatpush1.msra.mxu0 0.0
      %1700 = vmatprep.subr.mxu0 0.0
      %1701 = vmatpush1.msra.mxu0 0.0
      %1702 = vmatprep.subr.mxu0 0.0
      %1703 = vmatpush1.msra.mxu0 0.0
      %1704 = vmatprep.subr.mxu0 0.0
      %1705 = vmatpush1.msra.mxu0 0.0
      %1706 = vmatprep.subr.mxu0 0.0
      %1707 = vmatpush1.msra.mxu0 0.0
      %1708 = vmatprep.subr.mxu0 0.0
      %1709 = vmatpush1.msra.mxu0 0.0
      %1710 = vmatprep.subr.mxu0 0.0
      %1711 = vmatpush1.msra.mxu0 0.0
      %1712 = vmatprep.subr.mxu0 0.0
      %1713 = vmatpush1.msra.mxu0 0.0
      %1714 = vmatprep.subr.mxu0 0.0
      %1715 = vmatpush1.msra.mxu0 0.0
      %1716 = vmatprep.subr.mxu0 0.0
      %1717 = vmatpush1.msra.mxu0 0.0
      %1718 = vmatprep.subr.mxu0 0.0
      %1719 = vmatpush1.msra.mxu0 0.0
      %1720 = vmatprep.subr.mxu0 0.0
      %1721 = vmatpush1.msra.mxu0 0.0
      %1722 = vmatprep.subr.mxu0 0.0
      %1723 = vmatpush1.msra.mxu0 0.0
      %1724 = vmatprep.subr.mxu0 0.0
      %1725 = vmatpush1.msra.mxu0 0.0
      %1726 = vmatprep.subr.mxu0 0.0
      %1727 = vmatpush1.msra.mxu0 0.0
      %1728 = vmatprep.subr.mxu0 0.0
      %1729 = vmatpush1.msra.mxu0 0.0
      %1730 = vmatprep.subr.mxu0 0.0
      %1731 = vmatpush1.msra.mxu0 0.0
      %1732 = vmatprep.subr.mxu0 0.0
      %1733 = vmatpush1.msra.mxu0 0.0
      %1734 = vmatprep.subr.mxu0 0.0
      %1735 = vmatpush1.msra.mxu0 0.0
      %1736 = vmatprep.subr.mxu0 0.0
      %1737 = vmatpush1.msra.mxu0 0.0
      %1738 = vmatprep.subr.mxu0 0.0
      %1739 = vmatpush1.msra.mxu0 0.0
      %1740 = vmatprep.subr.mxu0 0.0
      %1741 = vmatpush1.msra.mxu0 0.0
      %1742 = vmatprep.subr.mxu0 0.0
      %1743 = vmatpush1.msra.mxu0 0.0
      %1744 = vmatprep.subr.mxu0 0.0
      %1745 = vmatpush1.msra.mxu0 0.0
      %1746 = vmatprep.mubr.f32.mxu0 0.0
      %1747 = vmatmul.mubr.f32.gmra.mrb[0].mxu0 %v1585
      %v1748 = vpop.f32.mrb[0].mxu0
      %v1749 = vadd.f32 %v1660, %v1748
      %v1750 = vpop.f32.mrb[0].mxu0
      %v1751 = vadd.f32 %v1662, %v1750
      %1752 = vmatprep.mubr.f32.mxu0 0.0
      %1753 = vmatmul.mubr.f32.gmra.mrb[0].mxu0 %v1587
      %v1754 = vpop.f32.mrb[0].mxu0
      %v1755 = vadd.f32 %v1666, %v1754
      %v1756 = vpop.f32.mrb[0].mxu0
      %v1757 = vadd.f32 %v1668, %v1756
      %1758 = vmatprep.mubr.f32.mxu0 0.0
      %1759 = vmatmul.mubr.f32.gmra.mrb[0].mxu0 %v1589
      %v1760 = vpop.f32.mrb[0].mxu0
      %v1761 = vadd.f32 %v1672, %v1760
      %v1762 = vpop.f32.mrb[0].mxu0
      %v1763 = vadd.f32 %v1674, %v1762
      %1764 = vmatprep.mubr.f32.mxu0 0.0
      %1765 = vmatmul.mubr.f32.gmra.mrb[0].mxu0 %v1591
      %v1766 = vpop.f32.mrb[0].mxu0
      %v1767 = vadd.f32 %v1678, %v1766
      %v1768 = vpop.f32.mrb[0].mxu0
      %v1769 = vadd.f32 %v1680, %v1768
      %1770 = vdwg.mxu0
      %v1771 = vsel %vm671, %v1385, 0
      %v1773 = vsel %vm671, %v1388, 0
      %v1775 = vsel %vm671, %v1391, 0
      %v1777 = vsel %vm671, %v1394, 0
      %1779 = vmatprep.subr.mxu0 %v1399
      %1780 = vmatpush1.msra.mxu0 %v1398
      %1781 = vmatprep.subr.mxu0 %v1401
      %1782 = vmatpush1.msra.mxu0 %v1400
      %1783 = vmatprep.subr.mxu0 %v1403
      %1784 = vmatpush1.msra.mxu0 %v1402
      %1785 = vmatprep.subr.mxu0 %v1405
      %1786 = vmatpush1.msra.mxu0 %v1404
      %1787 = vmatprep.subr.mxu0 %v1407
      %1788 = vmatpush1.msra.mxu0 %v1406
      %1789 = vmatprep.subr.mxu0 %v1409
      %1790 = vmatpush1.msra.mxu0 %v1408
      %1791 = vmatprep.subr.mxu0 %v1411
      %1792 = vmatpush1.msra.mxu0 %v1410
      %1793 = vmatprep.subr.mxu0 %v1413
      %1794 = vmatpush1.msra.mxu0 %v1412
      %1795 = vmatprep.subr.mxu0 %v1415
      %1796 = vmatpush1.msra.mxu0 %v1414
      %1797 = vmatprep.subr.mxu0 %v1417
      %1798 = vmatpush1.msra.mxu0 %v1416
      %1799 = vmatprep.subr.mxu0 %v1419
      %1800 = vmatpush1.msra.mxu0 %v1418
      %1801 = vmatprep.subr.mxu0 %v1421
      %1802 = vmatpush1.msra.mxu0 %v1420
      %1803 = vmatprep.subr.mxu0 %v1423
      %1804 = vmatpush1.msra.mxu0 %v1422
      %1805 = vmatprep.subr.mxu0 %v1425
      %1806 = vmatpush1.msra.mxu0 %v1424
      %1807 = vmatprep.subr.mxu0 %v1427
      %1808 = vmatpush1.msra.mxu0 %v1426
      %1809 = vmatprep.subr.mxu0 %v1429
      %1810 = vmatpush1.msra.mxu0 %v1428
      %1811 = vmatprep.subr.mxu0 %v1431
      %1812 = vmatpush1.msra.mxu0 %v1430
      %1813 = vmatprep.subr.mxu0 %v1433
      %1814 = vmatpush1.msra.mxu0 %v1432
      %1815 = vmatprep.subr.mxu0 %v1435
      %1816 = vmatpush1.msra.mxu0 %v1434
      %1817 = vmatprep.subr.mxu0 %v1437
      %1818 = vmatpush1.msra.mxu0 %v1436
      %1819 = vmatprep.subr.mxu0 %v1439
      %1820 = vmatpush1.msra.mxu0 %v1438
      %1821 = vmatprep.subr.mxu0 %v1441
      %1822 = vmatpush1.msra.mxu0 %v1440
      %1823 = vmatprep.subr.mxu0 %v1443
      %1824 = vmatpush1.msra.mxu0 %v1442
      %1825 = vmatprep.subr.mxu0 %v1445
      %1826 = vmatpush1.msra.mxu0 %v1444
      %1827 = vmatprep.subr.mxu0 %v1447
      %1828 = vmatpush1.msra.mxu0 %v1446
      %1829 = vmatprep.subr.mxu0 %v1449
      %1830 = vmatpush1.msra.mxu0 %v1448
      %1831 = vmatprep.subr.mxu0 %v1451
      %1832 = vmatpush1.msra.mxu0 %v1450
      %1833 = vmatprep.subr.mxu0 %v1453
      %1834 = vmatpush1.msra.mxu0 %v1452
      %1835 = vmatprep.subr.mxu0 %v1455
      %1836 = vmatpush1.msra.mxu0 %v1454
      %1837 = vmatprep.subr.mxu0 %v1457
      %1838 = vmatpush1.msra.mxu0 %v1456
      %1839 = vmatprep.subr.mxu0 %v1459
      %1840 = vmatpush1.msra.mxu0 %v1458
      %1841 = vmatprep.subr.mxu0 %v1461
      %1842 = vmatpush1.msra.mxu0 %v1460
      %1843 = vmatprep.mubr.f32.mxu0 %v1384
      %1844 = vmatmul.mubr.f32.gmra.mrb[0].mxu0 %v1383
      %v1845 = vpop.f32.mrb[0].mxu0
      %v1846 = vadd.f32 %v1749, %v1845
      %v1847 = vpop.f32.mrb[0].mxu0
      %v1848 = vadd.f32 %v1751, %v1847
      %1849 = vmatprep.mubr.f32.mxu0 %v1387
      %1850 = vmatmul.mubr.f32.gmra.mrb[0].mxu0 %v1386
      %v1851 = vpop.f32.mrb[0].mxu0
      %v1852 = vadd.f32 %v1755, %v1851
      %v1853 = vpop.f32.mrb[0].mxu0
      %v1854 = vadd.f32 %v1757, %v1853
      %1855 = vmatprep.mubr.f32.mxu0 %v1390
      %1856 = vmatmul.mubr.f32.gmra.mrb[0].mxu0 %v1389
      %v1857 = vpop.f32.mrb[0].mxu0
      %v1858 = vadd.f32 %v1761, %v1857
      %v1859 = vpop.f32.mrb[0].mxu0
      %v1860 = vadd.f32 %v1763, %v1859
      %1861 = vmatprep.mubr.f32.mxu0 %v1393
      %1862 = vmatmul.mubr.f32.gmra.mrb[0].mxu0 %v1392
      %v1863 = vpop.f32.mrb[0].mxu0
      %v1864 = vadd.f32 %v1767, %v1863
      %v1865 = vpop.f32.mrb[0].mxu0
      %v1866 = vadd.f32 %v1769, %v1865
      %1867 = vdwg.mxu0
      %1868 = vmatprep.subr.mxu0 %v1463
      %1869 = vmatpush1.msra.mxu0 %v1462
      %1870 = vmatprep.subr.mxu0 %v1465
      %1871 = vmatpush1.msra.mxu0 %v1464
      %1872 = vmatprep.subr.mxu0 0.0
      %1873 = vmatpush1.msra.mxu0 0.0
      %1874 = vmatprep.subr.mxu0 0.0
      %1875 = vmatpush1.msra.mxu0 0.0
      %1876 = vmatprep.subr.mxu0 0.0
      %1877 = vmatpush1.msra.mxu0 0.0
      %1878 = vmatprep.subr.mxu0 0.0
      %1879 = vmatpush1.msra.mxu0 0.0
      %1880 = vmatprep.subr.mxu0 0.0
      %1881 = vmatpush1.msra.mxu0 0.0
      %1882 = vmatprep.subr.mxu0 0.0
      %1883 = vmatpush1.msra.mxu0 0.0
      %1884 = vmatprep.subr.mxu0 0.0
      %1885 = vmatpush1.msra.mxu0 0.0
      %1886 = vmatprep.subr.mxu0 0.0
      %1887 = vmatpush1.msra.mxu0 0.0
      %1888 = vmatprep.subr.mxu0 0.0
      %1889 = vmatpush1.msra.mxu0 0.0
      %1890 = vmatprep.subr.mxu0 0.0
      %1891 = vmatpush1.msra.mxu0 0.0
      %1892 = vmatprep.subr.mxu0 0.0
      %1893 = vmatpush1.msra.mxu0 0.0
      %1894 = vmatprep.subr.mxu0 0.0
      %1895 = vmatpush1.msra.mxu0 0.0
      %1896 = vmatprep.subr.mxu0 0.0
      %1897 = vmatpush1.msra.mxu0 0.0
      %1898 = vmatprep.subr.mxu0 0.0
      %1899 = vmatpush1.msra.mxu0 0.0
      %1900 = vmatprep.subr.mxu0 0.0
      %1901 = vmatpush1.msra.mxu0 0.0
      %1902 = vmatprep.subr.mxu0 0.0
      %1903 = vmatpush1.msra.mxu0 0.0
      %1904 = vmatprep.subr.mxu0 0.0
      %1905 = vmatpush1.msra.mxu0 0.0
      %1906 = vmatprep.subr.mxu0 0.0
      %1907 = vmatpush1.msra.mxu0 0.0
      %1908 = vmatprep.subr.mxu0 0.0
      %1909 = vmatpush1.msra.mxu0 0.0
      %1910 = vmatprep.subr.mxu0 0.0
      %1911 = vmatpush1.msra.mxu0 0.0
      %1912 = vmatprep.subr.mxu0 0.0
      %1913 = vmatpush1.msra.mxu0 0.0
      %1914 = vmatprep.subr.mxu0 0.0
      %1915 = vmatpush1.msra.mxu0 0.0
      %1916 = vmatprep.subr.mxu0 0.0
      %1917 = vmatpush1.msra.mxu0 0.0
      %1918 = vmatprep.subr.mxu0 0.0
      %1919 = vmatpush1.msra.mxu0 0.0
      %1920 = vmatprep.subr.mxu0 0.0
      %1921 = vmatpush1.msra.mxu0 0.0
      %1922 = vmatprep.subr.mxu0 0.0
      %1923 = vmatpush1.msra.mxu0 0.0
      %1924 = vmatprep.subr.mxu0 0.0
      %1925 = vmatpush1.msra.mxu0 0.0
      %1926 = vmatprep.subr.mxu0 0.0
      %1927 = vmatpush1.msra.mxu0 0.0
      %1928 = vmatprep.subr.mxu0 0.0
      %1929 = vmatpush1.msra.mxu0 0.0
      %1930 = vmatprep.subr.mxu0 0.0
      %1931 = vmatpush1.msra.mxu0 0.0
      %1932 = vmatprep.mubr.f32.mxu0 0.0
      %1933 = vmatmul.mubr.f32.gmra.mrb[0].mxu0 %v1771
      %v1934 = vpop.f32.mrb[0].mxu0
      %v1935 = vadd.f32 %v1846, %v1934
      %v1936 = vpop.f32.mrb[0].mxu0
      %v1937 = vadd.f32 %v1848, %v1936
      %1938 = vmatprep.mubr.f32.mxu0 0.0
      %1939 = vmatmul.mubr.f32.gmra.mrb[0].mxu0 %v1773
      %v1940 = vpop.f32.mrb[0].mxu0
      %v1941 = vadd.f32 %v1852, %v1940
      %v1942 = vpop.f32.mrb[0].mxu0
      %v1943 = vadd.f32 %v1854, %v1942
      %1944 = vmatprep.mubr.f32.mxu0 0.0
      %1945 = vmatmul.mubr.f32.gmra.mrb[0].mxu0 %v1775
      %v1946 = vpop.f32.mrb[0].mxu0
      %v1947 = vadd.f32 %v1858, %v1946
      %v1948 = vpop.f32.mrb[0].mxu0
      %v1949 = vadd.f32 %v1860, %v1948
      %1950 = vmatprep.mubr.f32.mxu0 0.0
      %1951 = vmatmul.mubr.f32.gmra.mrb[0].mxu0 %v1777
      %v1952 = vpop.f32.mrb[0].mxu0
      %v1953 = vadd.f32 %v1864, %v1952
      %v1954 = vpop.f32.mrb[0].mxu0
      %v1955 = vadd.f32 %v1866, %v1954
      %1956 = vdwg.mxu0
      %s1957 = scalar_lea.vmem %s3, 1088
      %v1958 = vld [vmem:[%s1957] sm:$0xff]
      %v1959 = vld [vmem:[%s1957 + $0x8] sm:$0xff]
      %v1960 = vld [vmem:[%s1957 + $0x10] sm:$0xff]
      %v1961 = vld [vmem:[%s1957 + $0x18] sm:$0xff]
      %v1962 = vld [vmem:[%s1957 + $0x20] sm:$0xff]
      %v1963 = vld [vmem:[%s1957 + $0x28] sm:$0xff]
      %v1964 = vld [vmem:[%s1957 + $0x30] sm:$0xff]
      %v1965 = vld [vmem:[%s1957 + $0x38] sm:$0xff]
      %v1966 = vld [vmem:[%s1957 + $0x40] sm:$0xff]
      %v1967 = vld [vmem:[%s1957 + $0x48] sm:$0xff]
      %v1968 = vld [vmem:[%s1957 + $0x50] sm:$0xff]
      %v1969 = vld [vmem:[%s1957 + $0x58] sm:$0xff]
      %v1970 = vld [vmem:[%s1957 + $0x60] sm:$0xff]
      %v1971 = vld [vmem:[%s1957 + $0x68] sm:$0xff]
      %v1972 = vld [vmem:[%s1957 + $0x70] sm:$0xff]
      %v1973 = vld [vmem:[%s1957 + $0x78] sm:$0xff]
      %v1974 = vld [vmem:[%s1957 + $0x80] sm:$0xff]
      %v1975 = vld [vmem:[%s1957 + $0x88] sm:$0xff]
      %v1976 = vld [vmem:[%s1957 + $0x90] sm:$0xff]
      %v1977 = vld [vmem:[%s1957 + $0x98] sm:$0xff]
      %v1978 = vld [vmem:[%s1957 + $0xa0] sm:$0xff]
      %v1979 = vld [vmem:[%s1957 + $0xa8] sm:$0xff]
      %v1980 = vld [vmem:[%s1957 + $0xb0] sm:$0xff]
      %v1981 = vld [vmem:[%s1957 + $0xb8] sm:$0xff]
      %v1982 = vld [vmem:[%s1957 + $0xc0] sm:$0xff]
      %v1983 = vld [vmem:[%s1957 + $0xc8] sm:$0xff]
      %v1984 = vld [vmem:[%s1957 + $0xd0] sm:$0xff]
      %v1985 = vld [vmem:[%s1957 + $0xd8] sm:$0xff]
      %v1986 = vld [vmem:[%s1957 + $0xe0] sm:$0xff]
      %v1987 = vld [vmem:[%s1957 + $0xe8] sm:$0xff]
      %v1988 = vld [vmem:[%s1957 + $0xf0] sm:$0xff]
      %v1989 = vld [vmem:[%s1957 + $0xf8] sm:$0xff]
      %v1990 = vld [vmem:[%s1957 + $0x100] sm:$0xff]
      %v1991 = vld [vmem:[%s1957 + $0x108] sm:$0xff]
      %v1992 = vld [vmem:[%s1957 + $0x110] sm:$0xff]
      %v1993 = vld [vmem:[%s1957 + $0x118] sm:$0xff]
      %v1994 = vld [vmem:[%s1957 + $0x120] sm:$0xff]
      %v1995 = vld [vmem:[%s1957 + $0x128] sm:$0xff]
      %v1996 = vld [vmem:[%s1957 + $0x130] sm:$0xff]
      %v1997 = vld [vmem:[%s1957 + $0x138] sm:$0xff]
      %v1998 = vld [vmem:[%s1957 + $0x140] sm:$0xff]
      %v1999 = vld [vmem:[%s1957 + $0x148] sm:$0xff]
      %v2000 = vld [vmem:[%s1957 + $0x150] sm:$0xff]
      %v2001 = vld [vmem:[%s1957 + $0x158] sm:$0xff]
      %v2002 = vld [vmem:[%s1957 + $0x160] sm:$0xff]
      %v2003 = vld [vmem:[%s1957 + $0x168] sm:$0xff]
      %v2004 = vld [vmem:[%s1957 + $0x170] sm:$0xff]
      %v2005 = vld [vmem:[%s1957 + $0x178] sm:$0xff]
      %v2006 = vld [vmem:[%s1957 + $0x180] sm:$0xff]
      %v2007 = vld [vmem:[%s1957 + $0x188] sm:$0xff]
      %v2008 = vld [vmem:[%s1957 + $0x190] sm:$0xff]
      %v2009 = vld [vmem:[%s1957 + $0x198] sm:$0xff]
      %v2010 = vld [vmem:[%s1957 + $0x1a0] sm:$0xff]
      %v2011 = vld [vmem:[%s1957 + $0x1a8] sm:$0xff]
      %v2012 = vld [vmem:[%s1957 + $0x1b0] sm:$0xff]
      %v2013 = vld [vmem:[%s1957 + $0x1b8] sm:$0xff]
      %v2014 = vld [vmem:[%s1957 + $0x1c0] sm:$0xff]
      %v2015 = vld [vmem:[%s1957 + $0x1c8] sm:$0xff]
      %v2016 = vld [vmem:[%s1957 + $0x1d0] sm:$0xff]
      %v2017 = vld [vmem:[%s1957 + $0x1d8] sm:$0xff]
      %v2018 = vld [vmem:[%s1957 + $0x1e0] sm:$0xff]
      %v2019 = vld [vmem:[%s1957 + $0x1e8] sm:$0xff]
      %v2020 = vld [vmem:[%s1957 + $0x1f0] sm:$0xff]
      %v2021 = vld [vmem:[%s1957 + $0x1f8] sm:$0xff]
      %v2022 = vld [vmem:[%s1957 + $0x200] sm:$0xff]
      %v2023 = vld [vmem:[%s1957 + $0x208] sm:$0xff]
      %v2024 = vld [vmem:[%s1957 + $0x210] sm:$0xff]
      %v2025 = vld [vmem:[%s1957 + $0x218] sm:$0xff]
      %v2026 = vrot.slane %v1383, 2
      %v2027 = vrot.slane %v1386, 2
      %v2028 = vsel %vm1117, %v2026, %v2027
      %v2029 = vrot.slane %v1384, 2
      %v2030 = vrot.slane %v1387, 2
      %v2031 = vsel %vm1117, %v2029, %v2030
      %v2032 = vrot.slane %v1385, 2
      %v2033 = vrot.slane %v1388, 2
      %v2034 = vsel %vm1117, %v2032, %v2033
      %v2035 = vrot.slane %v1389, 2
      %v2036 = vsel %vm1117, %v2027, %v2035
      %v2037 = vrot.slane %v1390, 2
      %v2038 = vsel %vm1117, %v2030, %v2037
      %v2039 = vrot.slane %v1391, 2
      %v2040 = vsel %vm1117, %v2033, %v2039
      %v2041 = vrot.slane %v1392, 2
      %v2042 = vsel %vm1117, %v2035, %v2041
      %v2043 = vrot.slane %v1393, 2
      %v2044 = vsel %vm1117, %v2037, %v2043
      %v2045 = vrot.slane %v1394, 2
      %v2046 = vsel %vm1117, %v2039, %v2045
      %v2047 = vrot.slane %v1395, 2
      %v2048 = vsel %vm1117, %v2041, %v2047
      %v2049 = vrot.slane %v1396, 2
      %v2050 = vsel %vm1117, %v2043, %v2049
      %v2051 = vrot.slane %v1397, 2
      %v2052 = vsel %vm1117, %v2045, %v2051
      %v2061 = vsel %vm671, %v2034, 0
      %v2063 = vsel %vm671, %v2040, 0
      %v2065 = vsel %vm671, %v2046, 0
      %v2067 = vsel %vm671, %v2052, 0
      %2069 = vmatprep.subr.mxu0 %v1959
      %2070 = vmatpush1.msra.mxu0 %v1958
      %2071 = vmatprep.subr.mxu0 %v1961
      %2072 = vmatpush1.msra.mxu0 %v1960
      %2073 = vmatprep.subr.mxu0 %v1963
      %2074 = vmatpush1.msra.mxu0 %v1962
      %2075 = vmatprep.subr.mxu0 %v1965
      %2076 = vmatpush1.msra.mxu0 %v1964
      %2077 = vmatprep.subr.mxu0 %v1967
      %2078 = vmatpush1.msra.mxu0 %v1966
      %2079 = vmatprep.subr.mxu0 %v1969
      %2080 = vmatpush1.msra.mxu0 %v1968
      %2081 = vmatprep.subr.mxu0 %v1971
      %2082 = vmatpush1.msra.mxu0 %v1970
      %2083 = vmatprep.subr.mxu0 %v1973
      %2084 = vmatpush1.msra.mxu0 %v1972
      %2085 = vmatprep.subr.mxu0 %v1975
      %2086 = vmatpush1.msra.mxu0 %v1974
      %2087 = vmatprep.subr.mxu0 %v1977
      %2088 = vmatpush1.msra.mxu0 %v1976
      %2089 = vmatprep.subr.mxu0 %v1979
      %2090 = vmatpush1.msra.mxu0 %v1978
      %2091 = vmatprep.subr.mxu0 %v1981
      %2092 = vmatpush1.msra.mxu0 %v1980
      %2093 = vmatprep.subr.mxu0 %v1983
      %2094 = vmatpush1.msra.mxu0 %v1982
      %2095 = vmatprep.subr.mxu0 %v1985
      %2096 = vmatpush1.msra.mxu0 %v1984
      %2097 = vmatprep.subr.mxu0 %v1987
      %2098 = vmatpush1.msra.mxu0 %v1986
      %2099 = vmatprep.subr.mxu0 %v1989
      %2100 = vmatpush1.msra.mxu0 %v1988
      %2101 = vmatprep.subr.mxu0 %v1991
      %2102 = vmatpush1.msra.mxu0 %v1990
      %2103 = vmatprep.subr.mxu0 %v1993
      %2104 = vmatpush1.msra.mxu0 %v1992
      %2105 = vmatprep.subr.mxu0 %v1995
      %2106 = vmatpush1.msra.mxu0 %v1994
      %2107 = vmatprep.subr.mxu0 %v1997
      %2108 = vmatpush1.msra.mxu0 %v1996
      %2109 = vmatprep.subr.mxu0 %v1999
      %2110 = vmatpush1.msra.mxu0 %v1998
      %2111 = vmatprep.subr.mxu0 %v2001
      %2112 = vmatpush1.msra.mxu0 %v2000
      %2113 = vmatprep.subr.mxu0 %v2003
      %2114 = vmatpush1.msra.mxu0 %v2002
      %2115 = vmatprep.subr.mxu0 %v2005
      %2116 = vmatpush1.msra.mxu0 %v2004
      %2117 = vmatprep.subr.mxu0 %v2007
      %2118 = vmatpush1.msra.mxu0 %v2006
      %2119 = vmatprep.subr.mxu0 %v2009
      %2120 = vmatpush1.msra.mxu0 %v2008
      %2121 = vmatprep.subr.mxu0 %v2011
      %2122 = vmatpush1.msra.mxu0 %v2010
      %2123 = vmatprep.subr.mxu0 %v2013
      %2124 = vmatpush1.msra.mxu0 %v2012
      %2125 = vmatprep.subr.mxu0 %v2015
      %2126 = vmatpush1.msra.mxu0 %v2014
      %2127 = vmatprep.subr.mxu0 %v2017
      %2128 = vmatpush1.msra.mxu0 %v2016
      %2129 = vmatprep.subr.mxu0 %v2019
      %2130 = vmatpush1.msra.mxu0 %v2018
      %2131 = vmatprep.subr.mxu0 %v2021
      %2132 = vmatpush1.msra.mxu0 %v2020
      %2133 = vmatprep.mubr.f32.mxu0 %v2031
      %2134 = vmatmul.mubr.f32.gmra.mrb[0].mxu0 %v2028
      %v2135 = vpop.f32.mrb[0].mxu0
      %v2136 = vadd.f32 0.0, %v2135
      %v2137 = vpop.f32.mrb[0].mxu0
      %v2138 = vadd.f32 0.0, %v2137
      %2139 = vmatprep.mubr.f32.mxu0 %v2038
      %2140 = vmatmul.mubr.f32.gmra.mrb[0].mxu0 %v2036
      %v2141 = vpop.f32.mrb[0].mxu0
      %v2142 = vadd.f32 0.0, %v2141
      %v2143 = vpop.f32.mrb[0].mxu0
      %v2144 = vadd.f32 0.0, %v2143
      %2145 = vmatprep.mubr.f32.mxu0 %v2044
      %2146 = vmatmul.mubr.f32.gmra.mrb[0].mxu0 %v2042
      %v2147 = vpop.f32.mrb[0].mxu0
      %v2148 = vadd.f32 0.0, %v2147
      %v2149 = vpop.f32.mrb[0].mxu0
      %v2150 = vadd.f32 0.0, %v2149
      %2151 = vmatprep.mubr.f32.mxu0 %v2050
      %2152 = vmatmul.mubr.f32.gmra.mrb[0].mxu0 %v2048
      %v2153 = vpop.f32.mrb[0].mxu0
      %v2154 = vadd.f32 0.0, %v2153
      %v2155 = vpop.f32.mrb[0].mxu0
      %v2156 = vadd.f32 0.0, %v2155
      %2157 = vdwg.mxu0
      %2158 = vmatprep.subr.mxu0 %v2023
      %2159 = vmatpush1.msra.mxu0 %v2022
      %2160 = vmatprep.subr.mxu0 %v2025
      %2161 = vmatpush1.msra.mxu0 %v2024
      %2162 = vmatprep.subr.mxu0 0.0
      %2163 = vmatpush1.msra.mxu0 0.0
      %2164 = vmatprep.subr.mxu0 0.0
      %2165 = vmatpush1.msra.mxu0 0.0
      %2166 = vmatprep.subr.mxu0 0.0
      %2167 = vmatpush1.msra.mxu0 0.0
      %2168 = vmatprep.subr.mxu0 0.0
      %2169 = vmatpush1.msra.mxu0 0.0
      %2170 = vmatprep.subr.mxu0 0.0
      %2171 = vmatpush1.msra.mxu0 0.0
      %2172 = vmatprep.subr.mxu0 0.0
      %2173 = vmatpush1.msra.mxu0 0.0
      %2174 = vmatprep.subr.mxu0 0.0
      %2175 = vmatpush1.msra.mxu0 0.0
      %2176 = vmatprep.subr.mxu0 0.0
      %2177 = vmatpush1.msra.mxu0 0.0
      %2178 = vmatprep.subr.mxu0 0.0
      %2179 = vmatpush1.msra.mxu0 0.0
      %2180 = vmatprep.subr.mxu0 0.0
      %2181 = vmatpush1.msra.mxu0 0.0
      %2182 = vmatprep.subr.mxu0 0.0
      %2183 = vmatpush1.msra.mxu0 0.0
      %2184 = vmatprep.subr.mxu0 0.0
      %2185 = vmatpush1.msra.mxu0 0.0
      %2186 = vmatprep.subr.mxu0 0.0
      %2187 = vmatpush1.msra.mxu0 0.0
      %2188 = vmatprep.subr.mxu0 0.0
      %2189 = vmatpush1.msra.mxu0 0.0
      %2190 = vmatprep.subr.mxu0 0.0
      %2191 = vmatpush1.msra.mxu0 0.0
      %2192 = vmatprep.subr.mxu0 0.0
      %2193 = vmatpush1.msra.mxu0 0.0
      %2194 = vmatprep.subr.mxu0 0.0
      %2195 = vmatpush1.msra.mxu0 0.0
      %2196 = vmatprep.subr.mxu0 0.0
      %2197 = vmatpush1.msra.mxu0 0.0
      %2198 = vmatprep.subr.mxu0 0.0
      %2199 = vmatpush1.msra.mxu0 0.0
      %2200 = vmatprep.subr.mxu0 0.0
      %2201 = vmatpush1.msra.mxu0 0.0
      %2202 = vmatprep.subr.mxu0 0.0
      %2203 = vmatpush1.msra.mxu0 0.0
      %2204 = vmatprep.subr.mxu0 0.0
      %2205 = vmatpush1.msra.mxu0 0.0
      %2206 = vmatprep.subr.mxu0 0.0
      %2207 = vmatpush1.msra.mxu0 0.0
      %2208 = vmatprep.subr.mxu0 0.0
      %2209 = vmatpush1.msra.mxu0 0.0
      %2210 = vmatprep.subr.mxu0 0.0
      %2211 = vmatpush1.msra.mxu0 0.0
      %2212 = vmatprep.subr.mxu0 0.0
      %2213 = vmatpush1.msra.mxu0 0.0
      %2214 = vmatprep.subr.mxu0 0.0
      %2215 = vmatpush1.msra.mxu0 0.0
      %2216 = vmatprep.subr.mxu0 0.0
      %2217 = vmatpush1.msra.mxu0 0.0
      %2218 = vmatprep.subr.mxu0 0.0
      %2219 = vmatpush1.msra.mxu0 0.0
      %2220 = vmatprep.subr.mxu0 0.0
      %2221 = vmatpush1.msra.mxu0 0.0
      %2222 = vmatprep.mubr.f32.mxu0 0.0
      %2223 = vmatmul.mubr.f32.gmra.mrb[0].mxu0 %v2061
      %v2224 = vpop.f32.mrb[0].mxu0
      %v2225 = vadd.f32 %v2136, %v2224
      %v2226 = vpop.f32.mrb[0].mxu0
      %v2227 = vadd.f32 %v2138, %v2226
      %2228 = vmatprep.mubr.f32.mxu0 0.0
      %2229 = vmatmul.mubr.f32.gmra.mrb[0].mxu0 %v2063
      %v2230 = vpop.f32.mrb[0].mxu0
      %v2231 = vadd.f32 %v2142, %v2230
      %v2232 = vpop.f32.mrb[0].mxu0
      %v2233 = vadd.f32 %v2144, %v2232
      %2234 = vmatprep.mubr.f32.mxu0 0.0
      %2235 = vmatmul.mubr.f32.gmra.mrb[0].mxu0 %v2065
      %v2236 = vpop.f32.mrb[0].mxu0
      %v2237 = vadd.f32 %v2148, %v2236
      %v2238 = vpop.f32.mrb[0].mxu0
      %v2239 = vadd.f32 %v2150, %v2238
      %2240 = vmatprep.mubr.f32.mxu0 0.0
      %2241 = vmatmul.mubr.f32.gmra.mrb[0].mxu0 %v2067
      %v2242 = vpop.f32.mrb[0].mxu0
      %v2243 = vadd.f32 %v2154, %v2242
      %v2244 = vpop.f32.mrb[0].mxu0
      %v2245 = vadd.f32 %v2156, %v2244
      %2246 = vdwg.mxu0
      %v2247 = vadd.f32 %v1935, %v2225
      %v2248 = vadd.f32 %v1937, %v2227
      %v2249 = vadd.f32 %v1941, %v2231
      %v2250 = vadd.f32 %v1943, %v2233
      %v2251 = vadd.f32 %v1947, %v2237
      %v2252 = vadd.f32 %v1949, %v2239
      %v2253 = vadd.f32 %v1953, %v2243
      %v2254 = vadd.f32 %v1955, %v2245
      %v2255 = vld [vmem:[%s4] sm:$0x3]
      %v2257 = vlaneseq
      %v2258 = vshrl.u32 %v2257, 7
      %v2259 = vsub.s32 0, %v2258
      %v2260 = vrot.slane %v2255, %v2259
      %v2261 = vlaneseq
      %v2262 = vshrl.u32 %v2261, 7
      %v2263 = vsub.s32 1, %v2262
      %v2264 = vrot.slane %v2255, %v2263
      %v2267 = vadd.f32 %v2247, %v2260
      %v2268 = vadd.f32 %v2248, %v2264
      %v2269 = vadd.f32 %v2249, %v2260
      %v2270 = vadd.f32 %v2250, %v2264
      %v2271 = vadd.f32 %v2251, %v2260
      %v2272 = vadd.f32 %v2252, %v2264
      %v2273 = vadd.f32 %v2253, %v2260
      %v2274 = vadd.f32 %v2254, %v2264
      %v2275 = vmax.f32 %v2267, 0.0
      %v2276 = vmax.f32 %v2268, 0.0
      %v2277 = vmax.f32 %v2269, 0.0
      %v2278 = vmax.f32 %v2270, 0.0
      %v2279 = vmax.f32 %v2271, 0.0
      %v2280 = vmax.f32 %v2272, 0.0
      %v2281 = vmax.f32 %v2273, 0.0
      %v2282 = vmax.f32 %v2274, 0.0
      %2283 = vst [vmem:[%s508] sm:$0xff] %v2275
      %2284 = vst [vmem:[%s508 + $0x8] sm:$0xff] %v2276
      %2285 = vst [vmem:[%s508 + $0x10] sm:$0xff] %v2277
      %2286 = vst [vmem:[%s508 + $0x18] sm:$0xff] %v2278
      %2287 = vst [vmem:[%s508 + $0x20] sm:$0xff] %v2279
      %2288 = vst [vmem:[%s508 + $0x28] sm:$0xff] %v2280
      %2289 = vst [vmem:[%s508 + $0x30] sm:$0xff] %v2281
      %2290 = vst [vmem:[%s508 + $0x38] sm:$0xff] %v2282
      %2295 = vrot.lane.b32.xlu0 %v2275, 112
      %v2296 = vpop.permute.xlu0 %2295
      %2297 = vrot.lane.b32.xlu0 %v2277, 112
      %v2298 = vpop.permute.xlu0 %2297
      %2299 = vrot.lane.b32.xlu0 %v2279, 112
      %v2300 = vpop.permute.xlu0 %2299
      %2301 = vrot.lane.b32.xlu0 %v2281, 112
      %v2302 = vpop.permute.xlu0 %2301
      %2307 = vrot.lane.b32.xlu0 %v2275, 96
      %v2308 = vpop.permute.xlu0 %2307
      %2309 = vrot.lane.b32.xlu0 %v2277, 96
      %v2310 = vpop.permute.xlu0 %2309
      %2311 = vrot.lane.b32.xlu0 %v2279, 96
      %v2312 = vpop.permute.xlu0 %2311
      %2313 = vrot.lane.b32.xlu0 %v2281, 96
      %v2314 = vpop.permute.xlu0 %2313
      %2319 = vrot.lane.b32.xlu0 %v2275, 80
      %v2320 = vpop.permute.xlu0 %2319
      %2321 = vrot.lane.b32.xlu0 %v2277, 80
      %v2322 = vpop.permute.xlu0 %2321
      %2323 = vrot.lane.b32.xlu0 %v2279, 80
      %v2324 = vpop.permute.xlu0 %2323
      %2325 = vrot.lane.b32.xlu0 %v2281, 80
      %v2326 = vpop.permute.xlu0 %2325
      %2331 = vrot.lane.b32.xlu0 %v2275, 64
      %v2332 = vpop.permute.xlu0 %2331
      %2333 = vrot.lane.b32.xlu0 %v2277, 64
      %v2334 = vpop.permute.xlu0 %2333
      %2335 = vrot.lane.b32.xlu0 %v2279, 64
      %v2336 = vpop.permute.xlu0 %2335
      %2337 = vrot.lane.b32.xlu0 %v2281, 64
      %v2338 = vpop.permute.xlu0 %2337
      %2343 = vrot.lane.b32.xlu0 %v2275, 48
      %v2344 = vpop.permute.xlu0 %2343
      %2345 = vrot.lane.b32.xlu0 %v2277, 48
      %v2346 = vpop.permute.xlu0 %2345
      %2347 = vrot.lane.b32.xlu0 %v2279, 48
      %v2348 = vpop.permute.xlu0 %2347
      %2349 = vrot.lane.b32.xlu0 %v2281, 48
      %v2350 = vpop.permute.xlu0 %2349
      %2355 = vrot.lane.b32.xlu0 %v2275, 32
      %v2356 = vpop.permute.xlu0 %2355
      %2357 = vrot.lane.b32.xlu0 %v2277, 32
      %v2358 = vpop.permute.xlu0 %2357
      %2359 = vrot.lane.b32.xlu0 %v2279, 32
      %v2360 = vpop.permute.xlu0 %2359
      %2361 = vrot.lane.b32.xlu0 %v2281, 32
      %v2362 = vpop.permute.xlu0 %2361
      %2367 = vrot.lane.b32.xlu0 %v2275, 16
      %v2368 = vpop.permute.xlu0 %2367
      %2369 = vrot.lane.b32.xlu0 %v2277, 16
      %v2370 = vpop.permute.xlu0 %2369
      %2371 = vrot.lane.b32.xlu0 %v2279, 16
      %v2372 = vpop.permute.xlu0 %2371
      %2373 = vrot.lane.b32.xlu0 %v2281, 16
      %v2374 = vpop.permute.xlu0 %2373
      %2383 = vrot.lane.b32.xlu0 %v2276, 112
      %v2384 = vpop.permute.xlu0 %2383
      %2385 = vrot.lane.b32.xlu0 %v2278, 112
      %v2386 = vpop.permute.xlu0 %2385
      %2387 = vrot.lane.b32.xlu0 %v2280, 112
      %v2388 = vpop.permute.xlu0 %2387
      %2389 = vrot.lane.b32.xlu0 %v2282, 112
      %v2390 = vpop.permute.xlu0 %2389
      %2395 = vrot.lane.b32.xlu0 %v2276, 96
      %v2396 = vpop.permute.xlu0 %2395
      %2397 = vrot.lane.b32.xlu0 %v2278, 96
      %v2398 = vpop.permute.xlu0 %2397
      %2399 = vrot.lane.b32.xlu0 %v2280, 96
      %v2400 = vpop.permute.xlu0 %2399
      %2401 = vrot.lane.b32.xlu0 %v2282, 96
      %v2402 = vpop.permute.xlu0 %2401
      %2407 = vrot.lane.b32.xlu0 %v2276, 80
      %v2408 = vpop.permute.xlu0 %2407
      %2409 = vrot.lane.b32.xlu0 %v2278, 80
      %v2410 = vpop.permute.xlu0 %2409
      %2411 = vrot.lane.b32.xlu0 %v2280, 80
      %v2412 = vpop.permute.xlu0 %2411
      %2413 = vrot.lane.b32.xlu0 %v2282, 80
      %v2414 = vpop.permute.xlu0 %2413
      %2419 = vrot.lane.b32.xlu0 %v2276, 64
      %v2420 = vpop.permute.xlu0 %2419
      %2421 = vrot.lane.b32.xlu0 %v2278, 64
      %v2422 = vpop.permute.xlu0 %2421
      %2423 = vrot.lane.b32.xlu0 %v2280, 64
      %v2424 = vpop.permute.xlu0 %2423
      %2425 = vrot.lane.b32.xlu0 %v2282, 64
      %v2426 = vpop.permute.xlu0 %2425
      %2431 = vrot.lane.b32.xlu0 %v2276, 48
      %v2432 = vpop.permute.xlu0 %2431
      %2433 = vrot.lane.b32.xlu0 %v2278, 48
      %v2434 = vpop.permute.xlu0 %2433
      %2435 = vrot.lane.b32.xlu0 %v2280, 48
      %v2436 = vpop.permute.xlu0 %2435
      %2437 = vrot.lane.b32.xlu0 %v2282, 48
      %v2438 = vpop.permute.xlu0 %2437
      %2443 = vrot.lane.b32.xlu0 %v2276, 32
      %v2444 = vpop.permute.xlu0 %2443
      %2445 = vrot.lane.b32.xlu0 %v2278, 32
      %v2446 = vpop.permute.xlu0 %2445
      %2447 = vrot.lane.b32.xlu0 %v2280, 32
      %v2448 = vpop.permute.xlu0 %2447
      %2449 = vrot.lane.b32.xlu0 %v2282, 32
      %v2450 = vpop.permute.xlu0 %2449
      %2455 = vrot.lane.b32.xlu0 %v2276, 16
      %v2456 = vpop.permute.xlu0 %2455
      %2457 = vrot.lane.b32.xlu0 %v2278, 16
      %v2458 = vpop.permute.xlu0 %2457
      %2459 = vrot.lane.b32.xlu0 %v2280, 16
      %v2460 = vpop.permute.xlu0 %2459
      %2461 = vrot.lane.b32.xlu0 %v2282, 16
      %v2462 = vpop.permute.xlu0 %2461
      %v2467 = vcombine.low %v2275, %v2308
      %v2468 = vcombine.high %v2275, %v2308
      %v2470 = vunpack.c.l.s4 1983009808
      %v2471 = vunpack.c.0.s8 %v2470
      %v2472 = vlaneseq
      %v2473 = vshrl.u32 %v2472, 7
      %v2474 = vsub.s32 %v2471, %v2473
      %v2475 = vrot.slane %v2467, %v2474
      %v2477 = vunpack.c.l.s4 1983009808
      %v2478 = vunpack.c.0.s8 %v2477
      %v2479 = vlaneseq
      %v2480 = vshrl.u32 %v2479, 7
      %v2481 = vsub.s32 %v2478, %v2480
      %v2482 = vrot.slane %v2468, %v2481
      %v2483 = vcombine.low %v2296, %v2320
      %v2484 = vcombine.high %v2296, %v2320
      %v2486 = vunpack.c.l.s4 1983009808
      %v2487 = vunpack.c.0.s8 %v2486
      %v2488 = vlaneseq
      %v2489 = vshrl.u32 %v2488, 7
      %v2490 = vsub.s32 %v2487, %v2489
      %v2491 = vrot.slane %v2483, %v2490
      %v2493 = vunpack.c.l.s4 1983009808
      %v2494 = vunpack.c.0.s8 %v2493
      %v2495 = vlaneseq
      %v2496 = vshrl.u32 %v2495, 7
      %v2497 = vsub.s32 %v2494, %v2496
      %v2498 = vrot.slane %v2484, %v2497
      %v2499 = vcombine.low %v2332, %v2356
      %v2500 = vcombine.high %v2332, %v2356
      %v2502 = vunpack.c.l.s4 1983009808
      %v2503 = vunpack.c.0.s8 %v2502
      %v2504 = vlaneseq
      %v2505 = vshrl.u32 %v2504, 7
      %v2506 = vsub.s32 %v2503, %v2505
      %v2507 = vrot.slane %v2499, %v2506
      %v2509 = vunpack.c.l.s4 1983009808
      %v2510 = vunpack.c.0.s8 %v2509
      %v2511 = vlaneseq
      %v2512 = vshrl.u32 %v2511, 7
      %v2513 = vsub.s32 %v2510, %v2512
      %v2514 = vrot.slane %v2500, %v2513
      %v2515 = vcombine.low %v2344, %v2368
      %v2516 = vcombine.high %v2344, %v2368
      %v2518 = vunpack.c.l.s4 1983009808
      %v2519 = vunpack.c.0.s8 %v2518
      %v2520 = vlaneseq
      %v2521 = vshrl.u32 %v2520, 7
      %v2522 = vsub.s32 %v2519, %v2521
      %v2523 = vrot.slane %v2515, %v2522
      %v2525 = vunpack.c.l.s4 1983009808
      %v2526 = vunpack.c.0.s8 %v2525
      %v2527 = vlaneseq
      %v2528 = vshrl.u32 %v2527, 7
      %v2529 = vsub.s32 %v2526, %v2528
      %v2530 = vrot.slane %v2516, %v2529
      %v2531 = vcombine.low %v2475, %v2491
      %v2532 = vcombine.high %v2475, %v2491
      %v2534 = vunpack.c.l.s4 1934713408
      %v2535 = vunpack.c.0.s8 %v2534
      %v2536 = vlaneseq
      %v2537 = vshrl.u32 %v2536, 7
      %v2538 = vsub.s32 %v2535, %v2537
      %v2539 = vrot.slane %v2531, %v2538
      %v2541 = vunpack.c.l.s4 1934713408
      %v2542 = vunpack.c.0.s8 %v2541
      %v2543 = vlaneseq
      %v2544 = vshrl.u32 %v2543, 7
      %v2545 = vsub.s32 %v2542, %v2544
      %v2546 = vrot.slane %v2532, %v2545
      %v2547 = vcombine.low %v2482, %v2498
      %v2548 = vcombine.high %v2482, %v2498
      %v2550 = vunpack.c.l.s4 1934713408
      %v2551 = vunpack.c.0.s8 %v2550
      %v2552 = vlaneseq
      %v2553 = vshrl.u32 %v2552, 7
      %v2554 = vsub.s32 %v2551, %v2553
      %v2555 = vrot.slane %v2547, %v2554
      %v2557 = vunpack.c.l.s4 1934713408
      %v2558 = vunpack.c.0.s8 %v2557
      %v2559 = vlaneseq
      %v2560 = vshrl.u32 %v2559, 7
      %v2561 = vsub.s32 %v2558, %v2560
      %v2562 = vrot.slane %v2548, %v2561
      %v2563 = vcombine.low %v2507, %v2523
      %v2564 = vcombine.high %v2507, %v2523
      %v2566 = vunpack.c.l.s4 1934713408
      %v2567 = vunpack.c.0.s8 %v2566
      %v2568 = vlaneseq
      %v2569 = vshrl.u32 %v2568, 7
      %v2570 = vsub.s32 %v2567, %v2569
      %v2571 = vrot.slane %v2563, %v2570
      %v2573 = vunpack.c.l.s4 1934713408
      %v2574 = vunpack.c.0.s8 %v2573
      %v2575 = vlaneseq
      %v2576 = vshrl.u32 %v2575, 7
      %v2577 = vsub.s32 %v2574, %v2576
      %v2578 = vrot.slane %v2564, %v2577
      %v2579 = vcombine.low %v2514, %v2530
      %v2580 = vcombine.high %v2514, %v2530
      %v2582 = vunpack.c.l.s4 1934713408
      %v2583 = vunpack.c.0.s8 %v2582
      %v2584 = vlaneseq
      %v2585 = vshrl.u32 %v2584, 7
      %v2586 = vsub.s32 %v2583, %v2585
      %v2587 = vrot.slane %v2579, %v2586
      %v2589 = vunpack.c.l.s4 1934713408
      %v2590 = vunpack.c.0.s8 %v2589
      %v2591 = vlaneseq
      %v2592 = vshrl.u32 %v2591, 7
      %v2593 = vsub.s32 %v2590, %v2592
      %v2594 = vrot.slane %v2580, %v2593
      %v2595 = vcombine.low %v2539, %v2571
      %v2596 = vcombine.high %v2539, %v2571
      %v2597 = vcombine.low %v2546, %v2578
      %v2598 = vcombine.high %v2546, %v2578
      %v2599 = vcombine.low %v2555, %v2587
      %v2600 = vcombine.high %v2555, %v2587
      %v2601 = vcombine.low %v2562, %v2594
      %v2602 = vcombine.high %v2562, %v2594
      %v2603 = vcombine.low %v2276, %v2396
      %v2604 = vcombine.high %v2276, %v2396
      %v2606 = vunpack.c.l.s4 1983009808
      %v2607 = vunpack.c.0.s8 %v2606
      %v2608 = vlaneseq
      %v2609 = vshrl.u32 %v2608, 7
      %v2610 = vsub.s32 %v2607, %v2609
      %v2611 = vrot.slane %v2603, %v2610
      %v2613 = vunpack.c.l.s4 1983009808
      %v2614 = vunpack.c.0.s8 %v2613
      %v2615 = vlaneseq
      %v2616 = vshrl.u32 %v2615, 7
      %v2617 = vsub.s32 %v2614, %v2616
      %v2618 = vrot.slane %v2604, %v2617
      %v2619 = vcombine.low %v2384, %v2408
      %v2620 = vcombine.high %v2384, %v2408
      %v2622 = vunpack.c.l.s4 1983009808
      %v2623 = vunpack.c.0.s8 %v2622
      %v2624 = vlaneseq
      %v2625 = vshrl.u32 %v2624, 7
      %v2626 = vsub.s32 %v2623, %v2625
      %v2627 = vrot.slane %v2619, %v2626
      %v2629 = vunpack.c.l.s4 1983009808
      %v2630 = vunpack.c.0.s8 %v2629
      %v2631 = vlaneseq
      %v2632 = vshrl.u32 %v2631, 7
      %v2633 = vsub.s32 %v2630, %v2632
      %v2634 = vrot.slane %v2620, %v2633
      %v2635 = vcombine.low %v2420, %v2444
      %v2636 = vcombine.high %v2420, %v2444
      %v2638 = vunpack.c.l.s4 1983009808
      %v2639 = vunpack.c.0.s8 %v2638
      %v2640 = vlaneseq
      %v2641 = vshrl.u32 %v2640, 7
      %v2642 = vsub.s32 %v2639, %v2641
      %v2643 = vrot.slane %v2635, %v2642
      %v2645 = vunpack.c.l.s4 1983009808
      %v2646 = vunpack.c.0.s8 %v2645
      %v2647 = vlaneseq
      %v2648 = vshrl.u32 %v2647, 7
      %v2649 = vsub.s32 %v2646, %v2648
      %v2650 = vrot.slane %v2636, %v2649
      %v2651 = vcombine.low %v2432, %v2456
      %v2652 = vcombine.high %v2432, %v2456
      %v2654 = vunpack.c.l.s4 1983009808
      %v2655 = vunpack.c.0.s8 %v2654
      %v2656 = vlaneseq
      %v2657 = vshrl.u32 %v2656, 7
      %v2658 = vsub.s32 %v2655, %v2657
      %v2659 = vrot.slane %v2651, %v2658
      %v2661 = vunpack.c.l.s4 1983009808
      %v2662 = vunpack.c.0.s8 %v2661
      %v2663 = vlaneseq
      %v2664 = vshrl.u32 %v2663, 7
      %v2665 = vsub.s32 %v2662, %v2664
      %v2666 = vrot.slane %v2652, %v2665
      %v2667 = vcombine.low %v2611, %v2627
      %v2668 = vcombine.high %v2611, %v2627
      %v2670 = vunpack.c.l.s4 1934713408
      %v2671 = vunpack.c.0.s8 %v2670
      %v2672 = vlaneseq
      %v2673 = vshrl.u32 %v2672, 7
      %v2674 = vsub.s32 %v2671, %v2673
      %v2675 = vrot.slane %v2667, %v2674
      %v2677 = vunpack.c.l.s4 1934713408
      %v2678 = vunpack.c.0.s8 %v2677
      %v2679 = vlaneseq
      %v2680 = vshrl.u32 %v2679, 7
      %v2681 = vsub.s32 %v2678, %v2680
      %v2682 = vrot.slane %v2668, %v2681
      %v2683 = vcombine.low %v2618, %v2634
      %v2684 = vcombine.high %v2618, %v2634
      %v2686 = vunpack.c.l.s4 1934713408
      %v2687 = vunpack.c.0.s8 %v2686
      %v2688 = vlaneseq
      %v2689 = vshrl.u32 %v2688, 7
      %v2690 = vsub.s32 %v2687, %v2689
      %v2691 = vrot.slane %v2683, %v2690
      %v2693 = vunpack.c.l.s4 1934713408
      %v2694 = vunpack.c.0.s8 %v2693
      %v2695 = vlaneseq
      %v2696 = vshrl.u32 %v2695, 7
      %v2697 = vsub.s32 %v2694, %v2696
      %v2698 = vrot.slane %v2684, %v2697
      %v2699 = vcombine.low %v2643, %v2659
      %v2700 = vcombine.high %v2643, %v2659
      %v2702 = vunpack.c.l.s4 1934713408
      %v2703 = vunpack.c.0.s8 %v2702
      %v2704 = vlaneseq
      %v2705 = vshrl.u32 %v2704, 7
      %v2706 = vsub.s32 %v2703, %v2705
      %v2707 = vrot.slane %v2699, %v2706
      %v2709 = vunpack.c.l.s4 1934713408
      %v2710 = vunpack.c.0.s8 %v2709
      %v2711 = vlaneseq
      %v2712 = vshrl.u32 %v2711, 7
      %v2713 = vsub.s32 %v2710, %v2712
      %v2714 = vrot.slane %v2700, %v2713
      %v2715 = vcombine.low %v2650, %v2666
      %v2716 = vcombine.high %v2650, %v2666
      %v2718 = vunpack.c.l.s4 1934713408
      %v2719 = vunpack.c.0.s8 %v2718
      %v2720 = vlaneseq
      %v2721 = vshrl.u32 %v2720, 7
      %v2722 = vsub.s32 %v2719, %v2721
      %v2723 = vrot.slane %v2715, %v2722
      %v2725 = vunpack.c.l.s4 1934713408
      %v2726 = vunpack.c.0.s8 %v2725
      %v2727 = vlaneseq
      %v2728 = vshrl.u32 %v2727, 7
      %v2729 = vsub.s32 %v2726, %v2728
      %v2730 = vrot.slane %v2716, %v2729
      %v2731 = vcombine.low %v2675, %v2707
      %v2732 = vcombine.high %v2675, %v2707
      %v2733 = vcombine.low %v2682, %v2714
      %v2734 = vcombine.high %v2682, %v2714
      %v2735 = vcombine.low %v2691, %v2723
      %v2736 = vcombine.high %v2691, %v2723
      %v2737 = vcombine.low %v2698, %v2730
      %v2738 = vcombine.high %v2698, %v2730
      %v2739 = vcombine.low %v2277, %v2310
      %v2740 = vcombine.high %v2277, %v2310
      %v2742 = vunpack.c.l.s4 1983009808
      %v2743 = vunpack.c.0.s8 %v2742
      %v2744 = vlaneseq
      %v2745 = vshrl.u32 %v2744, 7
      %v2746 = vsub.s32 %v2743, %v2745
      %v2747 = vrot.slane %v2739, %v2746
      %v2749 = vunpack.c.l.s4 1983009808
      %v2750 = vunpack.c.0.s8 %v2749
      %v2751 = vlaneseq
      %v2752 = vshrl.u32 %v2751, 7
      %v2753 = vsub.s32 %v2750, %v2752
      %v2754 = vrot.slane %v2740, %v2753
      %v2755 = vcombine.low %v2298, %v2322
      %v2756 = vcombine.high %v2298, %v2322
      %v2758 = vunpack.c.l.s4 1983009808
      %v2759 = vunpack.c.0.s8 %v2758
      %v2760 = vlaneseq
      %v2761 = vshrl.u32 %v2760, 7
      %v2762 = vsub.s32 %v2759, %v2761
      %v2763 = vrot.slane %v2755, %v2762
      %v2765 = vunpack.c.l.s4 1983009808
      %v2766 = vunpack.c.0.s8 %v2765
      %v2767 = vlaneseq
      %v2768 = vshrl.u32 %v2767, 7
      %v2769 = vsub.s32 %v2766, %v2768
      %v2770 = vrot.slane %v2756, %v2769
      %v2771 = vcombine.low %v2334, %v2358
      %v2772 = vcombine.high %v2334, %v2358
      %v2774 = vunpack.c.l.s4 1983009808
      %v2775 = vunpack.c.0.s8 %v2774
      %v2776 = vlaneseq
      %v2777 = vshrl.u32 %v2776, 7
      %v2778 = vsub.s32 %v2775, %v2777
      %v2779 = vrot.slane %v2771, %v2778
      %v2781 = vunpack.c.l.s4 1983009808
      %v2782 = vunpack.c.0.s8 %v2781
      %v2783 = vlaneseq
      %v2784 = vshrl.u32 %v2783, 7
      %v2785 = vsub.s32 %v2782, %v2784
      %v2786 = vrot.slane %v2772, %v2785
      %v2787 = vcombine.low %v2346, %v2370
      %v2788 = vcombine.high %v2346, %v2370
      %v2790 = vunpack.c.l.s4 1983009808
      %v2791 = vunpack.c.0.s8 %v2790
      %v2792 = vlaneseq
      %v2793 = vshrl.u32 %v2792, 7
      %v2794 = vsub.s32 %v2791, %v2793
      %v2795 = vrot.slane %v2787, %v2794
      %v2797 = vunpack.c.l.s4 1983009808
      %v2798 = vunpack.c.0.s8 %v2797
      %v2799 = vlaneseq
      %v2800 = vshrl.u32 %v2799, 7
      %v2801 = vsub.s32 %v2798, %v2800
      %v2802 = vrot.slane %v2788, %v2801
      %v2803 = vcombine.low %v2747, %v2763
      %v2804 = vcombine.high %v2747, %v2763
      %v2806 = vunpack.c.l.s4 1934713408
      %v2807 = vunpack.c.0.s8 %v2806
      %v2808 = vlaneseq
      %v2809 = vshrl.u32 %v2808, 7
      %v2810 = vsub.s32 %v2807, %v2809
      %v2811 = vrot.slane %v2803, %v2810
      %v2813 = vunpack.c.l.s4 1934713408
      %v2814 = vunpack.c.0.s8 %v2813
      %v2815 = vlaneseq
      %v2816 = vshrl.u32 %v2815, 7
      %v2817 = vsub.s32 %v2814, %v2816
      %v2818 = vrot.slane %v2804, %v2817
      %v2819 = vcombine.low %v2754, %v2770
      %v2820 = vcombine.high %v2754, %v2770
      %v2822 = vunpack.c.l.s4 1934713408
      %v2823 = vunpack.c.0.s8 %v2822
      %v2824 = vlaneseq
      %v2825 = vshrl.u32 %v2824, 7
      %v2826 = vsub.s32 %v2823, %v2825
      %v2827 = vrot.slane %v2819, %v2826
      %v2829 = vunpack.c.l.s4 1934713408
      %v2830 = vunpack.c.0.s8 %v2829
      %v2831 = vlaneseq
      %v2832 = vshrl.u32 %v2831, 7
      %v2833 = vsub.s32 %v2830, %v2832
      %v2834 = vrot.slane %v2820, %v2833
      %v2835 = vcombine.low %v2779, %v2795
      %v2836 = vcombine.high %v2779, %v2795
      %v2838 = vunpack.c.l.s4 1934713408
      %v2839 = vunpack.c.0.s8 %v2838
      %v2840 = vlaneseq
      %v2841 = vshrl.u32 %v2840, 7
      %v2842 = vsub.s32 %v2839, %v2841
      %v2843 = vrot.slane %v2835, %v2842
      %v2845 = vunpack.c.l.s4 1934713408
      %v2846 = vunpack.c.0.s8 %v2845
      %v2847 = vlaneseq
      %v2848 = vshrl.u32 %v2847, 7
      %v2849 = vsub.s32 %v2846, %v2848
      %v2850 = vrot.slane %v2836, %v2849
      %v2851 = vcombine.low %v2786, %v2802
      %v2852 = vcombine.high %v2786, %v2802
      %v2854 = vunpack.c.l.s4 1934713408
      %v2855 = vunpack.c.0.s8 %v2854
      %v2856 = vlaneseq
      %v2857 = vshrl.u32 %v2856, 7
      %v2858 = vsub.s32 %v2855, %v2857
      %v2859 = vrot.slane %v2851, %v2858
      %v2861 = vunpack.c.l.s4 1934713408
      %v2862 = vunpack.c.0.s8 %v2861
      %v2863 = vlaneseq
      %v2864 = vshrl.u32 %v2863, 7
      %v2865 = vsub.s32 %v2862, %v2864
      %v2866 = vrot.slane %v2852, %v2865
      %v2867 = vcombine.low %v2811, %v2843
      %v2868 = vcombine.high %v2811, %v2843
      %v2869 = vcombine.low %v2818, %v2850
      %v2870 = vcombine.high %v2818, %v2850
      %v2871 = vcombine.low %v2827, %v2859
      %v2872 = vcombine.high %v2827, %v2859
      %v2873 = vcombine.low %v2834, %v2866
      %v2874 = vcombine.high %v2834, %v2866
      %v2875 = vcombine.low %v2278, %v2398
      %v2876 = vcombine.high %v2278, %v2398
      %v2878 = vunpack.c.l.s4 1983009808
      %v2879 = vunpack.c.0.s8 %v2878
      %v2880 = vlaneseq
      %v2881 = vshrl.u32 %v2880, 7
      %v2882 = vsub.s32 %v2879, %v2881
      %v2883 = vrot.slane %v2875, %v2882
      %v2885 = vunpack.c.l.s4 1983009808
      %v2886 = vunpack.c.0.s8 %v2885
      %v2887 = vlaneseq
      %v2888 = vshrl.u32 %v2887, 7
      %v2889 = vsub.s32 %v2886, %v2888
      %v2890 = vrot.slane %v2876, %v2889
      %v2891 = vcombine.low %v2386, %v2410
      %v2892 = vcombine.high %v2386, %v2410
      %v2894 = vunpack.c.l.s4 1983009808
      %v2895 = vunpack.c.0.s8 %v2894
      %v2896 = vlaneseq
      %v2897 = vshrl.u32 %v2896, 7
      %v2898 = vsub.s32 %v2895, %v2897
      %v2899 = vrot.slane %v2891, %v2898
      %v2901 = vunpack.c.l.s4 1983009808
      %v2902 = vunpack.c.0.s8 %v2901
      %v2903 = vlaneseq
      %v2904 = vshrl.u32 %v2903, 7
      %v2905 = vsub.s32 %v2902, %v2904
      %v2906 = vrot.slane %v2892, %v2905
      %v2907 = vcombine.low %v2422, %v2446
      %v2908 = vcombine.high %v2422, %v2446
      %v2910 = vunpack.c.l.s4 1983009808
      %v2911 = vunpack.c.0.s8 %v2910
      %v2912 = vlaneseq
      %v2913 = vshrl.u32 %v2912, 7
      %v2914 = vsub.s32 %v2911, %v2913
      %v2915 = vrot.slane %v2907, %v2914
      %v2917 = vunpack.c.l.s4 1983009808
      %v2918 = vunpack.c.0.s8 %v2917
      %v2919 = vlaneseq
      %v2920 = vshrl.u32 %v2919, 7
      %v2921 = vsub.s32 %v2918, %v2920
      %v2922 = vrot.slane %v2908, %v2921
      %v2923 = vcombine.low %v2434, %v2458
      %v2924 = vcombine.high %v2434, %v2458
      %v2926 = vunpack.c.l.s4 1983009808
      %v2927 = vunpack.c.0.s8 %v2926
      %v2928 = vlaneseq
      %v2929 = vshrl.u32 %v2928, 7
      %v2930 = vsub.s32 %v2927, %v2929
      %v2931 = vrot.slane %v2923, %v2930
      %v2933 = vunpack.c.l.s4 1983009808
      %v2934 = vunpack.c.0.s8 %v2933
      %v2935 = vlaneseq
      %v2936 = vshrl.u32 %v2935, 7
      %v2937 = vsub.s32 %v2934, %v2936
      %v2938 = vrot.slane %v2924, %v2937
      %v2939 = vcombine.low %v2883, %v2899
      %v2940 = vcombine.high %v2883, %v2899
      %v2942 = vunpack.c.l.s4 1934713408
      %v2943 = vunpack.c.0.s8 %v2942
      %v2944 = vlaneseq
      %v2945 = vshrl.u32 %v2944, 7
      %v2946 = vsub.s32 %v2943, %v2945
      %v2947 = vrot.slane %v2939, %v2946
      %v2949 = vunpack.c.l.s4 1934713408
      %v2950 = vunpack.c.0.s8 %v2949
      %v2951 = vlaneseq
      %v2952 = vshrl.u32 %v2951, 7
      %v2953 = vsub.s32 %v2950, %v2952
      %v2954 = vrot.slane %v2940, %v2953
      %v2955 = vcombine.low %v2890, %v2906
      %v2956 = vcombine.high %v2890, %v2906
      %v2958 = vunpack.c.l.s4 1934713408
      %v2959 = vunpack.c.0.s8 %v2958
      %v2960 = vlaneseq
      %v2961 = vshrl.u32 %v2960, 7
      %v2962 = vsub.s32 %v2959, %v2961
      %v2963 = vrot.slane %v2955, %v2962
      %v2965 = vunpack.c.l.s4 1934713408
      %v2966 = vunpack.c.0.s8 %v2965
      %v2967 = vlaneseq
      %v2968 = vshrl.u32 %v2967, 7
      %v2969 = vsub.s32 %v2966, %v2968
      %v2970 = vrot.slane %v2956, %v2969
      %v2971 = vcombine.low %v2915, %v2931
      %v2972 = vcombine.high %v2915, %v2931
      %v2974 = vunpack.c.l.s4 1934713408
      %v2975 = vunpack.c.0.s8 %v2974
      %v2976 = vlaneseq
      %v2977 = vshrl.u32 %v2976, 7
      %v2978 = vsub.s32 %v2975, %v2977
      %v2979 = vrot.slane %v2971, %v2978
      %v2981 = vunpack.c.l.s4 1934713408
      %v2982 = vunpack.c.0.s8 %v2981
      %v2983 = vlaneseq
      %v2984 = vshrl.u32 %v2983, 7
      %v2985 = vsub.s32 %v2982, %v2984
      %v2986 = vrot.slane %v2972, %v2985
      %v2987 = vcombine.low %v2922, %v2938
      %v2988 = vcombine.high %v2922, %v2938
      %v2990 = vunpack.c.l.s4 1934713408
      %v2991 = vunpack.c.0.s8 %v2990
      %v2992 = vlaneseq
      %v2993 = vshrl.u32 %v2992, 7
      %v2994 = vsub.s32 %v2991, %v2993
      %v2995 = vrot.slane %v2987, %v2994
      %v2997 = vunpack.c.l.s4 1934713408
      %v2998 = vunpack.c.0.s8 %v2997
      %v2999 = vlaneseq
      %v3000 = vshrl.u32 %v2999, 7
      %v3001 = vsub.s32 %v2998, %v3000
      %v3002 = vrot.slane %v2988, %v3001
      %v3003 = vcombine.low %v2947, %v2979
      %v3004 = vcombine.high %v2947, %v2979
      %v3005 = vcombine.low %v2954, %v2986
      %v3006 = vcombine.high %v2954, %v2986
      %v3007 = vcombine.low %v2963, %v2995
      %v3008 = vcombine.high %v2963, %v2995
      %v3009 = vcombine.low %v2970, %v3002
      %v3010 = vcombine.high %v2970, %v3002
      %v3011 = vcombine.low %v2279, %v2312
      %v3012 = vcombine.high %v2279, %v2312
      %v3014 = vunpack.c.l.s4 1983009808
      %v3015 = vunpack.c.0.s8 %v3014
      %v3016 = vlaneseq
      %v3017 = vshrl.u32 %v3016, 7
      %v3018 = vsub.s32 %v3015, %v3017
      %v3019 = vrot.slane %v3011, %v3018
      %v3021 = vunpack.c.l.s4 1983009808
      %v3022 = vunpack.c.0.s8 %v3021
      %v3023 = vlaneseq
      %v3024 = vshrl.u32 %v3023, 7
      %v3025 = vsub.s32 %v3022, %v3024
      %v3026 = vrot.slane %v3012, %v3025
      %v3027 = vcombine.low %v2300, %v2324
      %v3028 = vcombine.high %v2300, %v2324
      %v3030 = vunpack.c.l.s4 1983009808
      %v3031 = vunpack.c.0.s8 %v3030
      %v3032 = vlaneseq
      %v3033 = vshrl.u32 %v3032, 7
      %v3034 = vsub.s32 %v3031, %v3033
      %v3035 = vrot.slane %v3027, %v3034
      %v3037 = vunpack.c.l.s4 1983009808
      %v3038 = vunpack.c.0.s8 %v3037
      %v3039 = vlaneseq
      %v3040 = vshrl.u32 %v3039, 7
      %v3041 = vsub.s32 %v3038, %v3040
      %v3042 = vrot.slane %v3028, %v3041
      %v3043 = vcombine.low %v2336, %v2360
      %v3044 = vcombine.high %v2336, %v2360
      %v3046 = vunpack.c.l.s4 1983009808
      %v3047 = vunpack.c.0.s8 %v3046
      %v3048 = vlaneseq
      %v3049 = vshrl.u32 %v3048, 7
      %v3050 = vsub.s32 %v3047, %v3049
      %v3051 = vrot.slane %v3043, %v3050
      %v3053 = vunpack.c.l.s4 1983009808
      %v3054 = vunpack.c.0.s8 %v3053
      %v3055 = vlaneseq
      %v3056 = vshrl.u32 %v3055, 7
      %v3057 = vsub.s32 %v3054, %v3056
      %v3058 = vrot.slane %v3044, %v3057
      %v3059 = vcombine.low %v2348, %v2372
      %v3060 = vcombine.high %v2348, %v2372
      %v3062 = vunpack.c.l.s4 1983009808
      %v3063 = vunpack.c.0.s8 %v3062
      %v3064 = vlaneseq
      %v3065 = vshrl.u32 %v3064, 7
      %v3066 = vsub.s32 %v3063, %v3065
      %v3067 = vrot.slane %v3059, %v3066
      %v3069 = vunpack.c.l.s4 1983009808
      %v3070 = vunpack.c.0.s8 %v3069
      %v3071 = vlaneseq
      %v3072 = vshrl.u32 %v3071, 7
      %v3073 = vsub.s32 %v3070, %v3072
      %v3074 = vrot.slane %v3060, %v3073
      %v3075 = vcombine.low %v3019, %v3035
      %v3076 = vcombine.high %v3019, %v3035
      %v3078 = vunpack.c.l.s4 1934713408
      %v3079 = vunpack.c.0.s8 %v3078
      %v3080 = vlaneseq
      %v3081 = vshrl.u32 %v3080, 7
      %v3082 = vsub.s32 %v3079, %v3081
      %v3083 = vrot.slane %v3075, %v3082
      %v3085 = vunpack.c.l.s4 1934713408
      %v3086 = vunpack.c.0.s8 %v3085
      %v3087 = vlaneseq
      %v3088 = vshrl.u32 %v3087, 7
      %v3089 = vsub.s32 %v3086, %v3088
      %v3090 = vrot.slane %v3076, %v3089
      %v3091 = vcombine.low %v3026, %v3042
      %v3092 = vcombine.high %v3026, %v3042
      %v3094 = vunpack.c.l.s4 1934713408
      %v3095 = vunpack.c.0.s8 %v3094
      %v3096 = vlaneseq
      %v3097 = vshrl.u32 %v3096, 7
      %v3098 = vsub.s32 %v3095, %v3097
      %v3099 = vrot.slane %v3091, %v3098
      %v3101 = vunpack.c.l.s4 1934713408
      %v3102 = vunpack.c.0.s8 %v3101
      %v3103 = vlaneseq
      %v3104 = vshrl.u32 %v3103, 7
      %v3105 = vsub.s32 %v3102, %v3104
      %v3106 = vrot.slane %v3092, %v3105
      %v3107 = vcombine.low %v3051, %v3067
      %v3108 = vcombine.high %v3051, %v3067
      %v3110 = vunpack.c.l.s4 1934713408
      %v3111 = vunpack.c.0.s8 %v3110
      %v3112 = vlaneseq
      %v3113 = vshrl.u32 %v3112, 7
      %v3114 = vsub.s32 %v3111, %v3113
      %v3115 = vrot.slane %v3107, %v3114
      %v3117 = vunpack.c.l.s4 1934713408
      %v3118 = vunpack.c.0.s8 %v3117
      %v3119 = vlaneseq
      %v3120 = vshrl.u32 %v3119, 7
      %v3121 = vsub.s32 %v3118, %v3120
      %v3122 = vrot.slane %v3108, %v3121
      %v3123 = vcombine.low %v3058, %v3074
      %v3124 = vcombine.high %v3058, %v3074
      %v3126 = vunpack.c.l.s4 1934713408
      %v3127 = vunpack.c.0.s8 %v3126
      %v3128 = vlaneseq
      %v3129 = vshrl.u32 %v3128, 7
      %v3130 = vsub.s32 %v3127, %v3129
      %v3131 = vrot.slane %v3123, %v3130
      %v3133 = vunpack.c.l.s4 1934713408
      %v3134 = vunpack.c.0.s8 %v3133
      %v3135 = vlaneseq
      %v3136 = vshrl.u32 %v3135, 7
      %v3137 = vsub.s32 %v3134, %v3136
      %v3138 = vrot.slane %v3124, %v3137
      %v3139 = vcombine.low %v3083, %v3115
      %v3140 = vcombine.high %v3083, %v3115
      %v3141 = vcombine.low %v3090, %v3122
      %v3142 = vcombine.high %v3090, %v3122
      %v3143 = vcombine.low %v3099, %v3131
      %v3144 = vcombine.high %v3099, %v3131
      %v3145 = vcombine.low %v3106, %v3138
      %v3146 = vcombine.high %v3106, %v3138
      %v3147 = vcombine.low %v2280, %v2400
      %v3148 = vcombine.high %v2280, %v2400
      %v3150 = vunpack.c.l.s4 1983009808
      %v3151 = vunpack.c.0.s8 %v3150
      %v3152 = vlaneseq
      %v3153 = vshrl.u32 %v3152, 7
      %v3154 = vsub.s32 %v3151, %v3153
      %v3155 = vrot.slane %v3147, %v3154
      %v3157 = vunpack.c.l.s4 1983009808
      %v3158 = vunpack.c.0.s8 %v3157
      %v3159 = vlaneseq
      %v3160 = vshrl.u32 %v3159, 7
      %v3161 = vsub.s32 %v3158, %v3160
      %v3162 = vrot.slane %v3148, %v3161
      %v3163 = vcombine.low %v2388, %v2412
      %v3164 = vcombine.high %v2388, %v2412
      %v3166 = vunpack.c.l.s4 1983009808
      %v3167 = vunpack.c.0.s8 %v3166
      %v3168 = vlaneseq
      %v3169 = vshrl.u32 %v3168, 7
      %v3170 = vsub.s32 %v3167, %v3169
      %v3171 = vrot.slane %v3163, %v3170
      %v3173 = vunpack.c.l.s4 1983009808
      %v3174 = vunpack.c.0.s8 %v3173
      %v3175 = vlaneseq
      %v3176 = vshrl.u32 %v3175, 7
      %v3177 = vsub.s32 %v3174, %v3176
      %v3178 = vrot.slane %v3164, %v3177
      %v3179 = vcombine.low %v2424, %v2448
      %v3180 = vcombine.high %v2424, %v2448
      %v3182 = vunpack.c.l.s4 1983009808
      %v3183 = vunpack.c.0.s8 %v3182
      %v3184 = vlaneseq
      %v3185 = vshrl.u32 %v3184, 7
      %v3186 = vsub.s32 %v3183, %v3185
      %v3187 = vrot.slane %v3179, %v3186
      %v3189 = vunpack.c.l.s4 1983009808
      %v3190 = vunpack.c.0.s8 %v3189
      %v3191 = vlaneseq
      %v3192 = vshrl.u32 %v3191, 7
      %v3193 = vsub.s32 %v3190, %v3192
      %v3194 = vrot.slane %v3180, %v3193
      %v3195 = vcombine.low %v2436, %v2460
      %v3196 = vcombine.high %v2436, %v2460
      %v3198 = vunpack.c.l.s4 1983009808
      %v3199 = vunpack.c.0.s8 %v3198
      %v3200 = vlaneseq
      %v3201 = vshrl.u32 %v3200, 7
      %v3202 = vsub.s32 %v3199, %v3201
      %v3203 = vrot.slane %v3195, %v3202
      %v3205 = vunpack.c.l.s4 1983009808
      %v3206 = vunpack.c.0.s8 %v3205
      %v3207 = vlaneseq
      %v3208 = vshrl.u32 %v3207, 7
      %v3209 = vsub.s32 %v3206, %v3208
      %v3210 = vrot.slane %v3196, %v3209
      %v3211 = vcombine.low %v3155, %v3171
      %v3212 = vcombine.high %v3155, %v3171
      %v3214 = vunpack.c.l.s4 1934713408
      %v3215 = vunpack.c.0.s8 %v3214
      %v3216 = vlaneseq
      %v3217 = vshrl.u32 %v3216, 7
      %v3218 = vsub.s32 %v3215, %v3217
      %v3219 = vrot.slane %v3211, %v3218
      %v3221 = vunpack.c.l.s4 1934713408
      %v3222 = vunpack.c.0.s8 %v3221
      %v3223 = vlaneseq
      %v3224 = vshrl.u32 %v3223, 7
      %v3225 = vsub.s32 %v3222, %v3224
      %v3226 = vrot.slane %v3212, %v3225
      %v3227 = vcombine.low %v3162, %v3178
      %v3228 = vcombine.high %v3162, %v3178
      %v3230 = vunpack.c.l.s4 1934713408
      %v3231 = vunpack.c.0.s8 %v3230
      %v3232 = vlaneseq
      %v3233 = vshrl.u32 %v3232, 7
      %v3234 = vsub.s32 %v3231, %v3233
      %v3235 = vrot.slane %v3227, %v3234
      %v3237 = vunpack.c.l.s4 1934713408
      %v3238 = vunpack.c.0.s8 %v3237
      %v3239 = vlaneseq
      %v3240 = vshrl.u32 %v3239, 7
      %v3241 = vsub.s32 %v3238, %v3240
      %v3242 = vrot.slane %v3228, %v3241
      %v3243 = vcombine.low %v3187, %v3203
      %v3244 = vcombine.high %v3187, %v3203
      %v3246 = vunpack.c.l.s4 1934713408
      %v3247 = vunpack.c.0.s8 %v3246
      %v3248 = vlaneseq
      %v3249 = vshrl.u32 %v3248, 7
      %v3250 = vsub.s32 %v3247, %v3249
      %v3251 = vrot.slane %v3243, %v3250
      %v3253 = vunpack.c.l.s4 1934713408
      %v3254 = vunpack.c.0.s8 %v3253
      %v3255 = vlaneseq
      %v3256 = vshrl.u32 %v3255, 7
      %v3257 = vsub.s32 %v3254, %v3256
      %v3258 = vrot.slane %v3244, %v3257
      %v3259 = vcombine.low %v3194, %v3210
      %v3260 = vcombine.high %v3194, %v3210
      %v3262 = vunpack.c.l.s4 1934713408
      %v3263 = vunpack.c.0.s8 %v3262
      %v3264 = vlaneseq
      %v3265 = vshrl.u32 %v3264, 7
      %v3266 = vsub.s32 %v3263, %v3265
      %v3267 = vrot.slane %v3259, %v3266
      %v3269 = vunpack.c.l.s4 1934713408
      %v3270 = vunpack.c.0.s8 %v3269
      %v3271 = vlaneseq
      %v3272 = vshrl.u32 %v3271, 7
      %v3273 = vsub.s32 %v3270, %v3272
      %v3274 = vrot.slane %v3260, %v3273
      %v3275 = vcombine.low %v3219, %v3251
      %v3276 = vcombine.high %v3219, %v3251
      %v3277 = vcombine.low %v3226, %v3258
      %v3278 = vcombine.high %v3226, %v3258
      %v3279 = vcombine.low %v3235, %v3267
      %v3280 = vcombine.high %v3235, %v3267
      %v3281 = vcombine.low %v3242, %v3274
      %v3282 = vcombine.high %v3242, %v3274
      %v3283 = vcombine.low %v2281, %v2314
      %v3284 = vcombine.high %v2281, %v2314
      %v3286 = vunpack.c.l.s4 1983009808
      %v3287 = vunpack.c.0.s8 %v3286
      %v3288 = vlaneseq
      %v3289 = vshrl.u32 %v3288, 7
      %v3290 = vsub.s32 %v3287, %v3289
      %v3291 = vrot.slane %v3283, %v3290
      %v3293 = vunpack.c.l.s4 1983009808
      %v3294 = vunpack.c.0.s8 %v3293
      %v3295 = vlaneseq
      %v3296 = vshrl.u32 %v3295, 7
      %v3297 = vsub.s32 %v3294, %v3296
      %v3298 = vrot.slane %v3284, %v3297
      %v3299 = vcombine.low %v2302, %v2326
      %v3300 = vcombine.high %v2302, %v2326
      %v3302 = vunpack.c.l.s4 1983009808
      %v3303 = vunpack.c.0.s8 %v3302
      %v3304 = vlaneseq
      %v3305 = vshrl.u32 %v3304, 7
      %v3306 = vsub.s32 %v3303, %v3305
      %v3307 = vrot.slane %v3299, %v3306
      %v3309 = vunpack.c.l.s4 1983009808
      %v3310 = vunpack.c.0.s8 %v3309
      %v3311 = vlaneseq
      %v3312 = vshrl.u32 %v3311, 7
      %v3313 = vsub.s32 %v3310, %v3312
      %v3314 = vrot.slane %v3300, %v3313
      %v3315 = vcombine.low %v2338, %v2362
      %v3316 = vcombine.high %v2338, %v2362
      %v3318 = vunpack.c.l.s4 1983009808
      %v3319 = vunpack.c.0.s8 %v3318
      %v3320 = vlaneseq
      %v3321 = vshrl.u32 %v3320, 7
      %v3322 = vsub.s32 %v3319, %v3321
      %v3323 = vrot.slane %v3315, %v3322
      %v3325 = vunpack.c.l.s4 1983009808
      %v3326 = vunpack.c.0.s8 %v3325
      %v3327 = vlaneseq
      %v3328 = vshrl.u32 %v3327, 7
      %v3329 = vsub.s32 %v3326, %v3328
      %v3330 = vrot.slane %v3316, %v3329
      %v3331 = vcombine.low %v2350, %v2374
      %v3332 = vcombine.high %v2350, %v2374
      %v3334 = vunpack.c.l.s4 1983009808
      %v3335 = vunpack.c.0.s8 %v3334
      %v3336 = vlaneseq
      %v3337 = vshrl.u32 %v3336, 7
      %v3338 = vsub.s32 %v3335, %v3337
      %v3339 = vrot.slane %v3331, %v3338
      %v3341 = vunpack.c.l.s4 1983009808
      %v3342 = vunpack.c.0.s8 %v3341
      %v3343 = vlaneseq
      %v3344 = vshrl.u32 %v3343, 7
      %v3345 = vsub.s32 %v3342, %v3344
      %v3346 = vrot.slane %v3332, %v3345
      %v3347 = vcombine.low %v3291, %v3307
      %v3348 = vcombine.high %v3291, %v3307
      %v3350 = vunpack.c.l.s4 1934713408
      %v3351 = vunpack.c.0.s8 %v3350
      %v3352 = vlaneseq
      %v3353 = vshrl.u32 %v3352, 7
      %v3354 = vsub.s32 %v3351, %v3353
      %v3355 = vrot.slane %v3347, %v3354
      %v3357 = vunpack.c.l.s4 1934713408
      %v3358 = vunpack.c.0.s8 %v3357
      %v3359 = vlaneseq
      %v3360 = vshrl.u32 %v3359, 7
      %v3361 = vsub.s32 %v3358, %v3360
      %v3362 = vrot.slane %v3348, %v3361
      %v3363 = vcombine.low %v3298, %v3314
      %v3364 = vcombine.high %v3298, %v3314
      %v3366 = vunpack.c.l.s4 1934713408
      %v3367 = vunpack.c.0.s8 %v3366
      %v3368 = vlaneseq
      %v3369 = vshrl.u32 %v3368, 7
      %v3370 = vsub.s32 %v3367, %v3369
      %v3371 = vrot.slane %v3363, %v3370
      %v3373 = vunpack.c.l.s4 1934713408
      %v3374 = vunpack.c.0.s8 %v3373
      %v3375 = vlaneseq
      %v3376 = vshrl.u32 %v3375, 7
      %v3377 = vsub.s32 %v3374, %v3376
      %v3378 = vrot.slane %v3364, %v3377
      %v3379 = vcombine.low %v3323, %v3339
      %v3380 = vcombine.high %v3323, %v3339
      %v3382 = vunpack.c.l.s4 1934713408
      %v3383 = vunpack.c.0.s8 %v3382
      %v3384 = vlaneseq
      %v3385 = vshrl.u32 %v3384, 7
      %v3386 = vsub.s32 %v3383, %v3385
      %v3387 = vrot.slane %v3379, %v3386
      %v3389 = vunpack.c.l.s4 1934713408
      %v3390 = vunpack.c.0.s8 %v3389
      %v3391 = vlaneseq
      %v3392 = vshrl.u32 %v3391, 7
      %v3393 = vsub.s32 %v3390, %v3392
      %v3394 = vrot.slane %v3380, %v3393
      %v3395 = vcombine.low %v3330, %v3346
      %v3396 = vcombine.high %v3330, %v3346
      %v3398 = vunpack.c.l.s4 1934713408
      %v3399 = vunpack.c.0.s8 %v3398
      %v3400 = vlaneseq
      %v3401 = vshrl.u32 %v3400, 7
      %v3402 = vsub.s32 %v3399, %v3401
      %v3403 = vrot.slane %v3395, %v3402
      %v3405 = vunpack.c.l.s4 1934713408
      %v3406 = vunpack.c.0.s8 %v3405
      %v3407 = vlaneseq
      %v3408 = vshrl.u32 %v3407, 7
      %v3409 = vsub.s32 %v3406, %v3408
      %v3410 = vrot.slane %v3396, %v3409
      %v3411 = vcombine.low %v3355, %v3387
      %v3412 = vcombine.high %v3355, %v3387
      %v3413 = vcombine.low %v3362, %v3394
      %v3414 = vcombine.high %v3362, %v3394
      %v3415 = vcombine.low %v3371, %v3403
      %v3416 = vcombine.high %v3371, %v3403
      %v3417 = vcombine.low %v3378, %v3410
      %v3418 = vcombine.high %v3378, %v3410
      %v3419 = vcombine.low %v2282, %v2402
      %v3420 = vcombine.high %v2282, %v2402
      %v3422 = vunpack.c.l.s4 1983009808
      %v3423 = vunpack.c.0.s8 %v3422
      %v3424 = vlaneseq
      %v3425 = vshrl.u32 %v3424, 7
      %v3426 = vsub.s32 %v3423, %v3425
      %v3427 = vrot.slane %v3419, %v3426
      %v3429 = vunpack.c.l.s4 1983009808
      %v3430 = vunpack.c.0.s8 %v3429
      %v3431 = vlaneseq
      %v3432 = vshrl.u32 %v3431, 7
      %v3433 = vsub.s32 %v3430, %v3432
      %v3434 = vrot.slane %v3420, %v3433
      %v3435 = vcombine.low %v2390, %v2414
      %v3436 = vcombine.high %v2390, %v2414
      %v3438 = vunpack.c.l.s4 1983009808
      %v3439 = vunpack.c.0.s8 %v3438
      %v3440 = vlaneseq
      %v3441 = vshrl.u32 %v3440, 7
      %v3442 = vsub.s32 %v3439, %v3441
      %v3443 = vrot.slane %v3435, %v3442
      %v3445 = vunpack.c.l.s4 1983009808
      %v3446 = vunpack.c.0.s8 %v3445
      %v3447 = vlaneseq
      %v3448 = vshrl.u32 %v3447, 7
      %v3449 = vsub.s32 %v3446, %v3448
      %v3450 = vrot.slane %v3436, %v3449
      %v3451 = vcombine.low %v2426, %v2450
      %v3452 = vcombine.high %v2426, %v2450
      %v3454 = vunpack.c.l.s4 1983009808
      %v3455 = vunpack.c.0.s8 %v3454
      %v3456 = vlaneseq
      %v3457 = vshrl.u32 %v3456, 7
      %v3458 = vsub.s32 %v3455, %v3457
      %v3459 = vrot.slane %v3451, %v3458
      %v3461 = vunpack.c.l.s4 1983009808
      %v3462 = vunpack.c.0.s8 %v3461
      %v3463 = vlaneseq
      %v3464 = vshrl.u32 %v3463, 7
      %v3465 = vsub.s32 %v3462, %v3464
      %v3466 = vrot.slane %v3452, %v3465
      %v3467 = vcombine.low %v2438, %v2462
      %v3468 = vcombine.high %v2438, %v2462
      %v3470 = vunpack.c.l.s4 1983009808
      %v3471 = vunpack.c.0.s8 %v3470
      %v3472 = vlaneseq
      %v3473 = vshrl.u32 %v3472, 7
      %v3474 = vsub.s32 %v3471, %v3473
      %v3475 = vrot.slane %v3467, %v3474
      %v3477 = vunpack.c.l.s4 1983009808
      %v3478 = vunpack.c.0.s8 %v3477
      %v3479 = vlaneseq
      %v3480 = vshrl.u32 %v3479, 7
      %v3481 = vsub.s32 %v3478, %v3480
      %v3482 = vrot.slane %v3468, %v3481
      %v3483 = vcombine.low %v3427, %v3443
      %v3484 = vcombine.high %v3427, %v3443
      %v3486 = vunpack.c.l.s4 1934713408
      %v3487 = vunpack.c.0.s8 %v3486
      %v3488 = vlaneseq
      %v3489 = vshrl.u32 %v3488, 7
      %v3490 = vsub.s32 %v3487, %v3489
      %v3491 = vrot.slane %v3483, %v3490
      %v3493 = vunpack.c.l.s4 1934713408
      %v3494 = vunpack.c.0.s8 %v3493
      %v3495 = vlaneseq
      %v3496 = vshrl.u32 %v3495, 7
      %v3497 = vsub.s32 %v3494, %v3496
      %v3498 = vrot.slane %v3484, %v3497
      %v3499 = vcombine.low %v3434, %v3450
      %v3500 = vcombine.high %v3434, %v3450
      %v3502 = vunpack.c.l.s4 1934713408
      %v3503 = vunpack.c.0.s8 %v3502
      %v3504 = vlaneseq
      %v3505 = vshrl.u32 %v3504, 7
      %v3506 = vsub.s32 %v3503, %v3505
      %v3507 = vrot.slane %v3499, %v3506
      %v3509 = vunpack.c.l.s4 1934713408
      %v3510 = vunpack.c.0.s8 %v3509
      %v3511 = vlaneseq
      %v3512 = vshrl.u32 %v3511, 7
      %v3513 = vsub.s32 %v3510, %v3512
      %v3514 = vrot.slane %v3500, %v3513
      %v3515 = vcombine.low %v3459, %v3475
      %v3516 = vcombine.high %v3459, %v3475
      %v3518 = vunpack.c.l.s4 1934713408
      %v3519 = vunpack.c.0.s8 %v3518
      %v3520 = vlaneseq
      %v3521 = vshrl.u32 %v3520, 7
      %v3522 = vsub.s32 %v3519, %v3521
      %v3523 = vrot.slane %v3515, %v3522
      %v3525 = vunpack.c.l.s4 1934713408
      %v3526 = vunpack.c.0.s8 %v3525
      %v3527 = vlaneseq
      %v3528 = vshrl.u32 %v3527, 7
      %v3529 = vsub.s32 %v3526, %v3528
      %v3530 = vrot.slane %v3516, %v3529
      %v3531 = vcombine.low %v3466, %v3482
      %v3532 = vcombine.high %v3466, %v3482
      %v3534 = vunpack.c.l.s4 1934713408
      %v3535 = vunpack.c.0.s8 %v3534
      %v3536 = vlaneseq
      %v3537 = vshrl.u32 %v3536, 7
      %v3538 = vsub.s32 %v3535, %v3537
      %v3539 = vrot.slane %v3531, %v3538
      %v3541 = vunpack.c.l.s4 1934713408
      %v3542 = vunpack.c.0.s8 %v3541
      %v3543 = vlaneseq
      %v3544 = vshrl.u32 %v3543, 7
      %v3545 = vsub.s32 %v3542, %v3544
      %v3546 = vrot.slane %v3532, %v3545
      %v3547 = vcombine.low %v3491, %v3523
      %v3548 = vcombine.high %v3491, %v3523
      %v3549 = vcombine.low %v3498, %v3530
      %v3550 = vcombine.high %v3498, %v3530
      %v3551 = vcombine.low %v3507, %v3539
      %v3552 = vcombine.high %v3507, %v3539
      %v3553 = vcombine.low %v3514, %v3546
      %v3554 = vcombine.high %v3514, %v3546
      %3619 = vrot.lane.b32.xlu0 %v2595, 120
      %v3620 = vpop.permute.xlu0 %3619
      %3621 = vrot.lane.b32.xlu0 %v2731, 120
      %v3622 = vpop.permute.xlu0 %3621
      %3623 = vrot.lane.b32.xlu0 %v2596, 120
      %v3624 = vpop.permute.xlu0 %3623
      %3625 = vrot.lane.b32.xlu0 %v2732, 120
      %v3626 = vpop.permute.xlu0 %3625
      %3627 = vrot.lane.b32.xlu0 %v2597, 120
      %v3628 = vpop.permute.xlu0 %3627
      %3629 = vrot.lane.b32.xlu0 %v2733, 120
      %v3630 = vpop.permute.xlu0 %3629
      %3631 = vrot.lane.b32.xlu0 %v2598, 120
      %v3632 = vpop.permute.xlu0 %3631
      %3633 = vrot.lane.b32.xlu0 %v2734, 120
      %v3634 = vpop.permute.xlu0 %3633
      %3635 = vrot.lane.b32.xlu0 %v2599, 120
      %v3636 = vpop.permute.xlu0 %3635
      %3637 = vrot.lane.b32.xlu0 %v2735, 120
      %v3638 = vpop.permute.xlu0 %3637
      %3639 = vrot.lane.b32.xlu0 %v2600, 120
      %v3640 = vpop.permute.xlu0 %3639
      %3641 = vrot.lane.b32.xlu0 %v2736, 120
      %v3642 = vpop.permute.xlu0 %3641
      %3643 = vrot.lane.b32.xlu0 %v2601, 120
      %v3644 = vpop.permute.xlu0 %3643
      %3645 = vrot.lane.b32.xlu0 %v2737, 120
      %v3646 = vpop.permute.xlu0 %3645
      %3647 = vrot.lane.b32.xlu0 %v2602, 120
      %v3648 = vpop.permute.xlu0 %3647
      %3649 = vrot.lane.b32.xlu0 %v2738, 120
      %v3650 = vpop.permute.xlu0 %3649
      %3651 = vrot.lane.b32.xlu0 %v2867, 120
      %v3652 = vpop.permute.xlu0 %3651
      %3653 = vrot.lane.b32.xlu0 %v3003, 120
      %v3654 = vpop.permute.xlu0 %3653
      %3655 = vrot.lane.b32.xlu0 %v2868, 120
      %v3656 = vpop.permute.xlu0 %3655
      %3657 = vrot.lane.b32.xlu0 %v3004, 120
      %v3658 = vpop.permute.xlu0 %3657
      %3659 = vrot.lane.b32.xlu0 %v2869, 120
      %v3660 = vpop.permute.xlu0 %3659
      %3661 = vrot.lane.b32.xlu0 %v3005, 120
      %v3662 = vpop.permute.xlu0 %3661
      %3663 = vrot.lane.b32.xlu0 %v2870, 120
      %v3664 = vpop.permute.xlu0 %3663
      %3665 = vrot.lane.b32.xlu0 %v3006, 120
      %v3666 = vpop.permute.xlu0 %3665
      %3667 = vrot.lane.b32.xlu0 %v2871, 120
      %v3668 = vpop.permute.xlu0 %3667
      %3669 = vrot.lane.b32.xlu0 %v3007, 120
      %v3670 = vpop.permute.xlu0 %3669
      %3671 = vrot.lane.b32.xlu0 %v2872, 120
      %v3672 = vpop.permute.xlu0 %3671
      %3673 = vrot.lane.b32.xlu0 %v3008, 120
      %v3674 = vpop.permute.xlu0 %3673
      %3675 = vrot.lane.b32.xlu0 %v2873, 120
      %v3676 = vpop.permute.xlu0 %3675
      %3677 = vrot.lane.b32.xlu0 %v3009, 120
      %v3678 = vpop.permute.xlu0 %3677
      %3679 = vrot.lane.b32.xlu0 %v2874, 120
      %v3680 = vpop.permute.xlu0 %3679
      %3681 = vrot.lane.b32.xlu0 %v3010, 120
      %v3682 = vpop.permute.xlu0 %3681
      %3683 = vrot.lane.b32.xlu0 %v3139, 120
      %v3684 = vpop.permute.xlu0 %3683
      %3685 = vrot.lane.b32.xlu0 %v3275, 120
      %v3686 = vpop.permute.xlu0 %3685
      %3687 = vrot.lane.b32.xlu0 %v3140, 120
      %v3688 = vpop.permute.xlu0 %3687
      %3689 = vrot.lane.b32.xlu0 %v3276, 120
      %v3690 = vpop.permute.xlu0 %3689
      %3691 = vrot.lane.b32.xlu0 %v3141, 120
      %v3692 = vpop.permute.xlu0 %3691
      %3693 = vrot.lane.b32.xlu0 %v3277, 120
      %v3694 = vpop.permute.xlu0 %3693
      %3695 = vrot.lane.b32.xlu0 %v3142, 120
      %v3696 = vpop.permute.xlu0 %3695
      %3697 = vrot.lane.b32.xlu0 %v3278, 120
      %v3698 = vpop.permute.xlu0 %3697
      %3699 = vrot.lane.b32.xlu0 %v3143, 120
      %v3700 = vpop.permute.xlu0 %3699
      %3701 = vrot.lane.b32.xlu0 %v3279, 120
      %v3702 = vpop.permute.xlu0 %3701
      %3703 = vrot.lane.b32.xlu0 %v3144, 120
      %v3704 = vpop.permute.xlu0 %3703
      %3705 = vrot.lane.b32.xlu0 %v3280, 120
      %v3706 = vpop.permute.xlu0 %3705
      %3707 = vrot.lane.b32.xlu0 %v3145, 120
      %v3708 = vpop.permute.xlu0 %3707
      %3709 = vrot.lane.b32.xlu0 %v3281, 120
      %v3710 = vpop.permute.xlu0 %3709
      %3711 = vrot.lane.b32.xlu0 %v3146, 120
      %v3712 = vpop.permute.xlu0 %3711
      %3713 = vrot.lane.b32.xlu0 %v3282, 120
      %v3714 = vpop.permute.xlu0 %3713
      %3715 = vrot.lane.b32.xlu0 %v3411, 120
      %v3716 = vpop.permute.xlu0 %3715
      %3717 = vrot.lane.b32.xlu0 %v3547, 120
      %v3718 = vpop.permute.xlu0 %3717
      %3719 = vrot.lane.b32.xlu0 %v3412, 120
      %v3720 = vpop.permute.xlu0 %3719
      %3721 = vrot.lane.b32.xlu0 %v3548, 120
      %v3722 = vpop.permute.xlu0 %3721
      %3723 = vrot.lane.b32.xlu0 %v3413, 120
      %v3724 = vpop.permute.xlu0 %3723
      %3725 = vrot.lane.b32.xlu0 %v3549, 120
      %v3726 = vpop.permute.xlu0 %3725
      %3727 = vrot.lane.b32.xlu0 %v3414, 120
      %v3728 = vpop.permute.xlu0 %3727
      %3729 = vrot.lane.b32.xlu0 %v3550, 120
      %v3730 = vpop.permute.xlu0 %3729
      %3731 = vrot.lane.b32.xlu0 %v3415, 120
      %v3732 = vpop.permute.xlu0 %3731
      %3733 = vrot.lane.b32.xlu0 %v3551, 120
      %v3734 = vpop.permute.xlu0 %3733
      %3735 = vrot.lane.b32.xlu0 %v3416, 120
      %v3736 = vpop.permute.xlu0 %3735
      %3737 = vrot.lane.b32.xlu0 %v3552, 120
      %v3738 = vpop.permute.xlu0 %3737
      %3739 = vrot.lane.b32.xlu0 %v3417, 120
      %v3740 = vpop.permute.xlu0 %3739
      %3741 = vrot.lane.b32.xlu0 %v3553, 120
      %v3742 = vpop.permute.xlu0 %3741
      %3743 = vrot.lane.b32.xlu0 %v3418, 120
      %v3744 = vpop.permute.xlu0 %3743
      %3745 = vrot.lane.b32.xlu0 %v3554, 120
      %v3746 = vpop.permute.xlu0 %3745
      %v3811 = vmax.f32 %v2595, %v3620
      %v3812 = vmax.f32 %v2731, %v3622
      %v3813 = vmax.f32 %v2596, %v3624
      %v3814 = vmax.f32 %v2732, %v3626
      %v3815 = vmax.f32 %v2597, %v3628
      %v3816 = vmax.f32 %v2733, %v3630
      %v3817 = vmax.f32 %v2598, %v3632
      %v3818 = vmax.f32 %v2734, %v3634
      %v3819 = vmax.f32 %v2599, %v3636
      %v3820 = vmax.f32 %v2735, %v3638
      %v3821 = vmax.f32 %v2600, %v3640
      %v3822 = vmax.f32 %v2736, %v3642
      %v3823 = vmax.f32 %v2601, %v3644
      %v3824 = vmax.f32 %v2737, %v3646
      %v3825 = vmax.f32 %v2602, %v3648
      %v3826 = vmax.f32 %v2738, %v3650
      %v3827 = vmax.f32 %v2867, %v3652
      %v3828 = vmax.f32 %v3003, %v3654
      %v3829 = vmax.f32 %v2868, %v3656
      %v3830 = vmax.f32 %v3004, %v3658
      %v3831 = vmax.f32 %v2869, %v3660
      %v3832 = vmax.f32 %v3005, %v3662
      %v3833 = vmax.f32 %v2870, %v3664
      %v3834 = vmax.f32 %v3006, %v3666
      %v3835 = vmax.f32 %v2871, %v3668
      %v3836 = vmax.f32 %v3007, %v3670
      %v3837 = vmax.f32 %v2872, %v3672
      %v3838 = vmax.f32 %v3008, %v3674
      %v3839 = vmax.f32 %v2873, %v3676
      %v3840 = vmax.f32 %v3009, %v3678
      %v3841 = vmax.f32 %v2874, %v3680
      %v3842 = vmax.f32 %v3010, %v3682
      %v3843 = vmax.f32 %v3139, %v3684
      %v3844 = vmax.f32 %v3275, %v3686
      %v3845 = vmax.f32 %v3140, %v3688
      %v3846 = vmax.f32 %v3276, %v3690
      %v3847 = vmax.f32 %v3141, %v3692
      %v3848 = vmax.f32 %v3277, %v3694
      %v3849 = vmax.f32 %v3142, %v3696
      %v3850 = vmax.f32 %v3278, %v3698
      %v3851 = vmax.f32 %v3143, %v3700
      %v3852 = vmax.f32 %v3279, %v3702
      %v3853 = vmax.f32 %v3144, %v3704
      %v3854 = vmax.f32 %v3280, %v3706
      %v3855 = vmax.f32 %v3145, %v3708
      %v3856 = vmax.f32 %v3281, %v3710
      %v3857 = vmax.f32 %v3146, %v3712
      %v3858 = vmax.f32 %v3282, %v3714
      %v3859 = vmax.f32 %v3411, %v3716
      %v3860 = vmax.f32 %v3547, %v3718
      %v3861 = vmax.f32 %v3412, %v3720
      %v3862 = vmax.f32 %v3548, %v3722
      %v3863 = vmax.f32 %v3413, %v3724
      %v3864 = vmax.f32 %v3549, %v3726
      %v3865 = vmax.f32 %v3414, %v3728
      %v3866 = vmax.f32 %v3550, %v3730
      %v3867 = vmax.f32 %v3415, %v3732
      %v3868 = vmax.f32 %v3551, %v3734
      %v3869 = vmax.f32 %v3416, %v3736
      %v3870 = vmax.f32 %v3552, %v3738
      %v3871 = vmax.f32 %v3417, %v3740
      %v3872 = vmax.f32 %v3553, %v3742
      %v3873 = vmax.f32 %v3418, %v3744
      %v3874 = vmax.f32 %v3554, %v3746
      %v3875 = vmax.f32 %v3811, %v3813
      %v3876 = vmax.f32 %v3812, %v3814
      %v3877 = vmax.f32 %v3815, %v3817
      %v3878 = vmax.f32 %v3816, %v3818
      %v3879 = vmax.f32 %v3819, %v3821
      %v3880 = vmax.f32 %v3820, %v3822
      %v3881 = vmax.f32 %v3823, %v3825
      %v3882 = vmax.f32 %v3824, %v3826
      %v3883 = vmax.f32 %v3827, %v3829
      %v3884 = vmax.f32 %v3828, %v3830
      %v3885 = vmax.f32 %v3831, %v3833
      %v3886 = vmax.f32 %v3832, %v3834
      %v3887 = vmax.f32 %v3835, %v3837
      %v3888 = vmax.f32 %v3836, %v3838
      %v3889 = vmax.f32 %v3839, %v3841
      %v3890 = vmax.f32 %v3840, %v3842
      %v3891 = vmax.f32 %v3843, %v3845
      %v3892 = vmax.f32 %v3844, %v3846
      %v3893 = vmax.f32 %v3847, %v3849
      %v3894 = vmax.f32 %v3848, %v3850
      %v3895 = vmax.f32 %v3851, %v3853
      %v3896 = vmax.f32 %v3852, %v3854
      %v3897 = vmax.f32 %v3855, %v3857
      %v3898 = vmax.f32 %v3856, %v3858
      %v3899 = vmax.f32 %v3859, %v3861
      %v3900 = vmax.f32 %v3860, %v3862
      %v3901 = vmax.f32 %v3863, %v3865
      %v3902 = vmax.f32 %v3864, %v3866
      %v3903 = vmax.f32 %v3867, %v3869
      %v3904 = vmax.f32 %v3868, %v3870
      %v3905 = vmax.f32 %v3871, %v3873
      %v3906 = vmax.f32 %v3872, %v3874
      %v3907 = vcombine.low %v3875, %v3879
      %v3908 = vcombine.high %v3875, %v3879
      %v3910 = vunpack.c.l.s4 1983009808
      %v3911 = vunpack.c.0.s8 %v3910
      %v3912 = vlaneseq
      %v3913 = vshrl.u32 %v3912, 7
      %v3914 = vsub.s32 %v3911, %v3913
      %v3915 = vrot.slane %v3907, %v3914
      %v3917 = vunpack.c.l.s4 1983009808
      %v3918 = vunpack.c.0.s8 %v3917
      %v3919 = vlaneseq
      %v3920 = vshrl.u32 %v3919, 7
      %v3921 = vsub.s32 %v3918, %v3920
      %v3922 = vrot.slane %v3908, %v3921
      %v3923 = vcombine.low %v3877, %v3881
      %v3924 = vcombine.high %v3877, %v3881
      %v3926 = vunpack.c.l.s4 1983009808
      %v3927 = vunpack.c.0.s8 %v3926
      %v3928 = vlaneseq
      %v3929 = vshrl.u32 %v3928, 7
      %v3930 = vsub.s32 %v3927, %v3929
      %v3931 = vrot.slane %v3923, %v3930
      %v3933 = vunpack.c.l.s4 1983009808
      %v3934 = vunpack.c.0.s8 %v3933
      %v3935 = vlaneseq
      %v3936 = vshrl.u32 %v3935, 7
      %v3937 = vsub.s32 %v3934, %v3936
      %v3938 = vrot.slane %v3924, %v3937
      %v3939 = vcombine.low %v3883, %v3887
      %v3940 = vcombine.high %v3883, %v3887
      %v3942 = vunpack.c.l.s4 1983009808
      %v3943 = vunpack.c.0.s8 %v3942
      %v3944 = vlaneseq
      %v3945 = vshrl.u32 %v3944, 7
      %v3946 = vsub.s32 %v3943, %v3945
      %v3947 = vrot.slane %v3939, %v3946
      %v3949 = vunpack.c.l.s4 1983009808
      %v3950 = vunpack.c.0.s8 %v3949
      %v3951 = vlaneseq
      %v3952 = vshrl.u32 %v3951, 7
      %v3953 = vsub.s32 %v3950, %v3952
      %v3954 = vrot.slane %v3940, %v3953
      %v3955 = vcombine.low %v3885, %v3889
      %v3956 = vcombine.high %v3885, %v3889
      %v3958 = vunpack.c.l.s4 1983009808
      %v3959 = vunpack.c.0.s8 %v3958
      %v3960 = vlaneseq
      %v3961 = vshrl.u32 %v3960, 7
      %v3962 = vsub.s32 %v3959, %v3961
      %v3963 = vrot.slane %v3955, %v3962
      %v3965 = vunpack.c.l.s4 1983009808
      %v3966 = vunpack.c.0.s8 %v3965
      %v3967 = vlaneseq
      %v3968 = vshrl.u32 %v3967, 7
      %v3969 = vsub.s32 %v3966, %v3968
      %v3970 = vrot.slane %v3956, %v3969
      %v3971 = vcombine.low %v3915, %v3931
      %v3972 = vcombine.high %v3915, %v3931
      %v3974 = vunpack.c.l.s4 1934713408
      %v3975 = vunpack.c.0.s8 %v3974
      %v3976 = vlaneseq
      %v3977 = vshrl.u32 %v3976, 7
      %v3978 = vsub.s32 %v3975, %v3977
      %v3979 = vrot.slane %v3971, %v3978
      %v3981 = vunpack.c.l.s4 1934713408
      %v3982 = vunpack.c.0.s8 %v3981
      %v3983 = vlaneseq
      %v3984 = vshrl.u32 %v3983, 7
      %v3985 = vsub.s32 %v3982, %v3984
      %v3986 = vrot.slane %v3972, %v3985
      %v3987 = vcombine.low %v3922, %v3938
      %v3988 = vcombine.high %v3922, %v3938
      %v3990 = vunpack.c.l.s4 1934713408
      %v3991 = vunpack.c.0.s8 %v3990
      %v3992 = vlaneseq
      %v3993 = vshrl.u32 %v3992, 7
      %v3994 = vsub.s32 %v3991, %v3993
      %v3995 = vrot.slane %v3987, %v3994
      %v3997 = vunpack.c.l.s4 1934713408
      %v3998 = vunpack.c.0.s8 %v3997
      %v3999 = vlaneseq
      %v4000 = vshrl.u32 %v3999, 7
      %v4001 = vsub.s32 %v3998, %v4000
      %v4002 = vrot.slane %v3988, %v4001
      %v4003 = vcombine.low %v3947, %v3963
      %v4004 = vcombine.high %v3947, %v3963
      %v4006 = vunpack.c.l.s4 1934713408
      %v4007 = vunpack.c.0.s8 %v4006
      %v4008 = vlaneseq
      %v4009 = vshrl.u32 %v4008, 7
      %v4010 = vsub.s32 %v4007, %v4009
      %v4011 = vrot.slane %v4003, %v4010
      %v4013 = vunpack.c.l.s4 1934713408
      %v4014 = vunpack.c.0.s8 %v4013
      %v4015 = vlaneseq
      %v4016 = vshrl.u32 %v4015, 7
      %v4017 = vsub.s32 %v4014, %v4016
      %v4018 = vrot.slane %v4004, %v4017
      %v4019 = vcombine.low %v3954, %v3970
      %v4020 = vcombine.high %v3954, %v3970
      %v4022 = vunpack.c.l.s4 1934713408
      %v4023 = vunpack.c.0.s8 %v4022
      %v4024 = vlaneseq
      %v4025 = vshrl.u32 %v4024, 7
      %v4026 = vsub.s32 %v4023, %v4025
      %v4027 = vrot.slane %v4019, %v4026
      %v4029 = vunpack.c.l.s4 1934713408
      %v4030 = vunpack.c.0.s8 %v4029
      %v4031 = vlaneseq
      %v4032 = vshrl.u32 %v4031, 7
      %v4033 = vsub.s32 %v4030, %v4032
      %v4034 = vrot.slane %v4020, %v4033
      %v4035 = vcombine.low %v3979, %v4011
      %v4036 = vcombine.high %v3979, %v4011
      %v4037 = vcombine.low %v3986, %v4018
      %v4038 = vcombine.high %v3986, %v4018
      %v4039 = vcombine.low %v3995, %v4027
      %v4040 = vcombine.high %v3995, %v4027
      %v4041 = vcombine.low %v4002, %v4034
      %v4042 = vcombine.high %v4002, %v4034
      %v4043 = vcombine.low %v3891, %v3895
      %v4044 = vcombine.high %v3891, %v3895
      %v4046 = vunpack.c.l.s4 1983009808
      %v4047 = vunpack.c.0.s8 %v4046
      %v4048 = vlaneseq
      %v4049 = vshrl.u32 %v4048, 7
      %v4050 = vsub.s32 %v4047, %v4049
      %v4051 = vrot.slane %v4043, %v4050
      %v4053 = vunpack.c.l.s4 1983009808
      %v4054 = vunpack.c.0.s8 %v4053
      %v4055 = vlaneseq
      %v4056 = vshrl.u32 %v4055, 7
      %v4057 = vsub.s32 %v4054, %v4056
      %v4058 = vrot.slane %v4044, %v4057
      %v4059 = vcombine.low %v3893, %v3897
      %v4060 = vcombine.high %v3893, %v3897
      %v4062 = vunpack.c.l.s4 1983009808
      %v4063 = vunpack.c.0.s8 %v4062
      %v4064 = vlaneseq
      %v4065 = vshrl.u32 %v4064, 7
      %v4066 = vsub.s32 %v4063, %v4065
      %v4067 = vrot.slane %v4059, %v4066
      %v4069 = vunpack.c.l.s4 1983009808
      %v4070 = vunpack.c.0.s8 %v4069
      %v4071 = vlaneseq
      %v4072 = vshrl.u32 %v4071, 7
      %v4073 = vsub.s32 %v4070, %v4072
      %v4074 = vrot.slane %v4060, %v4073
      %v4075 = vcombine.low %v3899, %v3903
      %v4076 = vcombine.high %v3899, %v3903
      %v4078 = vunpack.c.l.s4 1983009808
      %v4079 = vunpack.c.0.s8 %v4078
      %v4080 = vlaneseq
      %v4081 = vshrl.u32 %v4080, 7
      %v4082 = vsub.s32 %v4079, %v4081
      %v4083 = vrot.slane %v4075, %v4082
      %v4085 = vunpack.c.l.s4 1983009808
      %v4086 = vunpack.c.0.s8 %v4085
      %v4087 = vlaneseq
      %v4088 = vshrl.u32 %v4087, 7
      %v4089 = vsub.s32 %v4086, %v4088
      %v4090 = vrot.slane %v4076, %v4089
      %v4091 = vcombine.low %v3901, %v3905
      %v4092 = vcombine.high %v3901, %v3905
      %v4094 = vunpack.c.l.s4 1983009808
      %v4095 = vunpack.c.0.s8 %v4094
      %v4096 = vlaneseq
      %v4097 = vshrl.u32 %v4096, 7
      %v4098 = vsub.s32 %v4095, %v4097
      %v4099 = vrot.slane %v4091, %v4098
      %v4101 = vunpack.c.l.s4 1983009808
      %v4102 = vunpack.c.0.s8 %v4101
      %v4103 = vlaneseq
      %v4104 = vshrl.u32 %v4103, 7
      %v4105 = vsub.s32 %v4102, %v4104
      %v4106 = vrot.slane %v4092, %v4105
      %v4107 = vcombine.low %v4051, %v4067
      %v4108 = vcombine.high %v4051, %v4067
      %v4110 = vunpack.c.l.s4 1934713408
      %v4111 = vunpack.c.0.s8 %v4110
      %v4112 = vlaneseq
      %v4113 = vshrl.u32 %v4112, 7
      %v4114 = vsub.s32 %v4111, %v4113
      %v4115 = vrot.slane %v4107, %v4114
      %v4117 = vunpack.c.l.s4 1934713408
      %v4118 = vunpack.c.0.s8 %v4117
      %v4119 = vlaneseq
      %v4120 = vshrl.u32 %v4119, 7
      %v4121 = vsub.s32 %v4118, %v4120
      %v4122 = vrot.slane %v4108, %v4121
      %v4123 = vcombine.low %v4058, %v4074
      %v4124 = vcombine.high %v4058, %v4074
      %v4126 = vunpack.c.l.s4 1934713408
      %v4127 = vunpack.c.0.s8 %v4126
      %v4128 = vlaneseq
      %v4129 = vshrl.u32 %v4128, 7
      %v4130 = vsub.s32 %v4127, %v4129
      %v4131 = vrot.slane %v4123, %v4130
      %v4133 = vunpack.c.l.s4 1934713408
      %v4134 = vunpack.c.0.s8 %v4133
      %v4135 = vlaneseq
      %v4136 = vshrl.u32 %v4135, 7
      %v4137 = vsub.s32 %v4134, %v4136
      %v4138 = vrot.slane %v4124, %v4137
      %v4139 = vcombine.low %v4083, %v4099
      %v4140 = vcombine.high %v4083, %v4099
      %v4142 = vunpack.c.l.s4 1934713408
      %v4143 = vunpack.c.0.s8 %v4142
      %v4144 = vlaneseq
      %v4145 = vshrl.u32 %v4144, 7
      %v4146 = vsub.s32 %v4143, %v4145
      %v4147 = vrot.slane %v4139, %v4146
      %v4149 = vunpack.c.l.s4 1934713408
      %v4150 = vunpack.c.0.s8 %v4149
      %v4151 = vlaneseq
      %v4152 = vshrl.u32 %v4151, 7
      %v4153 = vsub.s32 %v4150, %v4152
      %v4154 = vrot.slane %v4140, %v4153
      %v4155 = vcombine.low %v4090, %v4106
      %v4156 = vcombine.high %v4090, %v4106
      %v4158 = vunpack.c.l.s4 1934713408
      %v4159 = vunpack.c.0.s8 %v4158
      %v4160 = vlaneseq
      %v4161 = vshrl.u32 %v4160, 7
      %v4162 = vsub.s32 %v4159, %v4161
      %v4163 = vrot.slane %v4155, %v4162
      %v4165 = vunpack.c.l.s4 1934713408
      %v4166 = vunpack.c.0.s8 %v4165
      %v4167 = vlaneseq
      %v4168 = vshrl.u32 %v4167, 7
      %v4169 = vsub.s32 %v4166, %v4168
      %v4170 = vrot.slane %v4156, %v4169
      %v4171 = vcombine.low %v4115, %v4147
      %v4172 = vcombine.high %v4115, %v4147
      %v4173 = vcombine.low %v4122, %v4154
      %v4174 = vcombine.high %v4122, %v4154
      %v4175 = vcombine.low %v4131, %v4163
      %v4176 = vcombine.high %v4131, %v4163
      %v4177 = vcombine.low %v4138, %v4170
      %v4178 = vcombine.high %v4138, %v4170
      %v4179 = vcombine.low %v3876, %v3880
      %v4180 = vcombine.high %v3876, %v3880
      %v4182 = vunpack.c.l.s4 1983009808
      %v4183 = vunpack.c.0.s8 %v4182
      %v4184 = vlaneseq
      %v4185 = vshrl.u32 %v4184, 7
      %v4186 = vsub.s32 %v4183, %v4185
      %v4187 = vrot.slane %v4179, %v4186
      %v4189 = vunpack.c.l.s4 1983009808
      %v4190 = vunpack.c.0.s8 %v4189
      %v4191 = vlaneseq
      %v4192 = vshrl.u32 %v4191, 7
      %v4193 = vsub.s32 %v4190, %v4192
      %v4194 = vrot.slane %v4180, %v4193
      %v4195 = vcombine.low %v3878, %v3882
      %v4196 = vcombine.high %v3878, %v3882
      %v4198 = vunpack.c.l.s4 1983009808
      %v4199 = vunpack.c.0.s8 %v4198
      %v4200 = vlaneseq
      %v4201 = vshrl.u32 %v4200, 7
      %v4202 = vsub.s32 %v4199, %v4201
      %v4203 = vrot.slane %v4195, %v4202
      %v4205 = vunpack.c.l.s4 1983009808
      %v4206 = vunpack.c.0.s8 %v4205
      %v4207 = vlaneseq
      %v4208 = vshrl.u32 %v4207, 7
      %v4209 = vsub.s32 %v4206, %v4208
      %v4210 = vrot.slane %v4196, %v4209
      %v4211 = vcombine.low %v3884, %v3888
      %v4212 = vcombine.high %v3884, %v3888
      %v4214 = vunpack.c.l.s4 1983009808
      %v4215 = vunpack.c.0.s8 %v4214
      %v4216 = vlaneseq
      %v4217 = vshrl.u32 %v4216, 7
      %v4218 = vsub.s32 %v4215, %v4217
      %v4219 = vrot.slane %v4211, %v4218
      %v4221 = vunpack.c.l.s4 1983009808
      %v4222 = vunpack.c.0.s8 %v4221
      %v4223 = vlaneseq
      %v4224 = vshrl.u32 %v4223, 7
      %v4225 = vsub.s32 %v4222, %v4224
      %v4226 = vrot.slane %v4212, %v4225
      %v4227 = vcombine.low %v3886, %v3890
      %v4228 = vcombine.high %v3886, %v3890
      %v4230 = vunpack.c.l.s4 1983009808
      %v4231 = vunpack.c.0.s8 %v4230
      %v4232 = vlaneseq
      %v4233 = vshrl.u32 %v4232, 7
      %v4234 = vsub.s32 %v4231, %v4233
      %v4235 = vrot.slane %v4227, %v4234
      %v4237 = vunpack.c.l.s4 1983009808
      %v4238 = vunpack.c.0.s8 %v4237
      %v4239 = vlaneseq
      %v4240 = vshrl.u32 %v4239, 7
      %v4241 = vsub.s32 %v4238, %v4240
      %v4242 = vrot.slane %v4228, %v4241
      %v4243 = vcombine.low %v4187, %v4203
      %v4244 = vcombine.high %v4187, %v4203
      %v4246 = vunpack.c.l.s4 1934713408
      %v4247 = vunpack.c.0.s8 %v4246
      %v4248 = vlaneseq
      %v4249 = vshrl.u32 %v4248, 7
      %v4250 = vsub.s32 %v4247, %v4249
      %v4251 = vrot.slane %v4243, %v4250
      %v4253 = vunpack.c.l.s4 1934713408
      %v4254 = vunpack.c.0.s8 %v4253
      %v4255 = vlaneseq
      %v4256 = vshrl.u32 %v4255, 7
      %v4257 = vsub.s32 %v4254, %v4256
      %v4258 = vrot.slane %v4244, %v4257
      %v4259 = vcombine.low %v4194, %v4210
      %v4260 = vcombine.high %v4194, %v4210
      %v4262 = vunpack.c.l.s4 1934713408
      %v4263 = vunpack.c.0.s8 %v4262
      %v4264 = vlaneseq
      %v4265 = vshrl.u32 %v4264, 7
      %v4266 = vsub.s32 %v4263, %v4265
      %v4267 = vrot.slane %v4259, %v4266
      %v4269 = vunpack.c.l.s4 1934713408
      %v4270 = vunpack.c.0.s8 %v4269
      %v4271 = vlaneseq
      %v4272 = vshrl.u32 %v4271, 7
      %v4273 = vsub.s32 %v4270, %v4272
      %v4274 = vrot.slane %v4260, %v4273
      %v4275 = vcombine.low %v4219, %v4235
      %v4276 = vcombine.high %v4219, %v4235
      %v4278 = vunpack.c.l.s4 1934713408
      %v4279 = vunpack.c.0.s8 %v4278
      %v4280 = vlaneseq
      %v4281 = vshrl.u32 %v4280, 7
      %v4282 = vsub.s32 %v4279, %v4281
      %v4283 = vrot.slane %v4275, %v4282
      %v4285 = vunpack.c.l.s4 1934713408
      %v4286 = vunpack.c.0.s8 %v4285
      %v4287 = vlaneseq
      %v4288 = vshrl.u32 %v4287, 7
      %v4289 = vsub.s32 %v4286, %v4288
      %v4290 = vrot.slane %v4276, %v4289
      %v4291 = vcombine.low %v4226, %v4242
      %v4292 = vcombine.high %v4226, %v4242
      %v4294 = vunpack.c.l.s4 1934713408
      %v4295 = vunpack.c.0.s8 %v4294
      %v4296 = vlaneseq
      %v4297 = vshrl.u32 %v4296, 7
      %v4298 = vsub.s32 %v4295, %v4297
      %v4299 = vrot.slane %v4291, %v4298
      %v4301 = vunpack.c.l.s4 1934713408
      %v4302 = vunpack.c.0.s8 %v4301
      %v4303 = vlaneseq
      %v4304 = vshrl.u32 %v4303, 7
      %v4305 = vsub.s32 %v4302, %v4304
      %v4306 = vrot.slane %v4292, %v4305
      %v4307 = vcombine.low %v4251, %v4283
      %v4308 = vcombine.high %v4251, %v4283
      %v4309 = vcombine.low %v4258, %v4290
      %v4310 = vcombine.high %v4258, %v4290
      %v4311 = vcombine.low %v4267, %v4299
      %v4312 = vcombine.high %v4267, %v4299
      %v4313 = vcombine.low %v4274, %v4306
      %v4314 = vcombine.high %v4274, %v4306
      %v4315 = vcombine.low %v3892, %v3896
      %v4316 = vcombine.high %v3892, %v3896
      %v4318 = vunpack.c.l.s4 1983009808
      %v4319 = vunpack.c.0.s8 %v4318
      %v4320 = vlaneseq
      %v4321 = vshrl.u32 %v4320, 7
      %v4322 = vsub.s32 %v4319, %v4321
      %v4323 = vrot.slane %v4315, %v4322
      %v4325 = vunpack.c.l.s4 1983009808
      %v4326 = vunpack.c.0.s8 %v4325
      %v4327 = vlaneseq
      %v4328 = vshrl.u32 %v4327, 7
      %v4329 = vsub.s32 %v4326, %v4328
      %v4330 = vrot.slane %v4316, %v4329
      %v4331 = vcombine.low %v3894, %v3898
      %v4332 = vcombine.high %v3894, %v3898
      %v4334 = vunpack.c.l.s4 1983009808
      %v4335 = vunpack.c.0.s8 %v4334
      %v4336 = vlaneseq
      %v4337 = vshrl.u32 %v4336, 7
      %v4338 = vsub.s32 %v4335, %v4337
      %v4339 = vrot.slane %v4331, %v4338
      %v4341 = vunpack.c.l.s4 1983009808
      %v4342 = vunpack.c.0.s8 %v4341
      %v4343 = vlaneseq
      %v4344 = vshrl.u32 %v4343, 7
      %v4345 = vsub.s32 %v4342, %v4344
      %v4346 = vrot.slane %v4332, %v4345
      %v4347 = vcombine.low %v3900, %v3904
      %v4348 = vcombine.high %v3900, %v3904
      %v4350 = vunpack.c.l.s4 1983009808
      %v4351 = vunpack.c.0.s8 %v4350
      %v4352 = vlaneseq
      %v4353 = vshrl.u32 %v4352, 7
      %v4354 = vsub.s32 %v4351, %v4353
      %v4355 = vrot.slane %v4347, %v4354
      %v4357 = vunpack.c.l.s4 1983009808
      %v4358 = vunpack.c.0.s8 %v4357
      %v4359 = vlaneseq
      %v4360 = vshrl.u32 %v4359, 7
      %v4361 = vsub.s32 %v4358, %v4360
      %v4362 = vrot.slane %v4348, %v4361
      %v4363 = vcombine.low %v3902, %v3906
      %v4364 = vcombine.high %v3902, %v3906
      %v4366 = vunpack.c.l.s4 1983009808
      %v4367 = vunpack.c.0.s8 %v4366
      %v4368 = vlaneseq
      %v4369 = vshrl.u32 %v4368, 7
      %v4370 = vsub.s32 %v4367, %v4369
      %v4371 = vrot.slane %v4363, %v4370
      %v4373 = vunpack.c.l.s4 1983009808
      %v4374 = vunpack.c.0.s8 %v4373
      %v4375 = vlaneseq
      %v4376 = vshrl.u32 %v4375, 7
      %v4377 = vsub.s32 %v4374, %v4376
      %v4378 = vrot.slane %v4364, %v4377
      %v4379 = vcombine.low %v4323, %v4339
      %v4380 = vcombine.high %v4323, %v4339
      %v4382 = vunpack.c.l.s4 1934713408
      %v4383 = vunpack.c.0.s8 %v4382
      %v4384 = vlaneseq
      %v4385 = vshrl.u32 %v4384, 7
      %v4386 = vsub.s32 %v4383, %v4385
      %v4387 = vrot.slane %v4379, %v4386
      %v4389 = vunpack.c.l.s4 1934713408
      %v4390 = vunpack.c.0.s8 %v4389
      %v4391 = vlaneseq
      %v4392 = vshrl.u32 %v4391, 7
      %v4393 = vsub.s32 %v4390, %v4392
      %v4394 = vrot.slane %v4380, %v4393
      %v4395 = vcombine.low %v4330, %v4346
      %v4396 = vcombine.high %v4330, %v4346
      %v4398 = vunpack.c.l.s4 1934713408
      %v4399 = vunpack.c.0.s8 %v4398
      %v4400 = vlaneseq
      %v4401 = vshrl.u32 %v4400, 7
      %v4402 = vsub.s32 %v4399, %v4401
      %v4403 = vrot.slane %v4395, %v4402
      %v4405 = vunpack.c.l.s4 1934713408
      %v4406 = vunpack.c.0.s8 %v4405
      %v4407 = vlaneseq
      %v4408 = vshrl.u32 %v4407, 7
      %v4409 = vsub.s32 %v4406, %v4408
      %v4410 = vrot.slane %v4396, %v4409
      %v4411 = vcombine.low %v4355, %v4371
      %v4412 = vcombine.high %v4355, %v4371
      %v4414 = vunpack.c.l.s4 1934713408
      %v4415 = vunpack.c.0.s8 %v4414
      %v4416 = vlaneseq
      %v4417 = vshrl.u32 %v4416, 7
      %v4418 = vsub.s32 %v4415, %v4417
      %v4419 = vrot.slane %v4411, %v4418
      %v4421 = vunpack.c.l.s4 1934713408
      %v4422 = vunpack.c.0.s8 %v4421
      %v4423 = vlaneseq
      %v4424 = vshrl.u32 %v4423, 7
      %v4425 = vsub.s32 %v4422, %v4424
      %v4426 = vrot.slane %v4412, %v4425
      %v4427 = vcombine.low %v4362, %v4378
      %v4428 = vcombine.high %v4362, %v4378
      %v4430 = vunpack.c.l.s4 1934713408
      %v4431 = vunpack.c.0.s8 %v4430
      %v4432 = vlaneseq
      %v4433 = vshrl.u32 %v4432, 7
      %v4434 = vsub.s32 %v4431, %v4433
      %v4435 = vrot.slane %v4427, %v4434
      %v4437 = vunpack.c.l.s4 1934713408
      %v4438 = vunpack.c.0.s8 %v4437
      %v4439 = vlaneseq
      %v4440 = vshrl.u32 %v4439, 7
      %v4441 = vsub.s32 %v4438, %v4440
      %v4442 = vrot.slane %v4428, %v4441
      %v4443 = vcombine.low %v4387, %v4419
      %v4444 = vcombine.high %v4387, %v4419
      %v4445 = vcombine.low %v4394, %v4426
      %v4446 = vcombine.high %v4394, %v4426
      %v4447 = vcombine.low %v4403, %v4435
      %v4448 = vcombine.high %v4403, %v4435
      %v4449 = vcombine.low %v4410, %v4442
      %v4450 = vcombine.high %v4410, %v4442
      %4453 = vrot.lane.b32.xlu0 %v4036, 8
      %v4454 = vpop.permute.xlu0 %4453
      %4455 = vrot.lane.b32.xlu0 %v4172, 8
      %v4456 = vpop.permute.xlu0 %4455
      %4461 = vrot.lane.b32.xlu0 %v4037, 16
      %v4462 = vpop.permute.xlu0 %4461
      %4463 = vrot.lane.b32.xlu0 %v4173, 16
      %v4464 = vpop.permute.xlu0 %4463
      %4469 = vrot.lane.b32.xlu0 %v4038, 24
      %v4470 = vpop.permute.xlu0 %4469
      %4471 = vrot.lane.b32.xlu0 %v4174, 24
      %v4472 = vpop.permute.xlu0 %4471
      %4477 = vrot.lane.b32.xlu0 %v4039, 32
      %v4478 = vpop.permute.xlu0 %4477
      %4479 = vrot.lane.b32.xlu0 %v4175, 32
      %v4480 = vpop.permute.xlu0 %4479
      %4485 = vrot.lane.b32.xlu0 %v4040, 40
      %v4486 = vpop.permute.xlu0 %4485
      %4487 = vrot.lane.b32.xlu0 %v4176, 40
      %v4488 = vpop.permute.xlu0 %4487
      %4493 = vrot.lane.b32.xlu0 %v4041, 48
      %v4494 = vpop.permute.xlu0 %4493
      %4495 = vrot.lane.b32.xlu0 %v4177, 48
      %v4496 = vpop.permute.xlu0 %4495
      %4501 = vrot.lane.b32.xlu0 %v4042, 56
      %v4502 = vpop.permute.xlu0 %4501
      %4503 = vrot.lane.b32.xlu0 %v4178, 56
      %v4504 = vpop.permute.xlu0 %4503
      %4509 = vrot.lane.b32.xlu0 %v4307, 64
      %v4510 = vpop.permute.xlu0 %4509
      %4511 = vrot.lane.b32.xlu0 %v4443, 64
      %v4512 = vpop.permute.xlu0 %4511
      %4517 = vrot.lane.b32.xlu0 %v4308, 72
      %v4518 = vpop.permute.xlu0 %4517
      %4519 = vrot.lane.b32.xlu0 %v4444, 72
      %v4520 = vpop.permute.xlu0 %4519
      %4525 = vrot.lane.b32.xlu0 %v4309, 80
      %v4526 = vpop.permute.xlu0 %4525
      %4527 = vrot.lane.b32.xlu0 %v4445, 80
      %v4528 = vpop.permute.xlu0 %4527
      %4533 = vrot.lane.b32.xlu0 %v4310, 88
      %v4534 = vpop.permute.xlu0 %4533
      %4535 = vrot.lane.b32.xlu0 %v4446, 88
      %v4536 = vpop.permute.xlu0 %4535
      %4541 = vrot.lane.b32.xlu0 %v4311, 96
      %v4542 = vpop.permute.xlu0 %4541
      %4543 = vrot.lane.b32.xlu0 %v4447, 96
      %v4544 = vpop.permute.xlu0 %4543
      %4549 = vrot.lane.b32.xlu0 %v4312, 104
      %v4550 = vpop.permute.xlu0 %4549
      %4551 = vrot.lane.b32.xlu0 %v4448, 104
      %v4552 = vpop.permute.xlu0 %4551
      %4557 = vrot.lane.b32.xlu0 %v4313, 112
      %v4558 = vpop.permute.xlu0 %4557
      %4559 = vrot.lane.b32.xlu0 %v4449, 112
      %v4560 = vpop.permute.xlu0 %4559
      %4565 = vrot.lane.b32.xlu0 %v4314, 120
      %v4566 = vpop.permute.xlu0 %4565
      %4567 = vrot.lane.b32.xlu0 %v4450, 120
      %v4568 = vpop.permute.xlu0 %4567
      %vm4571 = vcmask 64512
      %v4572 = vsel %vm4571, %v4035, %v4454
      %v4573 = vsel %vm4571, %v4171, %v4456
      %v4574 = vsel %vm671, %v4572, %v4462
      %v4575 = vsel %vm671, %v4573, %v4464
      %vm4576 = vcmask 195584
      %v4577 = vsel %vm4576, %v4574, %v4470
      %v4578 = vsel %vm4576, %v4575, %v4472
      %vm4579 = vcmask 261120
      %v4580 = vsel %vm4579, %v4577, %v4478
      %v4581 = vsel %vm4579, %v4578, %v4480
      %vm4582 = vcmask 326656
      %v4583 = vsel %vm4582, %v4580, %v4486
      %v4584 = vsel %vm4582, %v4581, %v4488
      %vm4585 = vcmask 392192
      %v4586 = vsel %vm4585, %v4583, %v4494
      %v4587 = vsel %vm4585, %v4584, %v4496
      %vm4588 = vcmask 457728
      %v4589 = vsel %vm4588, %v4586, %v4502
      %v4590 = vsel %vm4588, %v4587, %v4504
      %vm4591 = vcmask 523264
      %v4592 = vsel %vm4591, %v4589, %v4510
      %v4593 = vsel %vm4591, %v4590, %v4512
      %vm4594 = vcmask 588800
      %v4595 = vsel %vm4594, %v4592, %v4518
      %v4596 = vsel %vm4594, %v4593, %v4520
      %vm4597 = vcmask 654336
      %v4598 = vsel %vm4597, %v4595, %v4526
      %v4599 = vsel %vm4597, %v4596, %v4528
      %vm4600 = vcmask 719872
      %v4601 = vsel %vm4600, %v4598, %v4534
      %v4602 = vsel %vm4600, %v4599, %v4536
      %vm4603 = vcmask 785408
      %v4604 = vsel %vm4603, %v4601, %v4542
      %v4605 = vsel %vm4603, %v4602, %v4544
      %vm4606 = vcmask 850944
      %v4607 = vsel %vm4606, %v4604, %v4550
      %v4608 = vsel %vm4606, %v4605, %v4552
      %vm4609 = vcmask 916480
      %v4610 = vsel %vm4609, %v4607, %v4558
      %v4611 = vsel %vm4609, %v4608, %v4560
      %vm4612 = vcmask 982016
      %v4613 = vsel %vm4612, %v4610, %v4566
      %v4614 = vsel %vm4612, %v4611, %v4568
      %v4615 = vld [vmem:[%s5] sm:$0xff]
      %v4616 = vld [vmem:[%s5 + $0x8] sm:$0xff]
      %v4617 = vld [vmem:[%s5 + $0x10] sm:$0xff]
      %v4618 = vld [vmem:[%s5 + $0x18] sm:$0xff]
      %v4619 = vld [vmem:[%s5 + $0x20] sm:$0xff]
      %v4620 = vld [vmem:[%s5 + $0x28] sm:$0xff]
      %v4621 = vld [vmem:[%s5 + $0x30] sm:$0xff]
      %v4622 = vld [vmem:[%s5 + $0x38] sm:$0xff]
      %v4623 = vld [vmem:[%s5 + $0x40] sm:$0xff]
      %v4624 = vld [vmem:[%s5 + $0x48] sm:$0xff]
      %v4625 = vld [vmem:[%s5 + $0x50] sm:$0xff]
      %v4626 = vld [vmem:[%s5 + $0x58] sm:$0xff]
      %v4627 = vld [vmem:[%s5 + $0x60] sm:$0xff]
      %v4628 = vld [vmem:[%s5 + $0x68] sm:$0xff]
      %v4629 = vld [vmem:[%s5 + $0x70] sm:$0xff]
      %v4630 = vld [vmem:[%s5 + $0x78] sm:$0xff]
      %v4631 = vld [vmem:[%s5 + $0x80] sm:$0xff]
      %v4632 = vld [vmem:[%s5 + $0x88] sm:$0xff]
      %v4633 = vld [vmem:[%s5 + $0x90] sm:$0xff]
      %v4634 = vld [vmem:[%s5 + $0x98] sm:$0xff]
      %v4635 = vld [vmem:[%s5 + $0xa0] sm:$0xff]
      %v4636 = vld [vmem:[%s5 + $0xa8] sm:$0xff]
      %v4637 = vld [vmem:[%s5 + $0xb0] sm:$0xff]
      %v4638 = vld [vmem:[%s5 + $0xb8] sm:$0xff]
      %v4639 = vld [vmem:[%s5 + $0xc0] sm:$0xff]
      %v4640 = vld [vmem:[%s5 + $0xc8] sm:$0xff]
      %v4641 = vld [vmem:[%s5 + $0xd0] sm:$0xff]
      %v4642 = vld [vmem:[%s5 + $0xd8] sm:$0xff]
      %v4643 = vld [vmem:[%s5 + $0xe0] sm:$0xff]
      %v4644 = vld [vmem:[%s5 + $0xe8] sm:$0xff]
      %v4645 = vld [vmem:[%s5 + $0xf0] sm:$0xff]
      %v4646 = vld [vmem:[%s5 + $0xf8] sm:$0xff]
      %s4647 = scalar_lea.vmem %s5, 256
      %v4648 = vld [vmem:[%s4647] sm:$0xff]
      %v4649 = vld [vmem:[%s4647 + $0x8] sm:$0xff]
      %v4650 = vld [vmem:[%s4647 + $0x10] sm:$0xff]
      %v4651 = vld [vmem:[%s4647 + $0x18] sm:$0xff]
      %v4652 = vld [vmem:[%s4647 + $0x20] sm:$0xff]
      %v4653 = vld [vmem:[%s4647 + $0x28] sm:$0xff]
      %v4654 = vld [vmem:[%s4647 + $0x30] sm:$0xff]
      %v4655 = vld [vmem:[%s4647 + $0x38] sm:$0xff]
      %v4656 = vld [vmem:[%s4647 + $0x40] sm:$0xff]
      %v4657 = vld [vmem:[%s4647 + $0x48] sm:$0xff]
      %v4658 = vld [vmem:[%s4647 + $0x50] sm:$0xff]
      %v4659 = vld [vmem:[%s4647 + $0x58] sm:$0xff]
      %v4660 = vld [vmem:[%s4647 + $0x60] sm:$0xff]
      %v4661 = vld [vmem:[%s4647 + $0x68] sm:$0xff]
      %v4662 = vld [vmem:[%s4647 + $0x70] sm:$0xff]
      %v4663 = vld [vmem:[%s4647 + $0x78] sm:$0xff]
      %v4664 = vld [vmem:[%s4647 + $0x80] sm:$0xff]
      %v4665 = vld [vmem:[%s4647 + $0x88] sm:$0xff]
      %v4666 = vld [vmem:[%s4647 + $0x90] sm:$0xff]
      %v4667 = vld [vmem:[%s4647 + $0x98] sm:$0xff]
      %v4668 = vld [vmem:[%s4647 + $0xa0] sm:$0xff]
      %v4669 = vld [vmem:[%s4647 + $0xa8] sm:$0xff]
      %v4670 = vld [vmem:[%s4647 + $0xb0] sm:$0xff]
      %v4671 = vld [vmem:[%s4647 + $0xb8] sm:$0xff]
      %v4672 = vld [vmem:[%s4647 + $0xc0] sm:$0xff]
      %v4673 = vld [vmem:[%s4647 + $0xc8] sm:$0xff]
      %v4674 = vld [vmem:[%s4647 + $0xd0] sm:$0xff]
      %v4675 = vld [vmem:[%s4647 + $0xd8] sm:$0xff]
      %v4676 = vld [vmem:[%s4647 + $0xe0] sm:$0xff]
      %v4677 = vld [vmem:[%s4647 + $0xe8] sm:$0xff]
      %v4678 = vld [vmem:[%s4647 + $0xf0] sm:$0xff]
      %v4679 = vld [vmem:[%s4647 + $0xf8] sm:$0xff]
      %v4682 = vrot.slane %v4613, 1
      %v4683 = vrot.slane %v4614, 1
      %v4684 = vsel %vm647, %v4682, %v4683
      %4687 = vmatprep.subr.mxu0 %v4649
      %4688 = vmatpush1.msra.mxu0 %v4648
      %4689 = vmatprep.subr.mxu0 %v4651
      %4690 = vmatpush1.msra.mxu0 %v4650
      %4691 = vmatprep.subr.mxu0 %v4653
      %4692 = vmatpush1.msra.mxu0 %v4652
      %4693 = vmatprep.subr.mxu0 %v4655
      %4694 = vmatpush1.msra.mxu0 %v4654
      %4695 = vmatprep.subr.mxu0 %v4657
      %4696 = vmatpush1.msra.mxu0 %v4656
      %4697 = vmatprep.subr.mxu0 %v4659
      %4698 = vmatpush1.msra.mxu0 %v4658
      %4699 = vmatprep.subr.mxu0 %v4661
      %4700 = vmatpush1.msra.mxu0 %v4660
      %4701 = vmatprep.subr.mxu0 %v4663
      %4702 = vmatpush1.msra.mxu0 %v4662
      %4703 = vmatprep.subr.mxu0 %v4665
      %4704 = vmatpush1.msra.mxu0 %v4664
      %4705 = vmatprep.subr.mxu0 %v4667
      %4706 = vmatpush1.msra.mxu0 %v4666
      %4707 = vmatprep.subr.mxu0 %v4669
      %4708 = vmatpush1.msra.mxu0 %v4668
      %4709 = vmatprep.subr.mxu0 %v4671
      %4710 = vmatpush1.msra.mxu0 %v4670
      %4711 = vmatprep.subr.mxu0 %v4673
      %4712 = vmatpush1.msra.mxu0 %v4672
      %4713 = vmatprep.subr.mxu0 %v4675
      %4714 = vmatpush1.msra.mxu0 %v4674
      %4715 = vmatprep.subr.mxu0 %v4677
      %4716 = vmatpush1.msra.mxu0 %v4676
      %4717 = vmatprep.subr.mxu0 %v4679
      %4718 = vmatpush1.msra.mxu0 %v4678
      %4719 = vmatprep.subr.mxu0 0.0
      %4720 = vmatpush1.msra.mxu0 0.0
      %4721 = vmatprep.subr.mxu0 0.0
      %4722 = vmatpush1.msra.mxu0 0.0
      %4723 = vmatprep.subr.mxu0 0.0
      %4724 = vmatpush1.msra.mxu0 0.0
      %4725 = vmatprep.subr.mxu0 0.0
      %4726 = vmatpush1.msra.mxu0 0.0
      %4727 = vmatprep.subr.mxu0 0.0
      %4728 = vmatpush1.msra.mxu0 0.0
      %4729 = vmatprep.subr.mxu0 0.0
      %4730 = vmatpush1.msra.mxu0 0.0
      %4731 = vmatprep.subr.mxu0 0.0
      %4732 = vmatpush1.msra.mxu0 0.0
      %4733 = vmatprep.subr.mxu0 0.0
      %4734 = vmatpush1.msra.mxu0 0.0
      %4735 = vmatprep.subr.mxu0 0.0
      %4736 = vmatpush1.msra.mxu0 0.0
      %4737 = vmatprep.subr.mxu0 0.0
      %4738 = vmatpush1.msra.mxu0 0.0
      %4739 = vmatprep.subr.mxu0 0.0
      %4740 = vmatpush1.msra.mxu0 0.0
      %4741 = vmatprep.subr.mxu0 0.0
      %4742 = vmatpush1.msra.mxu0 0.0
      %4743 = vmatprep.subr.mxu0 0.0
      %4744 = vmatpush1.msra.mxu0 0.0
      %4745 = vmatprep.subr.mxu0 0.0
      %4746 = vmatpush1.msra.mxu0 0.0
      %4747 = vmatprep.subr.mxu0 0.0
      %4748 = vmatpush1.msra.mxu0 0.0
      %4749 = vmatprep.subr.mxu0 0.0
      %4750 = vmatpush1.msra.mxu0 0.0
      %4751 = vmatprep.mubr.f32.mxu0 0.0
      %4752 = vmatmul.mubr.f32.gmra.mrb[0].mxu0 %v4684
      %v4753 = vpop.f32.mrb[0].mxu0
      %v4754 = vadd.f32 0.0, %v4753
      %v4755 = vpop.f32.mrb[0].mxu0
      %v4756 = vadd.f32 0.0, %v4755
      %4757 = vmatprep.mubr.f32.mxu0 0.0
      %4758 = vmatmul.mubr.f32.gmra.mrb[0].mxu0 %v4683
      %v4759 = vpop.f32.mrb[0].mxu0
      %v4760 = vadd.f32 0.0, %v4759
      %v4761 = vpop.f32.mrb[0].mxu0
      %v4762 = vadd.f32 0.0, %v4761
      %4763 = vdwg.mxu0
      %4764 = vmatprep.subr.mxu0 %v4616
      %4765 = vmatpush1.msra.mxu0 %v4615
      %4766 = vmatprep.subr.mxu0 %v4618
      %4767 = vmatpush1.msra.mxu0 %v4617
      %4768 = vmatprep.subr.mxu0 %v4620
      %4769 = vmatpush1.msra.mxu0 %v4619
      %4770 = vmatprep.subr.mxu0 %v4622
      %4771 = vmatpush1.msra.mxu0 %v4621
      %4772 = vmatprep.subr.mxu0 %v4624
      %4773 = vmatpush1.msra.mxu0 %v4623
      %4774 = vmatprep.subr.mxu0 %v4626
      %4775 = vmatpush1.msra.mxu0 %v4625
      %4776 = vmatprep.subr.mxu0 %v4628
      %4777 = vmatpush1.msra.mxu0 %v4627
      %4778 = vmatprep.subr.mxu0 %v4630
      %4779 = vmatpush1.msra.mxu0 %v4629
      %4780 = vmatprep.subr.mxu0 %v4632
      %4781 = vmatpush1.msra.mxu0 %v4631
      %4782 = vmatprep.subr.mxu0 %v4634
      %4783 = vmatpush1.msra.mxu0 %v4633
      %4784 = vmatprep.subr.mxu0 %v4636
      %4785 = vmatpush1.msra.mxu0 %v4635
      %4786 = vmatprep.subr.mxu0 %v4638
      %4787 = vmatpush1.msra.mxu0 %v4637
      %4788 = vmatprep.subr.mxu0 %v4640
      %4789 = vmatpush1.msra.mxu0 %v4639
      %4790 = vmatprep.subr.mxu0 %v4642
      %4791 = vmatpush1.msra.mxu0 %v4641
      %4792 = vmatprep.subr.mxu0 %v4644
      %4793 = vmatpush1.msra.mxu0 %v4643
      %4794 = vmatprep.subr.mxu0 %v4646
      %4795 = vmatpush1.msra.mxu0 %v4645
      %4796 = vmatprep.subr.mxu0 0.0
      %4797 = vmatpush1.msra.mxu0 0.0
      %4798 = vmatprep.subr.mxu0 0.0
      %4799 = vmatpush1.msra.mxu0 0.0
      %4800 = vmatprep.subr.mxu0 0.0
      %4801 = vmatpush1.msra.mxu0 0.0
      %4802 = vmatprep.subr.mxu0 0.0
      %4803 = vmatpush1.msra.mxu0 0.0
      %4804 = vmatprep.subr.mxu0 0.0
      %4805 = vmatpush1.msra.mxu0 0.0
      %4806 = vmatprep.subr.mxu0 0.0
      %4807 = vmatpush1.msra.mxu0 0.0
      %4808 = vmatprep.subr.mxu0 0.0
      %4809 = vmatpush1.msra.mxu0 0.0
      %4810 = vmatprep.subr.mxu0 0.0
      %4811 = vmatpush1.msra.mxu0 0.0
      %4812 = vmatprep.subr.mxu0 0.0
      %4813 = vmatpush1.msra.mxu0 0.0
      %4814 = vmatprep.subr.mxu0 0.0
      %4815 = vmatpush1.msra.mxu0 0.0
      %4816 = vmatprep.subr.mxu0 0.0
      %4817 = vmatpush1.msra.mxu0 0.0
      %4818 = vmatprep.subr.mxu0 0.0
      %4819 = vmatpush1.msra.mxu0 0.0
      %4820 = vmatprep.subr.mxu0 0.0
      %4821 = vmatpush1.msra.mxu0 0.0
      %4822 = vmatprep.subr.mxu0 0.0
      %4823 = vmatpush1.msra.mxu0 0.0
      %4824 = vmatprep.subr.mxu0 0.0
      %4825 = vmatpush1.msra.mxu0 0.0
      %4826 = vmatprep.subr.mxu0 0.0
      %4827 = vmatpush1.msra.mxu0 0.0
      %4828 = vmatprep.mubr.f32.mxu0 0.0
      %4829 = vmatmul.mubr.f32.gmra.mrb[0].mxu0 %v4613
      %v4830 = vpop.f32.mrb[0].mxu0
      %v4831 = vadd.f32 %v4754, %v4830
      %v4832 = vpop.f32.mrb[0].mxu0
      %v4833 = vadd.f32 %v4756, %v4832
      %4834 = vmatprep.mubr.f32.mxu0 0.0
      %4835 = vmatmul.mubr.f32.gmra.mrb[0].mxu0 %v4614
      %v4836 = vpop.f32.mrb[0].mxu0
      %v4837 = vadd.f32 %v4760, %v4836
      %v4838 = vpop.f32.mrb[0].mxu0
      %v4839 = vadd.f32 %v4762, %v4838
      %4840 = vdwg.mxu0
      %s4841 = scalar_lea.vmem %s5, 512
      %v4842 = vld [vmem:[%s4841] sm:$0xff]
      %v4843 = vld [vmem:[%s4841 + $0x8] sm:$0xff]
      %v4844 = vld [vmem:[%s4841 + $0x10] sm:$0xff]
      %v4845 = vld [vmem:[%s4841 + $0x18] sm:$0xff]
      %v4846 = vld [vmem:[%s4841 + $0x20] sm:$0xff]
      %v4847 = vld [vmem:[%s4841 + $0x28] sm:$0xff]
      %v4848 = vld [vmem:[%s4841 + $0x30] sm:$0xff]
      %v4849 = vld [vmem:[%s4841 + $0x38] sm:$0xff]
      %v4850 = vld [vmem:[%s4841 + $0x40] sm:$0xff]
      %v4851 = vld [vmem:[%s4841 + $0x48] sm:$0xff]
      %v4852 = vld [vmem:[%s4841 + $0x50] sm:$0xff]
      %v4853 = vld [vmem:[%s4841 + $0x58] sm:$0xff]
      %v4854 = vld [vmem:[%s4841 + $0x60] sm:$0xff]
      %v4855 = vld [vmem:[%s4841 + $0x68] sm:$0xff]
      %v4856 = vld [vmem:[%s4841 + $0x70] sm:$0xff]
      %v4857 = vld [vmem:[%s4841 + $0x78] sm:$0xff]
      %v4858 = vld [vmem:[%s4841 + $0x80] sm:$0xff]
      %v4859 = vld [vmem:[%s4841 + $0x88] sm:$0xff]
      %v4860 = vld [vmem:[%s4841 + $0x90] sm:$0xff]
      %v4861 = vld [vmem:[%s4841 + $0x98] sm:$0xff]
      %v4862 = vld [vmem:[%s4841 + $0xa0] sm:$0xff]
      %v4863 = vld [vmem:[%s4841 + $0xa8] sm:$0xff]
      %v4864 = vld [vmem:[%s4841 + $0xb0] sm:$0xff]
      %v4865 = vld [vmem:[%s4841 + $0xb8] sm:$0xff]
      %v4866 = vld [vmem:[%s4841 + $0xc0] sm:$0xff]
      %v4867 = vld [vmem:[%s4841 + $0xc8] sm:$0xff]
      %v4868 = vld [vmem:[%s4841 + $0xd0] sm:$0xff]
      %v4869 = vld [vmem:[%s4841 + $0xd8] sm:$0xff]
      %v4870 = vld [vmem:[%s4841 + $0xe0] sm:$0xff]
      %v4871 = vld [vmem:[%s4841 + $0xe8] sm:$0xff]
      %v4872 = vld [vmem:[%s4841 + $0xf0] sm:$0xff]
      %v4873 = vld [vmem:[%s4841 + $0xf8] sm:$0xff]
      %v4874 = vrot.slane %v4613, 2
      %v4875 = vrot.slane %v4614, 2
      %v4876 = vsel %vm1117, %v4874, %v4875
      %4879 = vmatprep.subr.mxu0 %v4843
      %4880 = vmatpush1.msra.mxu0 %v4842
      %4881 = vmatprep.subr.mxu0 %v4845
      %4882 = vmatpush1.msra.mxu0 %v4844
      %4883 = vmatprep.subr.mxu0 %v4847
      %4884 = vmatpush1.msra.mxu0 %v4846
      %4885 = vmatprep.subr.mxu0 %v4849
      %4886 = vmatpush1.msra.mxu0 %v4848
      %4887 = vmatprep.subr.mxu0 %v4851
      %4888 = vmatpush1.msra.mxu0 %v4850
      %4889 = vmatprep.subr.mxu0 %v4853
      %4890 = vmatpush1.msra.mxu0 %v4852
      %4891 = vmatprep.subr.mxu0 %v4855
      %4892 = vmatpush1.msra.mxu0 %v4854
      %4893 = vmatprep.subr.mxu0 %v4857
      %4894 = vmatpush1.msra.mxu0 %v4856
      %4895 = vmatprep.subr.mxu0 %v4859
      %4896 = vmatpush1.msra.mxu0 %v4858
      %4897 = vmatprep.subr.mxu0 %v4861
      %4898 = vmatpush1.msra.mxu0 %v4860
      %4899 = vmatprep.subr.mxu0 %v4863
      %4900 = vmatpush1.msra.mxu0 %v4862
      %4901 = vmatprep.subr.mxu0 %v4865
      %4902 = vmatpush1.msra.mxu0 %v4864
      %4903 = vmatprep.subr.mxu0 %v4867
      %4904 = vmatpush1.msra.mxu0 %v4866
      %4905 = vmatprep.subr.mxu0 %v4869
      %4906 = vmatpush1.msra.mxu0 %v4868
      %4907 = vmatprep.subr.mxu0 %v4871
      %4908 = vmatpush1.msra.mxu0 %v4870
      %4909 = vmatprep.subr.mxu0 %v4873
      %4910 = vmatpush1.msra.mxu0 %v4872
      %4911 = vmatprep.subr.mxu0 0.0
      %4912 = vmatpush1.msra.mxu0 0.0
      %4913 = vmatprep.subr.mxu0 0.0
      %4914 = vmatpush1.msra.mxu0 0.0
      %4915 = vmatprep.subr.mxu0 0.0
      %4916 = vmatpush1.msra.mxu0 0.0
      %4917 = vmatprep.subr.mxu0 0.0
      %4918 = vmatpush1.msra.mxu0 0.0
      %4919 = vmatprep.subr.mxu0 0.0
      %4920 = vmatpush1.msra.mxu0 0.0
      %4921 = vmatprep.subr.mxu0 0.0
      %4922 = vmatpush1.msra.mxu0 0.0
      %4923 = vmatprep.subr.mxu0 0.0
      %4924 = vmatpush1.msra.mxu0 0.0
      %4925 = vmatprep.subr.mxu0 0.0
      %4926 = vmatpush1.msra.mxu0 0.0
      %4927 = vmatprep.subr.mxu0 0.0
      %4928 = vmatpush1.msra.mxu0 0.0
      %4929 = vmatprep.subr.mxu0 0.0
      %4930 = vmatpush1.msra.mxu0 0.0
      %4931 = vmatprep.subr.mxu0 0.0
      %4932 = vmatpush1.msra.mxu0 0.0
      %4933 = vmatprep.subr.mxu0 0.0
      %4934 = vmatpush1.msra.mxu0 0.0
      %4935 = vmatprep.subr.mxu0 0.0
      %4936 = vmatpush1.msra.mxu0 0.0
      %4937 = vmatprep.subr.mxu0 0.0
      %4938 = vmatpush1.msra.mxu0 0.0
      %4939 = vmatprep.subr.mxu0 0.0
      %4940 = vmatpush1.msra.mxu0 0.0
      %4941 = vmatprep.subr.mxu0 0.0
      %4942 = vmatpush1.msra.mxu0 0.0
      %4943 = vmatprep.mubr.f32.mxu0 0.0
      %4944 = vmatmul.mubr.f32.gmra.mrb[0].mxu0 %v4876
      %v4945 = vpop.f32.mrb[0].mxu0
      %v4946 = vadd.f32 0.0, %v4945
      %v4947 = vpop.f32.mrb[0].mxu0
      %v4948 = vadd.f32 0.0, %v4947
      %4949 = vmatprep.mubr.f32.mxu0 0.0
      %4950 = vmatmul.mubr.f32.gmra.mrb[0].mxu0 %v4875
      %v4951 = vpop.f32.mrb[0].mxu0
      %v4952 = vadd.f32 0.0, %v4951
      %v4953 = vpop.f32.mrb[0].mxu0
      %v4954 = vadd.f32 0.0, %v4953
      %4955 = vdwg.mxu0
      %v4956 = vadd.f32 %v4831, %v4946
      %v4957 = vadd.f32 %v4833, %v4948
      %v4958 = vadd.f32 %v4837, %v4952
      %v4959 = vadd.f32 %v4839, %v4954
      %v4960 = vld [vmem:[%s6] sm:$0x3]
      %v4962 = vlaneseq
      %v4963 = vshrl.u32 %v4962, 7
      %v4964 = vsub.s32 0, %v4963
      %v4965 = vrot.slane %v4960, %v4964
      %v4966 = vlaneseq
      %v4967 = vshrl.u32 %v4966, 7
      %v4968 = vsub.s32 1, %v4967
      %v4969 = vrot.slane %v4960, %v4968
      %v4972 = vadd.f32 %v4956, %v4965
      %v4973 = vadd.f32 %v4957, %v4969
      %v4974 = vadd.f32 %v4958, %v4965
      %v4975 = vadd.f32 %v4959, %v4969
      %v4976 = vmax.f32 %v4972, 0.0
      %v4977 = vmax.f32 %v4973, 0.0
      %v4978 = vmax.f32 %v4974, 0.0
      %v4979 = vmax.f32 %v4975, 0.0
      %v4980 = vld [vmem:[%s7] sm:$0xff]
      %v4981 = vld [vmem:[%s7 + $0x8] sm:$0xff]
      %v4982 = vld [vmem:[%s7 + $0x10] sm:$0xff]
      %v4983 = vld [vmem:[%s7 + $0x18] sm:$0xff]
      %v4984 = vld [vmem:[%s7 + $0x20] sm:$0xff]
      %v4985 = vld [vmem:[%s7 + $0x28] sm:$0xff]
      %v4986 = vld [vmem:[%s7 + $0x30] sm:$0xff]
      %v4987 = vld [vmem:[%s7 + $0x38] sm:$0xff]
      %v4988 = vld [vmem:[%s7 + $0x40] sm:$0xff]
      %v4989 = vld [vmem:[%s7 + $0x48] sm:$0xff]
      %v4990 = vld [vmem:[%s7 + $0x50] sm:$0xff]
      %v4991 = vld [vmem:[%s7 + $0x58] sm:$0xff]
      %v4992 = vld [vmem:[%s7 + $0x60] sm:$0xff]
      %v4993 = vld [vmem:[%s7 + $0x68] sm:$0xff]
      %v4994 = vld [vmem:[%s7 + $0x70] sm:$0xff]
      %v4995 = vld [vmem:[%s7 + $0x78] sm:$0xff]
      %v4996 = vld [vmem:[%s7 + $0x80] sm:$0xff]
      %v4997 = vld [vmem:[%s7 + $0x88] sm:$0xff]
      %v4998 = vld [vmem:[%s7 + $0x90] sm:$0xff]
      %v4999 = vld [vmem:[%s7 + $0x98] sm:$0xff]
      %v5000 = vld [vmem:[%s7 + $0xa0] sm:$0xff]
      %v5001 = vld [vmem:[%s7 + $0xa8] sm:$0xff]
      %v5002 = vld [vmem:[%s7 + $0xb0] sm:$0xff]
      %v5003 = vld [vmem:[%s7 + $0xb8] sm:$0xff]
      %v5004 = vld [vmem:[%s7 + $0xc0] sm:$0xff]
      %v5005 = vld [vmem:[%s7 + $0xc8] sm:$0xff]
      %v5006 = vld [vmem:[%s7 + $0xd0] sm:$0xff]
      %v5007 = vld [vmem:[%s7 + $0xd8] sm:$0xff]
      %v5008 = vld [vmem:[%s7 + $0xe0] sm:$0xff]
      %v5009 = vld [vmem:[%s7 + $0xe8] sm:$0xff]
      %v5010 = vld [vmem:[%s7 + $0xf0] sm:$0xff]
      %v5011 = vld [vmem:[%s7 + $0xf8] sm:$0xff]
      %v5012 = vld [vmem:[%s7 + $0x100] sm:$0xff]
      %v5013 = vld [vmem:[%s7 + $0x108] sm:$0xff]
      %v5014 = vld [vmem:[%s7 + $0x110] sm:$0xff]
      %v5015 = vld [vmem:[%s7 + $0x118] sm:$0xff]
      %v5016 = vld [vmem:[%s7 + $0x120] sm:$0xff]
      %v5017 = vld [vmem:[%s7 + $0x128] sm:$0xff]
      %v5018 = vld [vmem:[%s7 + $0x130] sm:$0xff]
      %v5019 = vld [vmem:[%s7 + $0x138] sm:$0xff]
      %v5020 = vld [vmem:[%s7 + $0x140] sm:$0xff]
      %v5021 = vld [vmem:[%s7 + $0x148] sm:$0xff]
      %v5022 = vld [vmem:[%s7 + $0x150] sm:$0xff]
      %v5023 = vld [vmem:[%s7 + $0x158] sm:$0xff]
      %v5024 = vld [vmem:[%s7 + $0x160] sm:$0xff]
      %v5025 = vld [vmem:[%s7 + $0x168] sm:$0xff]
      %v5026 = vld [vmem:[%s7 + $0x170] sm:$0xff]
      %v5027 = vld [vmem:[%s7 + $0x178] sm:$0xff]
      %v5028 = vld [vmem:[%s7 + $0x180] sm:$0xff]
      %v5029 = vld [vmem:[%s7 + $0x188] sm:$0xff]
      %v5030 = vld [vmem:[%s7 + $0x190] sm:$0xff]
      %v5031 = vld [vmem:[%s7 + $0x198] sm:$0xff]
      %v5032 = vld [vmem:[%s7 + $0x1a0] sm:$0xff]
      %v5033 = vld [vmem:[%s7 + $0x1a8] sm:$0xff]
      %v5034 = vld [vmem:[%s7 + $0x1b0] sm:$0xff]
      %v5035 = vld [vmem:[%s7 + $0x1b8] sm:$0xff]
      %s5036 = scalar_lea.vmem %s7, 448
      %v5037 = vld [vmem:[%s5036] sm:$0xff]
      %v5038 = vld [vmem:[%s5036 + $0x8] sm:$0xff]
      %v5039 = vld [vmem:[%s5036 + $0x10] sm:$0xff]
      %v5040 = vld [vmem:[%s5036 + $0x18] sm:$0xff]
      %v5041 = vld [vmem:[%s5036 + $0x20] sm:$0xff]
      %v5042 = vld [vmem:[%s5036 + $0x28] sm:$0xff]
      %v5043 = vld [vmem:[%s5036 + $0x30] sm:$0xff]
      %v5044 = vld [vmem:[%s5036 + $0x38] sm:$0xff]
      %v5045 = vld [vmem:[%s5036 + $0x40] sm:$0xff]
      %v5046 = vld [vmem:[%s5036 + $0x48] sm:$0xff]
      %v5047 = vld [vmem:[%s5036 + $0x50] sm:$0xff]
      %v5048 = vld [vmem:[%s5036 + $0x58] sm:$0xff]
      %v5049 = vld [vmem:[%s5036 + $0x60] sm:$0xff]
      %v5050 = vld [vmem:[%s5036 + $0x68] sm:$0xff]
      %v5051 = vld [vmem:[%s5036 + $0x70] sm:$0xff]
      %v5052 = vld [vmem:[%s5036 + $0x78] sm:$0xff]
      %v5053 = vld [vmem:[%s5036 + $0x80] sm:$0xff]
      %v5054 = vld [vmem:[%s5036 + $0x88] sm:$0xff]
      %v5055 = vld [vmem:[%s5036 + $0x90] sm:$0xff]
      %v5056 = vld [vmem:[%s5036 + $0x98] sm:$0xff]
      %v5057 = vld [vmem:[%s5036 + $0xa0] sm:$0xff]
      %v5058 = vld [vmem:[%s5036 + $0xa8] sm:$0xff]
      %v5059 = vld [vmem:[%s5036 + $0xb0] sm:$0xff]
      %v5060 = vld [vmem:[%s5036 + $0xb8] sm:$0xff]
      %v5061 = vld [vmem:[%s5036 + $0xc0] sm:$0xff]
      %v5062 = vld [vmem:[%s5036 + $0xc8] sm:$0xff]
      %v5063 = vld [vmem:[%s5036 + $0xd0] sm:$0xff]
      %v5064 = vld [vmem:[%s5036 + $0xd8] sm:$0xff]
      %v5065 = vld [vmem:[%s5036 + $0xe0] sm:$0xff]
      %v5066 = vld [vmem:[%s5036 + $0xe8] sm:$0xff]
      %v5067 = vld [vmem:[%s5036 + $0xf0] sm:$0xff]
      %v5068 = vld [vmem:[%s5036 + $0xf8] sm:$0xff]
      %v5069 = vld [vmem:[%s5036 + $0x100] sm:$0xff]
      %v5070 = vld [vmem:[%s5036 + $0x108] sm:$0xff]
      %v5071 = vld [vmem:[%s5036 + $0x110] sm:$0xff]
      %v5072 = vld [vmem:[%s5036 + $0x118] sm:$0xff]
      %v5073 = vld [vmem:[%s5036 + $0x120] sm:$0xff]
      %v5074 = vld [vmem:[%s5036 + $0x128] sm:$0xff]
      %v5075 = vld [vmem:[%s5036 + $0x130] sm:$0xff]
      %v5076 = vld [vmem:[%s5036 + $0x138] sm:$0xff]
      %v5077 = vld [vmem:[%s5036 + $0x140] sm:$0xff]
      %v5078 = vld [vmem:[%s5036 + $0x148] sm:$0xff]
      %v5079 = vld [vmem:[%s5036 + $0x150] sm:$0xff]
      %v5080 = vld [vmem:[%s5036 + $0x158] sm:$0xff]
      %v5081 = vld [vmem:[%s5036 + $0x160] sm:$0xff]
      %v5082 = vld [vmem:[%s5036 + $0x168] sm:$0xff]
      %v5083 = vld [vmem:[%s5036 + $0x170] sm:$0xff]
      %v5084 = vld [vmem:[%s5036 + $0x178] sm:$0xff]
      %v5085 = vld [vmem:[%s5036 + $0x180] sm:$0xff]
      %v5086 = vld [vmem:[%s5036 + $0x188] sm:$0xff]
      %v5087 = vld [vmem:[%s5036 + $0x190] sm:$0xff]
      %v5088 = vld [vmem:[%s5036 + $0x198] sm:$0xff]
      %v5089 = vld [vmem:[%s5036 + $0x1a0] sm:$0xff]
      %v5090 = vld [vmem:[%s5036 + $0x1a8] sm:$0xff]
      %v5091 = vld [vmem:[%s5036 + $0x1b0] sm:$0xff]
      %v5092 = vld [vmem:[%s5036 + $0x1b8] sm:$0xff]
      %v5097 = vrot.slane %v4976, 1
      %v5098 = vrot.slane %v4978, 1
      %v5099 = vsel %vm647, %v5097, %v5098
      %v5100 = vrot.slane %v4977, 1
      %v5101 = vrot.slane %v4979, 1
      %v5102 = vsel %vm647, %v5100, %v5101
      %v5105 = vsel %vm4603, %v5102, 0
      %v5107 = vsel %vm4603, %v5101, 0
      %5109 = vmatprep.subr.mxu0 %v5038
      %5110 = vmatpush1.msra.mxu0 %v5037
      %5111 = vmatprep.subr.mxu0 %v5040
      %5112 = vmatpush1.msra.mxu0 %v5039
      %5113 = vmatprep.subr.mxu0 %v5042
      %5114 = vmatpush1.msra.mxu0 %v5041
      %5115 = vmatprep.subr.mxu0 %v5044
      %5116 = vmatpush1.msra.mxu0 %v5043
      %5117 = vmatprep.subr.mxu0 %v5046
      %5118 = vmatpush1.msra.mxu0 %v5045
      %5119 = vmatprep.subr.mxu0 %v5048
      %5120 = vmatpush1.msra.mxu0 %v5047
      %5121 = vmatprep.subr.mxu0 %v5050
      %5122 = vmatpush1.msra.mxu0 %v5049
      %5123 = vmatprep.subr.mxu0 %v5052
      %5124 = vmatpush1.msra.mxu0 %v5051
      %5125 = vmatprep.subr.mxu0 %v5054
      %5126 = vmatpush1.msra.mxu0 %v5053
      %5127 = vmatprep.subr.mxu0 %v5056
      %5128 = vmatpush1.msra.mxu0 %v5055
      %5129 = vmatprep.subr.mxu0 %v5058
      %5130 = vmatpush1.msra.mxu0 %v5057
      %5131 = vmatprep.subr.mxu0 %v5060
      %5132 = vmatpush1.msra.mxu0 %v5059
      %5133 = vmatprep.subr.mxu0 %v5062
      %5134 = vmatpush1.msra.mxu0 %v5061
      %5135 = vmatprep.subr.mxu0 %v5064
      %5136 = vmatpush1.msra.mxu0 %v5063
      %5137 = vmatprep.subr.mxu0 %v5066
      %5138 = vmatpush1.msra.mxu0 %v5065
      %5139 = vmatprep.subr.mxu0 %v5068
      %5140 = vmatpush1.msra.mxu0 %v5067
      %5141 = vmatprep.subr.mxu0 %v5070
      %5142 = vmatpush1.msra.mxu0 %v5069
      %5143 = vmatprep.subr.mxu0 %v5072
      %5144 = vmatpush1.msra.mxu0 %v5071
      %5145 = vmatprep.subr.mxu0 %v5074
      %5146 = vmatpush1.msra.mxu0 %v5073
      %5147 = vmatprep.subr.mxu0 %v5076
      %5148 = vmatpush1.msra.mxu0 %v5075
      %5149 = vmatprep.subr.mxu0 %v5078
      %5150 = vmatpush1.msra.mxu0 %v5077
      %5151 = vmatprep.subr.mxu0 %v5080
      %5152 = vmatpush1.msra.mxu0 %v5079
      %5153 = vmatprep.subr.mxu0 %v5082
      %5154 = vmatpush1.msra.mxu0 %v5081
      %5155 = vmatprep.subr.mxu0 %v5084
      %5156 = vmatpush1.msra.mxu0 %v5083
      %5157 = vmatprep.subr.mxu0 %v5086
      %5158 = vmatpush1.msra.mxu0 %v5085
      %5159 = vmatprep.subr.mxu0 %v5088
      %5160 = vmatpush1.msra.mxu0 %v5087
      %5161 = vmatprep.subr.mxu0 %v5090
      %5162 = vmatpush1.msra.mxu0 %v5089
      %5163 = vmatprep.subr.mxu0 %v5092
      %5164 = vmatpush1.msra.mxu0 %v5091
      %5165 = vmatprep.subr.mxu0 0.0
      %5166 = vmatpush1.msra.mxu0 0.0
      %5167 = vmatprep.subr.mxu0 0.0
      %5168 = vmatpush1.msra.mxu0 0.0
      %5169 = vmatprep.subr.mxu0 0.0
      %5170 = vmatpush1.msra.mxu0 0.0
      %5171 = vmatprep.subr.mxu0 0.0
      %5172 = vmatpush1.msra.mxu0 0.0
      %5173 = vmatprep.mubr.f32.mxu0 %v5105
      %5174 = vmatmul.mubr.f32.gmra.mrb[0].mxu0 %v5099
      %v5175 = vpop.f32.mrb[0].mxu0
      %v5176 = vadd.f32 0.0, %v5175
      %v5177 = vpop.f32.mrb[0].mxu0
      %v5178 = vadd.f32 0.0, %v5177
      %5179 = vmatprep.mubr.f32.mxu0 %v5107
      %5180 = vmatmul.mubr.f32.gmra.mrb[0].mxu0 %v5098
      %v5181 = vpop.f32.mrb[0].mxu0
      %v5182 = vadd.f32 0.0, %v5181
      %v5183 = vpop.f32.mrb[0].mxu0
      %v5184 = vadd.f32 0.0, %v5183
      %5185 = vdwg.mxu0
      %v5186 = vsel %vm4603, %v4977, 0
      %v5188 = vsel %vm4603, %v4979, 0
      %5190 = vmatprep.subr.mxu0 %v4981
      %5191 = vmatpush1.msra.mxu0 %v4980
      %5192 = vmatprep.subr.mxu0 %v4983
      %5193 = vmatpush1.msra.mxu0 %v4982
      %5194 = vmatprep.subr.mxu0 %v4985
      %5195 = vmatpush1.msra.mxu0 %v4984
      %5196 = vmatprep.subr.mxu0 %v4987
      %5197 = vmatpush1.msra.mxu0 %v4986
      %5198 = vmatprep.subr.mxu0 %v4989
      %5199 = vmatpush1.msra.mxu0 %v4988
      %5200 = vmatprep.subr.mxu0 %v4991
      %5201 = vmatpush1.msra.mxu0 %v4990
      %5202 = vmatprep.subr.mxu0 %v4993
      %5203 = vmatpush1.msra.mxu0 %v4992
      %5204 = vmatprep.subr.mxu0 %v4995
      %5205 = vmatpush1.msra.mxu0 %v4994
      %5206 = vmatprep.subr.mxu0 %v4997
      %5207 = vmatpush1.msra.mxu0 %v4996
      %5208 = vmatprep.subr.mxu0 %v4999
      %5209 = vmatpush1.msra.mxu0 %v4998
      %5210 = vmatprep.subr.mxu0 %v5001
      %5211 = vmatpush1.msra.mxu0 %v5000
      %5212 = vmatprep.subr.mxu0 %v5003
      %5213 = vmatpush1.msra.mxu0 %v5002
      %5214 = vmatprep.subr.mxu0 %v5005
      %5215 = vmatpush1.msra.mxu0 %v5004
      %5216 = vmatprep.subr.mxu0 %v5007
      %5217 = vmatpush1.msra.mxu0 %v5006
      %5218 = vmatprep.subr.mxu0 %v5009
      %5219 = vmatpush1.msra.mxu0 %v5008
      %5220 = vmatprep.subr.mxu0 %v5011
      %5221 = vmatpush1.msra.mxu0 %v5010
      %5222 = vmatprep.subr.mxu0 %v5013
      %5223 = vmatpush1.msra.mxu0 %v5012
      %5224 = vmatprep.subr.mxu0 %v5015
      %5225 = vmatpush1.msra.mxu0 %v5014
      %5226 = vmatprep.subr.mxu0 %v5017
      %5227 = vmatpush1.msra.mxu0 %v5016
      %5228 = vmatprep.subr.mxu0 %v5019
      %5229 = vmatpush1.msra.mxu0 %v5018
      %5230 = vmatprep.subr.mxu0 %v5021
      %5231 = vmatpush1.msra.mxu0 %v5020
      %5232 = vmatprep.subr.mxu0 %v5023
      %5233 = vmatpush1.msra.mxu0 %v5022
      %5234 = vmatprep.subr.mxu0 %v5025
      %5235 = vmatpush1.msra.mxu0 %v5024
      %5236 = vmatprep.subr.mxu0 %v5027
      %5237 = vmatpush1.msra.mxu0 %v5026
      %5238 = vmatprep.subr.mxu0 %v5029
      %5239 = vmatpush1.msra.mxu0 %v5028
      %5240 = vmatprep.subr.mxu0 %v5031
      %5241 = vmatpush1.msra.mxu0 %v5030
      %5242 = vmatprep.subr.mxu0 %v5033
      %5243 = vmatpush1.msra.mxu0 %v5032
      %5244 = vmatprep.subr.mxu0 %v5035
      %5245 = vmatpush1.msra.mxu0 %v5034
      %5246 = vmatprep.subr.mxu0 0.0
      %5247 = vmatpush1.msra.mxu0 0.0
      %5248 = vmatprep.subr.mxu0 0.0
      %5249 = vmatpush1.msra.mxu0 0.0
      %5250 = vmatprep.subr.mxu0 0.0
      %5251 = vmatpush1.msra.mxu0 0.0
      %5252 = vmatprep.subr.mxu0 0.0
      %5253 = vmatpush1.msra.mxu0 0.0
      %5254 = vmatprep.mubr.f32.mxu0 %v5186
      %5255 = vmatmul.mubr.f32.gmra.mrb[0].mxu0 %v4976
      %v5256 = vpop.f32.mrb[0].mxu0
      %v5257 = vadd.f32 %v5176, %v5256
      %v5258 = vpop.f32.mrb[0].mxu0
      %v5259 = vadd.f32 %v5178, %v5258
      %5260 = vmatprep.mubr.f32.mxu0 %v5188
      %5261 = vmatmul.mubr.f32.gmra.mrb[0].mxu0 %v4978
      %v5262 = vpop.f32.mrb[0].mxu0
      %v5263 = vadd.f32 %v5182, %v5262
      %v5264 = vpop.f32.mrb[0].mxu0
      %v5265 = vadd.f32 %v5184, %v5264
      %5266 = vdwg.mxu0
      %s5267 = scalar_lea.vmem %s7, 896
      %v5268 = vld [vmem:[%s5267] sm:$0xff]
      %v5269 = vld [vmem:[%s5267 + $0x8] sm:$0xff]
      %v5270 = vld [vmem:[%s5267 + $0x10] sm:$0xff]
      %v5271 = vld [vmem:[%s5267 + $0x18] sm:$0xff]
      %v5272 = vld [vmem:[%s5267 + $0x20] sm:$0xff]
      %v5273 = vld [vmem:[%s5267 + $0x28] sm:$0xff]
      %v5274 = vld [vmem:[%s5267 + $0x30] sm:$0xff]
      %v5275 = vld [vmem:[%s5267 + $0x38] sm:$0xff]
      %v5276 = vld [vmem:[%s5267 + $0x40] sm:$0xff]
      %v5277 = vld [vmem:[%s5267 + $0x48] sm:$0xff]
      %v5278 = vld [vmem:[%s5267 + $0x50] sm:$0xff]
      %v5279 = vld [vmem:[%s5267 + $0x58] sm:$0xff]
      %v5280 = vld [vmem:[%s5267 + $0x60] sm:$0xff]
      %v5281 = vld [vmem:[%s5267 + $0x68] sm:$0xff]
      %v5282 = vld [vmem:[%s5267 + $0x70] sm:$0xff]
      %v5283 = vld [vmem:[%s5267 + $0x78] sm:$0xff]
      %v5284 = vld [vmem:[%s5267 + $0x80] sm:$0xff]
      %v5285 = vld [vmem:[%s5267 + $0x88] sm:$0xff]
      %v5286 = vld [vmem:[%s5267 + $0x90] sm:$0xff]
      %v5287 = vld [vmem:[%s5267 + $0x98] sm:$0xff]
      %v5288 = vld [vmem:[%s5267 + $0xa0] sm:$0xff]
      %v5289 = vld [vmem:[%s5267 + $0xa8] sm:$0xff]
      %v5290 = vld [vmem:[%s5267 + $0xb0] sm:$0xff]
      %v5291 = vld [vmem:[%s5267 + $0xb8] sm:$0xff]
      %v5292 = vld [vmem:[%s5267 + $0xc0] sm:$0xff]
      %v5293 = vld [vmem:[%s5267 + $0xc8] sm:$0xff]
      %v5294 = vld [vmem:[%s5267 + $0xd0] sm:$0xff]
      %v5295 = vld [vmem:[%s5267 + $0xd8] sm:$0xff]
      %v5296 = vld [vmem:[%s5267 + $0xe0] sm:$0xff]
      %v5297 = vld [vmem:[%s5267 + $0xe8] sm:$0xff]
      %v5298 = vld [vmem:[%s5267 + $0xf0] sm:$0xff]
      %v5299 = vld [vmem:[%s5267 + $0xf8] sm:$0xff]
      %v5300 = vld [vmem:[%s5267 + $0x100] sm:$0xff]
      %v5301 = vld [vmem:[%s5267 + $0x108] sm:$0xff]
      %v5302 = vld [vmem:[%s5267 + $0x110] sm:$0xff]
      %v5303 = vld [vmem:[%s5267 + $0x118] sm:$0xff]
      %v5304 = vld [vmem:[%s5267 + $0x120] sm:$0xff]
      %v5305 = vld [vmem:[%s5267 + $0x128] sm:$0xff]
      %v5306 = vld [vmem:[%s5267 + $0x130] sm:$0xff]
      %v5307 = vld [vmem:[%s5267 + $0x138] sm:$0xff]
      %v5308 = vld [vmem:[%s5267 + $0x140] sm:$0xff]
      %v5309 = vld [vmem:[%s5267 + $0x148] sm:$0xff]
      %v5310 = vld [vmem:[%s5267 + $0x150] sm:$0xff]
      %v5311 = vld [vmem:[%s5267 + $0x158] sm:$0xff]
      %v5312 = vld [vmem:[%s5267 + $0x160] sm:$0xff]
      %v5313 = vld [vmem:[%s5267 + $0x168] sm:$0xff]
      %v5314 = vld [vmem:[%s5267 + $0x170] sm:$0xff]
      %v5315 = vld [vmem:[%s5267 + $0x178] sm:$0xff]
      %v5316 = vld [vmem:[%s5267 + $0x180] sm:$0xff]
      %v5317 = vld [vmem:[%s5267 + $0x188] sm:$0xff]
      %v5318 = vld [vmem:[%s5267 + $0x190] sm:$0xff]
      %v5319 = vld [vmem:[%s5267 + $0x198] sm:$0xff]
      %v5320 = vld [vmem:[%s5267 + $0x1a0] sm:$0xff]
      %v5321 = vld [vmem:[%s5267 + $0x1a8] sm:$0xff]
      %v5322 = vld [vmem:[%s5267 + $0x1b0] sm:$0xff]
      %v5323 = vld [vmem:[%s5267 + $0x1b8] sm:$0xff]
      %v5324 = vrot.slane %v4976, 2
      %v5325 = vrot.slane %v4978, 2
      %v5326 = vsel %vm1117, %v5324, %v5325
      %v5327 = vrot.slane %v4977, 2
      %v5328 = vrot.slane %v4979, 2
      %v5329 = vsel %vm1117, %v5327, %v5328
      %v5332 = vsel %vm4603, %v5329, 0
      %v5334 = vsel %vm4603, %v5328, 0
      %5336 = vmatprep.subr.mxu0 %v5269
      %5337 = vmatpush1.msra.mxu0 %v5268
      %5338 = vmatprep.subr.mxu0 %v5271
      %5339 = vmatpush1.msra.mxu0 %v5270
      %5340 = vmatprep.subr.mxu0 %v5273
      %5341 = vmatpush1.msra.mxu0 %v5272
      %5342 = vmatprep.subr.mxu0 %v5275
      %5343 = vmatpush1.msra.mxu0 %v5274
      %5344 = vmatprep.subr.mxu0 %v5277
      %5345 = vmatpush1.msra.mxu0 %v5276
      %5346 = vmatprep.subr.mxu0 %v5279
      %5347 = vmatpush1.msra.mxu0 %v5278
      %5348 = vmatprep.subr.mxu0 %v5281
      %5349 = vmatpush1.msra.mxu0 %v5280
      %5350 = vmatprep.subr.mxu0 %v5283
      %5351 = vmatpush1.msra.mxu0 %v5282
      %5352 = vmatprep.subr.mxu0 %v5285
      %5353 = vmatpush1.msra.mxu0 %v5284
      %5354 = vmatprep.subr.mxu0 %v5287
      %5355 = vmatpush1.msra.mxu0 %v5286
      %5356 = vmatprep.subr.mxu0 %v5289
      %5357 = vmatpush1.msra.mxu0 %v5288
      %5358 = vmatprep.subr.mxu0 %v5291
      %5359 = vmatpush1.msra.mxu0 %v5290
      %5360 = vmatprep.subr.mxu0 %v5293
      %5361 = vmatpush1.msra.mxu0 %v5292
      %5362 = vmatprep.subr.mxu0 %v5295
      %5363 = vmatpush1.msra.mxu0 %v5294
      %5364 = vmatprep.subr.mxu0 %v5297
      %5365 = vmatpush1.msra.mxu0 %v5296
      %5366 = vmatprep.subr.mxu0 %v5299
      %5367 = vmatpush1.msra.mxu0 %v5298
      %5368 = vmatprep.subr.mxu0 %v5301
      %5369 = vmatpush1.msra.mxu0 %v5300
      %5370 = vmatprep.subr.mxu0 %v5303
      %5371 = vmatpush1.msra.mxu0 %v5302
      %5372 = vmatprep.subr.mxu0 %v5305
      %5373 = vmatpush1.msra.mxu0 %v5304
      %5374 = vmatprep.subr.mxu0 %v5307
      %5375 = vmatpush1.msra.mxu0 %v5306
      %5376 = vmatprep.subr.mxu0 %v5309
      %5377 = vmatpush1.msra.mxu0 %v5308
      %5378 = vmatprep.subr.mxu0 %v5311
      %5379 = vmatpush1.msra.mxu0 %v5310
      %5380 = vmatprep.subr.mxu0 %v5313
      %5381 = vmatpush1.msra.mxu0 %v5312
      %5382 = vmatprep.subr.mxu0 %v5315
      %5383 = vmatpush1.msra.mxu0 %v5314
      %5384 = vmatprep.subr.mxu0 %v5317
      %5385 = vmatpush1.msra.mxu0 %v5316
      %5386 = vmatprep.subr.mxu0 %v5319
      %5387 = vmatpush1.msra.mxu0 %v5318
      %5388 = vmatprep.subr.mxu0 %v5321
      %5389 = vmatpush1.msra.mxu0 %v5320
      %5390 = vmatprep.subr.mxu0 %v5323
      %5391 = vmatpush1.msra.mxu0 %v5322
      %5392 = vmatprep.subr.mxu0 0.0
      %5393 = vmatpush1.msra.mxu0 0.0
      %5394 = vmatprep.subr.mxu0 0.0
      %5395 = vmatpush1.msra.mxu0 0.0
      %5396 = vmatprep.subr.mxu0 0.0
      %5397 = vmatpush1.msra.mxu0 0.0
      %5398 = vmatprep.subr.mxu0 0.0
      %5399 = vmatpush1.msra.mxu0 0.0
      %5400 = vmatprep.mubr.f32.mxu0 %v5332
      %5401 = vmatmul.mubr.f32.gmra.mrb[0].mxu0 %v5326
      %v5402 = vpop.f32.mrb[0].mxu0
      %v5403 = vadd.f32 0.0, %v5402
      %v5404 = vpop.f32.mrb[0].mxu0
      %v5405 = vadd.f32 0.0, %v5404
      %5406 = vmatprep.mubr.f32.mxu0 %v5334
      %5407 = vmatmul.mubr.f32.gmra.mrb[0].mxu0 %v5325
      %v5408 = vpop.f32.mrb[0].mxu0
      %v5409 = vadd.f32 0.0, %v5408
      %v5410 = vpop.f32.mrb[0].mxu0
      %v5411 = vadd.f32 0.0, %v5410
      %5412 = vdwg.mxu0
      %v5413 = vadd.f32 %v5257, %v5403
      %v5414 = vadd.f32 %v5259, %v5405
      %v5415 = vadd.f32 %v5263, %v5409
      %v5416 = vadd.f32 %v5265, %v5411
      %v5417 = vld [vmem:[%s8] sm:$0x3]
      %v5419 = vlaneseq
      %v5420 = vshrl.u32 %v5419, 7
      %v5421 = vsub.s32 0, %v5420
      %v5422 = vrot.slane %v5417, %v5421
      %v5423 = vlaneseq
      %v5424 = vshrl.u32 %v5423, 7
      %v5425 = vsub.s32 1, %v5424
      %v5426 = vrot.slane %v5417, %v5425
      %v5429 = vadd.f32 %v5413, %v5422
      %v5430 = vadd.f32 %v5414, %v5426
      %v5431 = vadd.f32 %v5415, %v5422
      %v5432 = vadd.f32 %v5416, %v5426
      %v5433 = vmax.f32 %v5429, 0.0
      %v5434 = vmax.f32 %v5430, 0.0
      %v5435 = vmax.f32 %v5431, 0.0
      %v5436 = vmax.f32 %v5432, 0.0
      %5437 = vst [vmem:[%s513] sm:$0xff] %v5433
      %5438 = vst.msk [vmem:[%s513 + $0x8] sm:$0xff] %vm4591, %v5434
      %5439 = vst [vmem:[%s513 + $0x10] sm:$0xf] %v5435
      %vm5440 = vcmask 519168
      %5441 = vst.msk [vmem:[%s513 + $0x18] sm:$0xf] %vm5440, %v5436
      %5444 = vrot.lane.b32.xlu0 %v5433, 96
      %v5445 = vpop.permute.xlu0 %5444
      %5446 = vrot.lane.b32.xlu0 %v5435, 96
      %v5447 = vpop.permute.xlu0 %5446
      %5450 = vrot.lane.b32.xlu0 %v5433, 64
      %v5451 = vpop.permute.xlu0 %5450
      %5452 = vrot.lane.b32.xlu0 %v5435, 64
      %v5453 = vpop.permute.xlu0 %5452
      %5456 = vrot.lane.b32.xlu0 %v5433, 32
      %v5457 = vpop.permute.xlu0 %5456
      %5458 = vrot.lane.b32.xlu0 %v5435, 32
      %v5459 = vpop.permute.xlu0 %5458
      %5464 = vrot.lane.b32.xlu0 %v5434, 96
      %v5465 = vpop.permute.xlu0 %5464
      %5466 = vrot.lane.b32.xlu0 %v5436, 96
      %v5467 = vpop.permute.xlu0 %5466
      %v5469 = vcombine.low %v5433, %v5451
      %v5470 = vcombine.high %v5433, %v5451
      %v5472 = vunpack.c.l.s4 1983009808
      %v5473 = vunpack.c.0.s8 %v5472
      %v5474 = vlaneseq
      %v5475 = vshrl.u32 %v5474, 7
      %v5476 = vsub.s32 %v5473, %v5475
      %v5477 = vrot.slane %v5469, %v5476
      %v5479 = vunpack.c.l.s4 1983009808
      %v5480 = vunpack.c.0.s8 %v5479
      %v5481 = vlaneseq
      %v5482 = vshrl.u32 %v5481, 7
      %v5483 = vsub.s32 %v5480, %v5482
      %v5484 = vrot.slane %v5470, %v5483
      %v5485 = vcombine.low %v5445, %v5457
      %v5486 = vcombine.high %v5445, %v5457
      %v5488 = vunpack.c.l.s4 1983009808
      %v5489 = vunpack.c.0.s8 %v5488
      %v5490 = vlaneseq
      %v5491 = vshrl.u32 %v5490, 7
      %v5492 = vsub.s32 %v5489, %v5491
      %v5493 = vrot.slane %v5485, %v5492
      %v5495 = vunpack.c.l.s4 1983009808
      %v5496 = vunpack.c.0.s8 %v5495
      %v5497 = vlaneseq
      %v5498 = vshrl.u32 %v5497, 7
      %v5499 = vsub.s32 %v5496, %v5498
      %v5500 = vrot.slane %v5486, %v5499
      %v5501 = vcombine.high %v5434, 0.0
      %v5503 = vunpack.c.l.s4 1983009808
      %v5504 = vunpack.c.0.s8 %v5503
      %v5505 = vlaneseq
      %v5506 = vshrl.u32 %v5505, 7
      %v5507 = vsub.s32 %v5504, %v5506
      %v5508 = vrot.slane %v5434, %v5507
      %v5510 = vunpack.c.l.s4 1983009808
      %v5511 = vunpack.c.0.s8 %v5510
      %v5512 = vlaneseq
      %v5513 = vshrl.u32 %v5512, 7
      %v5514 = vsub.s32 %v5511, %v5513
      %v5515 = vrot.slane %v5501, %v5514
      %v5516 = vcombine.high %v5465, 0.0
      %v5518 = vunpack.c.l.s4 1983009808
      %v5519 = vunpack.c.0.s8 %v5518
      %v5520 = vlaneseq
      %v5521 = vshrl.u32 %v5520, 7
      %v5522 = vsub.s32 %v5519, %v5521
      %v5523 = vrot.slane %v5465, %v5522
      %v5525 = vunpack.c.l.s4 1983009808
      %v5526 = vunpack.c.0.s8 %v5525
      %v5527 = vlaneseq
      %v5528 = vshrl.u32 %v5527, 7
      %v5529 = vsub.s32 %v5526, %v5528
      %v5530 = vrot.slane %v5516, %v5529
      %v5531 = vcombine.low %v5477, %v5493
      %v5532 = vcombine.high %v5477, %v5493
      %v5534 = vunpack.c.l.s4 1934713408
      %v5535 = vunpack.c.0.s8 %v5534
      %v5536 = vlaneseq
      %v5537 = vshrl.u32 %v5536, 7
      %v5538 = vsub.s32 %v5535, %v5537
      %v5539 = vrot.slane %v5531, %v5538
      %v5541 = vunpack.c.l.s4 1934713408
      %v5542 = vunpack.c.0.s8 %v5541
      %v5543 = vlaneseq
      %v5544 = vshrl.u32 %v5543, 7
      %v5545 = vsub.s32 %v5542, %v5544
      %v5546 = vrot.slane %v5532, %v5545
      %v5547 = vcombine.low %v5484, %v5500
      %v5548 = vcombine.high %v5484, %v5500
      %v5550 = vunpack.c.l.s4 1934713408
      %v5551 = vunpack.c.0.s8 %v5550
      %v5552 = vlaneseq
      %v5553 = vshrl.u32 %v5552, 7
      %v5554 = vsub.s32 %v5551, %v5553
      %v5555 = vrot.slane %v5547, %v5554
      %v5557 = vunpack.c.l.s4 1934713408
      %v5558 = vunpack.c.0.s8 %v5557
      %v5559 = vlaneseq
      %v5560 = vshrl.u32 %v5559, 7
      %v5561 = vsub.s32 %v5558, %v5560
      %v5562 = vrot.slane %v5548, %v5561
      %v5563 = vcombine.low %v5508, %v5523
      %v5564 = vcombine.high %v5508, %v5523
      %v5566 = vunpack.c.l.s4 1934713408
      %v5567 = vunpack.c.0.s8 %v5566
      %v5568 = vlaneseq
      %v5569 = vshrl.u32 %v5568, 7
      %v5570 = vsub.s32 %v5567, %v5569
      %v5571 = vrot.slane %v5563, %v5570
      %v5573 = vunpack.c.l.s4 1934713408
      %v5574 = vunpack.c.0.s8 %v5573
      %v5575 = vlaneseq
      %v5576 = vshrl.u32 %v5575, 7
      %v5577 = vsub.s32 %v5574, %v5576
      %v5578 = vrot.slane %v5564, %v5577
      %v5579 = vcombine.low %v5515, %v5530
      %v5580 = vcombine.high %v5515, %v5530
      %v5582 = vunpack.c.l.s4 1934713408
      %v5583 = vunpack.c.0.s8 %v5582
      %v5584 = vlaneseq
      %v5585 = vshrl.u32 %v5584, 7
      %v5586 = vsub.s32 %v5583, %v5585
      %v5587 = vrot.slane %v5579, %v5586
      %v5589 = vunpack.c.l.s4 1934713408
      %v5590 = vunpack.c.0.s8 %v5589
      %v5591 = vlaneseq
      %v5592 = vshrl.u32 %v5591, 7
      %v5593 = vsub.s32 %v5590, %v5592
      %v5594 = vrot.slane %v5580, %v5593
      %v5595 = vcombine.low %v5539, %v5571
      %v5596 = vcombine.high %v5539, %v5571
      %v5597 = vcombine.low %v5546, %v5578
      %v5598 = vcombine.high %v5546, %v5578
      %v5599 = vcombine.low %v5555, %v5587
      %v5600 = vcombine.high %v5555, %v5587
      %v5601 = vcombine.low %v5562, %v5594
      %v5602 = vcombine.high %v5562, %v5594
      %v5603 = vcombine.low %v5435, %v5453
      %v5605 = vunpack.c.l.s4 1983009808
      %v5606 = vunpack.c.0.s8 %v5605
      %v5607 = vlaneseq
      %v5608 = vshrl.u32 %v5607, 7
      %v5609 = vsub.s32 %v5606, %v5608
      %v5610 = vrot.slane %v5603, %v5609
      %v5611 = vcombine.low %v5447, %v5459
      %v5613 = vunpack.c.l.s4 1983009808
      %v5614 = vunpack.c.0.s8 %v5613
      %v5615 = vlaneseq
      %v5616 = vshrl.u32 %v5615, 7
      %v5617 = vsub.s32 %v5614, %v5616
      %v5618 = vrot.slane %v5611, %v5617
      %v5620 = vunpack.c.l.s4 1983009808
      %v5621 = vunpack.c.0.s8 %v5620
      %v5622 = vlaneseq
      %v5623 = vshrl.u32 %v5622, 7
      %v5624 = vsub.s32 %v5621, %v5623
      %v5625 = vrot.slane %v5436, %v5624
      %v5628 = vunpack.c.l.s4 1983009808
      %v5629 = vunpack.c.0.s8 %v5628
      %v5630 = vlaneseq
      %v5631 = vshrl.u32 %v5630, 7
      %v5632 = vsub.s32 %v5629, %v5631
      %v5633 = vrot.slane %v5467, %v5632
      %v5634 = vcombine.low %v5610, %v5618
      %v5635 = vcombine.high %v5610, %v5618
      %v5637 = vunpack.c.l.s4 1934713408
      %v5638 = vunpack.c.0.s8 %v5637
      %v5639 = vlaneseq
      %v5640 = vshrl.u32 %v5639, 7
      %v5641 = vsub.s32 %v5638, %v5640
      %v5642 = vrot.slane %v5634, %v5641
      %v5644 = vunpack.c.l.s4 1934713408
      %v5645 = vunpack.c.0.s8 %v5644
      %v5646 = vlaneseq
      %v5647 = vshrl.u32 %v5646, 7
      %v5648 = vsub.s32 %v5645, %v5647
      %v5649 = vrot.slane %v5635, %v5648
      %v5650 = vcombine.low %v5625, %v5633
      %v5651 = vcombine.high %v5625, %v5633
      %v5653 = vunpack.c.l.s4 1934713408
      %v5654 = vunpack.c.0.s8 %v5653
      %v5655 = vlaneseq
      %v5656 = vshrl.u32 %v5655, 7
      %v5657 = vsub.s32 %v5654, %v5656
      %v5658 = vrot.slane %v5650, %v5657
      %v5660 = vunpack.c.l.s4 1934713408
      %v5661 = vunpack.c.0.s8 %v5660
      %v5662 = vlaneseq
      %v5663 = vshrl.u32 %v5662, 7
      %v5664 = vsub.s32 %v5661, %v5663
      %v5665 = vrot.slane %v5651, %v5664
      %v5666 = vcombine.low %v5642, %v5658
      %v5667 = vcombine.high %v5642, %v5658
      %v5668 = vcombine.low %v5649, %v5665
      %v5669 = vcombine.high %v5649, %v5665
      %5682 = vrot.lane.b32.xlu0 %v5595, 112
      %v5683 = vpop.permute.xlu0 %5682
      %5684 = vrot.lane.b32.xlu0 %v5596, 112
      %v5685 = vpop.permute.xlu0 %5684
      %5686 = vrot.lane.b32.xlu0 %v5597, 112
      %v5687 = vpop.permute.xlu0 %5686
      %5688 = vrot.lane.b32.xlu0 %v5598, 112
      %v5689 = vpop.permute.xlu0 %5688
      %5690 = vrot.lane.b32.xlu0 %v5599, 112
      %v5691 = vpop.permute.xlu0 %5690
      %5692 = vrot.lane.b32.xlu0 %v5600, 112
      %v5693 = vpop.permute.xlu0 %5692
      %5694 = vrot.lane.b32.xlu0 %v5601, 112
      %v5695 = vpop.permute.xlu0 %5694
      %5696 = vrot.lane.b32.xlu0 %v5602, 112
      %v5697 = vpop.permute.xlu0 %5696
      %5698 = vrot.lane.b32.xlu0 %v5666, 112
      %v5699 = vpop.permute.xlu0 %5698
      %5700 = vrot.lane.b32.xlu0 %v5667, 112
      %v5701 = vpop.permute.xlu0 %5700
      %5702 = vrot.lane.b32.xlu0 %v5668, 112
      %v5703 = vpop.permute.xlu0 %5702
      %5704 = vrot.lane.b32.xlu0 %v5669, 112
      %v5705 = vpop.permute.xlu0 %5704
      %v5718 = vmax.f32 %v5595, %v5683
      %v5719 = vmax.f32 %v5596, %v5685
      %v5720 = vmax.f32 %v5597, %v5687
      %v5721 = vmax.f32 %v5598, %v5689
      %v5722 = vmax.f32 %v5599, %v5691
      %v5723 = vmax.f32 %v5600, %v5693
      %v5724 = vmax.f32 %v5601, %v5695
      %v5725 = vmax.f32 %v5602, %v5697
      %v5726 = vmax.f32 %v5666, %v5699
      %v5727 = vmax.f32 %v5667, %v5701
      %v5728 = vmax.f32 %v5668, %v5703
      %v5729 = vmax.f32 %v5669, %v5705
      %v5730 = vmax.f32 %v5718, %v5719
      %v5731 = vmax.f32 %v5720, %v5721
      %v5732 = vmax.f32 %v5722, %v5723
      %v5733 = vmax.f32 %v5724, %v5725
      %v5734 = vmax.f32 %v5726, %v5727
      %v5735 = vmax.f32 %v5728, %v5729
      %v5736 = vcombine.low %v5730, %v5732
      %v5737 = vcombine.high %v5730, %v5732
      %v5739 = vunpack.c.l.s4 1983009808
      %v5740 = vunpack.c.0.s8 %v5739
      %v5741 = vlaneseq
      %v5742 = vshrl.u32 %v5741, 7
      %v5743 = vsub.s32 %v5740, %v5742
      %v5744 = vrot.slane %v5736, %v5743
      %v5746 = vunpack.c.l.s4 1983009808
      %v5747 = vunpack.c.0.s8 %v5746
      %v5748 = vlaneseq
      %v5749 = vshrl.u32 %v5748, 7
      %v5750 = vsub.s32 %v5747, %v5749
      %v5751 = vrot.slane %v5737, %v5750
      %v5752 = vcombine.low %v5731, %v5733
      %v5753 = vcombine.high %v5731, %v5733
      %v5755 = vunpack.c.l.s4 1983009808
      %v5756 = vunpack.c.0.s8 %v5755
      %v5757 = vlaneseq
      %v5758 = vshrl.u32 %v5757, 7
      %v5759 = vsub.s32 %v5756, %v5758
      %v5760 = vrot.slane %v5752, %v5759
      %v5762 = vunpack.c.l.s4 1983009808
      %v5763 = vunpack.c.0.s8 %v5762
      %v5764 = vlaneseq
      %v5765 = vshrl.u32 %v5764, 7
      %v5766 = vsub.s32 %v5763, %v5765
      %v5767 = vrot.slane %v5753, %v5766
      %v5769 = vunpack.c.l.s4 1983009808
      %v5770 = vunpack.c.0.s8 %v5769
      %v5771 = vlaneseq
      %v5772 = vshrl.u32 %v5771, 7
      %v5773 = vsub.s32 %v5770, %v5772
      %v5774 = vrot.slane %v5734, %v5773
      %v5775 = vcombine.high %v5734, 0.0
      %v5777 = vunpack.c.l.s4 1983009808
      %v5778 = vunpack.c.0.s8 %v5777
      %v5779 = vlaneseq
      %v5780 = vshrl.u32 %v5779, 7
      %v5781 = vsub.s32 %v5778, %v5780
      %v5782 = vrot.slane %v5735, %v5781
      %v5783 = vcombine.high %v5735, 0.0
      %v5784 = vcombine.low %v5744, %v5760
      %v5785 = vcombine.high %v5744, %v5760
      %v5787 = vunpack.c.l.s4 1934713408
      %v5788 = vunpack.c.0.s8 %v5787
      %v5789 = vlaneseq
      %v5790 = vshrl.u32 %v5789, 7
      %v5791 = vsub.s32 %v5788, %v5790
      %v5792 = vrot.slane %v5784, %v5791
      %v5794 = vunpack.c.l.s4 1934713408
      %v5795 = vunpack.c.0.s8 %v5794
      %v5796 = vlaneseq
      %v5797 = vshrl.u32 %v5796, 7
      %v5798 = vsub.s32 %v5795, %v5797
      %v5799 = vrot.slane %v5785, %v5798
      %v5800 = vcombine.low %v5751, %v5767
      %v5802 = vunpack.c.l.s4 1934713408
      %v5803 = vunpack.c.0.s8 %v5802
      %v5804 = vlaneseq
      %v5805 = vshrl.u32 %v5804, 7
      %v5806 = vsub.s32 %v5803, %v5805
      %v5807 = vrot.slane %v5800, %v5806
      %v5808 = vcombine.low %v5774, %v5782
      %v5809 = vcombine.high %v5774, %v5782
      %v5811 = vunpack.c.l.s4 1934713408
      %v5812 = vunpack.c.0.s8 %v5811
      %v5813 = vlaneseq
      %v5814 = vshrl.u32 %v5813, 7
      %v5815 = vsub.s32 %v5812, %v5814
      %v5816 = vrot.slane %v5808, %v5815
      %v5818 = vunpack.c.l.s4 1934713408
      %v5819 = vunpack.c.0.s8 %v5818
      %v5820 = vlaneseq
      %v5821 = vshrl.u32 %v5820, 7
      %v5822 = vsub.s32 %v5819, %v5821
      %v5823 = vrot.slane %v5809, %v5822
      %v5824 = vcombine.low %v5775, %v5783
      %v5826 = vunpack.c.l.s4 1934713408
      %v5827 = vunpack.c.0.s8 %v5826
      %v5828 = vlaneseq
      %v5829 = vshrl.u32 %v5828, 7
      %v5830 = vsub.s32 %v5827, %v5829
      %v5831 = vrot.slane %v5824, %v5830
      %v5832 = vcombine.low %v5792, %v5816
      %v5833 = vcombine.high %v5792, %v5816
      %v5834 = vcombine.low %v5799, %v5823
      %v5835 = vcombine.high %v5799, %v5823
      %v5836 = vcombine.low %v5807, %v5831
      %v5837 = vcombine.high %v5807, %v5831
      %5839 = vrot.lane.b32.xlu0 %v5833, 16
      %v5840 = vpop.permute.xlu0 %5839
      %5843 = vrot.lane.b32.xlu0 %v5834, 32
      %v5844 = vpop.permute.xlu0 %5843
      %5847 = vrot.lane.b32.xlu0 %v5835, 48
      %v5848 = vpop.permute.xlu0 %5847
      %5851 = vrot.lane.b32.xlu0 %v5836, 64
      %v5852 = vpop.permute.xlu0 %5851
      %5855 = vrot.lane.b32.xlu0 %v5837, 80
      %v5856 = vpop.permute.xlu0 %5855
      %v5858 = vsel %vm671, %v5832, %v5840
      %v5859 = vsel %vm4579, %v5858, %v5844
      %v5860 = vsel %vm4585, %v5859, %v5848
      %v5861 = vsel %vm4591, %v5860, %v5852
      %v5862 = vsel %vm4597, %v5861, %v5856
      %v5863 = vld [vmem:[%s9] sm:$0xff]
      %v5864 = vld [vmem:[%s9 + $0x8] sm:$0xff]
      %v5865 = vld [vmem:[%s9 + $0x10] sm:$0xff]
      %v5866 = vld [vmem:[%s9 + $0x18] sm:$0xff]
      %v5867 = vld [vmem:[%s9 + $0x20] sm:$0xff]
      %v5868 = vld [vmem:[%s9 + $0x28] sm:$0xff]
      %v5869 = vld [vmem:[%s9 + $0x30] sm:$0xff]
      %v5870 = vld [vmem:[%s9 + $0x38] sm:$0xff]
      %v5871 = vld [vmem:[%s9 + $0x40] sm:$0xff]
      %v5872 = vld [vmem:[%s9 + $0x48] sm:$0xff]
      %v5873 = vld [vmem:[%s9 + $0x50] sm:$0xff]
      %v5874 = vld [vmem:[%s9 + $0x58] sm:$0xff]
      %s5875 = scalar_lea.vmem %s9, 96
      %v5876 = vld [vmem:[%s5875] sm:$0xff]
      %v5877 = vld [vmem:[%s5875 + $0x8] sm:$0xff]
      %v5878 = vld [vmem:[%s5875 + $0x10] sm:$0xff]
      %v5879 = vld [vmem:[%s5875 + $0x18] sm:$0xff]
      %v5880 = vld [vmem:[%s5875 + $0x20] sm:$0xff]
      %v5881 = vld [vmem:[%s5875 + $0x28] sm:$0xff]
      %v5882 = vld [vmem:[%s5875 + $0x30] sm:$0xff]
      %v5883 = vld [vmem:[%s5875 + $0x38] sm:$0xff]
      %v5884 = vld [vmem:[%s5875 + $0x40] sm:$0xff]
      %v5885 = vld [vmem:[%s5875 + $0x48] sm:$0xff]
      %v5886 = vld [vmem:[%s5875 + $0x50] sm:$0xff]
      %v5887 = vld [vmem:[%s5875 + $0x58] sm:$0xff]
      %v5889 = vrot.slane %v5862, 1
      %v5890 = vsel %vm4603, %v5889, 0
      %5892 = vmatprep.subr.mxu0 0.0
      %5893 = vmatpush1.msra.mxu0 %v5876
      %5894 = vmatprep.subr.mxu0 0.0
      %5895 = vmatpush1.msra.mxu0 %v5877
      %5896 = vmatprep.subr.mxu0 0.0
      %5897 = vmatpush1.msra.mxu0 %v5878
      %5898 = vmatprep.subr.mxu0 0.0
      %5899 = vmatpush1.msra.mxu0 %v5879
      %5900 = vmatprep.subr.mxu0 0.0
      %5901 = vmatpush1.msra.mxu0 %v5880
      %5902 = vmatprep.subr.mxu0 0.0
      %5903 = vmatpush1.msra.mxu0 %v5881
      %5904 = vmatprep.subr.mxu0 0.0
      %5905 = vmatpush1.msra.mxu0 %v5882
      %5906 = vmatprep.subr.mxu0 0.0
      %5907 = vmatpush1.msra.mxu0 %v5883
      %5908 = vmatprep.subr.mxu0 0.0
      %5909 = vmatpush1.msra.mxu0 %v5884
      %5910 = vmatprep.subr.mxu0 0.0
      %5911 = vmatpush1.msra.mxu0 %v5885
      %5912 = vmatprep.subr.mxu0 0.0
      %5913 = vmatpush1.msra.mxu0 %v5886
      %5914 = vmatprep.subr.mxu0 0.0
      %5915 = vmatpush1.msra.mxu0 %v5887
      %5916 = vmatprep.subr.mxu0 0.0
      %5917 = vmatpush1.msra.mxu0 0.0
      %5918 = vmatprep.subr.mxu0 0.0
      %5919 = vmatpush1.msra.mxu0 0.0
      %5920 = vmatprep.subr.mxu0 0.0
      %5921 = vmatpush1.msra.mxu0 0.0
      %5922 = vmatprep.subr.mxu0 0.0
      %5923 = vmatpush1.msra.mxu0 0.0
      %5924 = vmatprep.subr.mxu0 0.0
      %5925 = vmatpush1.msra.mxu0 0.0
      %5926 = vmatprep.subr.mxu0 0.0
      %5927 = vmatpush1.msra.mxu0 0.0
      %5928 = vmatprep.subr.mxu0 0.0
      %5929 = vmatpush1.msra.mxu0 0.0
      %5930 = vmatprep.subr.mxu0 0.0
      %5931 = vmatpush1.msra.mxu0 0.0
      %5932 = vmatprep.subr.mxu0 0.0
      %5933 = vmatpush1.msra.mxu0 0.0
      %5934 = vmatprep.subr.mxu0 0.0
      %5935 = vmatpush1.msra.mxu0 0.0
      %5936 = vmatprep.subr.mxu0 0.0
      %5937 = vmatpush1.msra.mxu0 0.0
      %5938 = vmatprep.subr.mxu0 0.0
      %5939 = vmatpush1.msra.mxu0 0.0
      %5940 = vmatprep.subr.mxu0 0.0
      %5941 = vmatpush1.msra.mxu0 0.0
      %5942 = vmatprep.subr.mxu0 0.0
      %5943 = vmatpush1.msra.mxu0 0.0
      %5944 = vmatprep.subr.mxu0 0.0
      %5945 = vmatpush1.msra.mxu0 0.0
      %5946 = vmatprep.subr.mxu0 0.0
      %5947 = vmatpush1.msra.mxu0 0.0
      %5948 = vmatprep.subr.mxu0 0.0
      %5949 = vmatpush1.msra.mxu0 0.0
      %5950 = vmatprep.subr.mxu0 0.0
      %5951 = vmatpush1.msra.mxu0 0.0
      %5952 = vmatprep.subr.mxu0 0.0
      %5953 = vmatpush1.msra.mxu0 0.0
      %5954 = vmatprep.subr.mxu0 0.0
      %5955 = vmatpush1.msra.mxu0 0.0
      %5956 = vmatprep.mubr.f32.mxu0 0.0
      %5957 = vmatmul.mubr.f32.gmra.mrb[0].mxu0 %v5890
      %v5958 = vpop.f32.mrb[0].mxu0
      %v5959 = vadd.f32 0.0, %v5958
      %v5960 = vpop.f32.mrb[0].mxu0
      %5961 = vdwg.mxu0
      %v5962 = vsel %vm4603, %v5862, 0
      %5964 = vmatprep.subr.mxu0 0.0
      %5965 = vmatpush1.msra.mxu0 %v5863
      %5966 = vmatprep.subr.mxu0 0.0
      %5967 = vmatpush1.msra.mxu0 %v5864
      %5968 = vmatprep.subr.mxu0 0.0
      %5969 = vmatpush1.msra.mxu0 %v5865
      %5970 = vmatprep.subr.mxu0 0.0
      %5971 = vmatpush1.msra.mxu0 %v5866
      %5972 = vmatprep.subr.mxu0 0.0
      %5973 = vmatpush1.msra.mxu0 %v5867
      %5974 = vmatprep.subr.mxu0 0.0
      %5975 = vmatpush1.msra.mxu0 %v5868
      %5976 = vmatprep.subr.mxu0 0.0
      %5977 = vmatpush1.msra.mxu0 %v5869
      %5978 = vmatprep.subr.mxu0 0.0
      %5979 = vmatpush1.msra.mxu0 %v5870
      %5980 = vmatprep.subr.mxu0 0.0
      %5981 = vmatpush1.msra.mxu0 %v5871
      %5982 = vmatprep.subr.mxu0 0.0
      %5983 = vmatpush1.msra.mxu0 %v5872
      %5984 = vmatprep.subr.mxu0 0.0
      %5985 = vmatpush1.msra.mxu0 %v5873
      %5986 = vmatprep.subr.mxu0 0.0
      %5987 = vmatpush1.msra.mxu0 %v5874
      %5988 = vmatprep.subr.mxu0 0.0
      %5989 = vmatpush1.msra.mxu0 0.0
      %5990 = vmatprep.subr.mxu0 0.0
      %5991 = vmatpush1.msra.mxu0 0.0
      %5992 = vmatprep.subr.mxu0 0.0
      %5993 = vmatpush1.msra.mxu0 0.0
      %5994 = vmatprep.subr.mxu0 0.0
      %5995 = vmatpush1.msra.mxu0 0.0
      %5996 = vmatprep.subr.mxu0 0.0
      %5997 = vmatpush1.msra.mxu0 0.0
      %5998 = vmatprep.subr.mxu0 0.0
      %5999 = vmatpush1.msra.mxu0 0.0
      %6000 = vmatprep.subr.mxu0 0.0
      %6001 = vmatpush1.msra.mxu0 0.0
      %6002 = vmatprep.subr.mxu0 0.0
      %6003 = vmatpush1.msra.mxu0 0.0
      %6004 = vmatprep.subr.mxu0 0.0
      %6005 = vmatpush1.msra.mxu0 0.0
      %6006 = vmatprep.subr.mxu0 0.0
      %6007 = vmatpush1.msra.mxu0 0.0
      %6008 = vmatprep.subr.mxu0 0.0
      %6009 = vmatpush1.msra.mxu0 0.0
      %6010 = vmatprep.subr.mxu0 0.0
      %6011 = vmatpush1.msra.mxu0 0.0
      %6012 = vmatprep.subr.mxu0 0.0
      %6013 = vmatpush1.msra.mxu0 0.0
      %6014 = vmatprep.subr.mxu0 0.0
      %6015 = vmatpush1.msra.mxu0 0.0
      %6016 = vmatprep.subr.mxu0 0.0
      %6017 = vmatpush1.msra.mxu0 0.0
      %6018 = vmatprep.subr.mxu0 0.0
      %6019 = vmatpush1.msra.mxu0 0.0
      %6020 = vmatprep.subr.mxu0 0.0
      %6021 = vmatpush1.msra.mxu0 0.0
      %6022 = vmatprep.subr.mxu0 0.0
      %6023 = vmatpush1.msra.mxu0 0.0
      %6024 = vmatprep.subr.mxu0 0.0
      %6025 = vmatpush1.msra.mxu0 0.0
      %6026 = vmatprep.subr.mxu0 0.0
      %6027 = vmatpush1.msra.mxu0 0.0
      %6028 = vmatprep.mubr.f32.mxu0 0.0
      %6029 = vmatmul.mubr.f32.gmra.mrb[0].mxu0 %v5962
      %v6030 = vpop.f32.mrb[0].mxu0
      %v6031 = vadd.f32 %v5959, %v6030
      %v6032 = vpop.f32.mrb[0].mxu0
      %6033 = vdwg.mxu0
      %s6034 = scalar_lea.vmem %s9, 192
      %v6035 = vld [vmem:[%s6034] sm:$0xff]
      %v6036 = vld [vmem:[%s6034 + $0x8] sm:$0xff]
      %v6037 = vld [vmem:[%s6034 + $0x10] sm:$0xff]
      %v6038 = vld [vmem:[%s6034 + $0x18] sm:$0xff]
      %v6039 = vld [vmem:[%s6034 + $0x20] sm:$0xff]
      %v6040 = vld [vmem:[%s6034 + $0x28] sm:$0xff]
      %v6041 = vld [vmem:[%s6034 + $0x30] sm:$0xff]
      %v6042 = vld [vmem:[%s6034 + $0x38] sm:$0xff]
      %v6043 = vld [vmem:[%s6034 + $0x40] sm:$0xff]
      %v6044 = vld [vmem:[%s6034 + $0x48] sm:$0xff]
      %v6045 = vld [vmem:[%s6034 + $0x50] sm:$0xff]
      %v6046 = vld [vmem:[%s6034 + $0x58] sm:$0xff]
      %v6047 = vrot.slane %v5862, 2
      %v6048 = vsel %vm4603, %v6047, 0
      %6050 = vmatprep.subr.mxu0 0.0
      %6051 = vmatpush1.msra.mxu0 %v6035
      %6052 = vmatprep.subr.mxu0 0.0
      %6053 = vmatpush1.msra.mxu0 %v6036
      %6054 = vmatprep.subr.mxu0 0.0
      %6055 = vmatpush1.msra.mxu0 %v6037
      %6056 = vmatprep.subr.mxu0 0.0
      %6057 = vmatpush1.msra.mxu0 %v6038
      %6058 = vmatprep.subr.mxu0 0.0
      %6059 = vmatpush1.msra.mxu0 %v6039
      %6060 = vmatprep.subr.mxu0 0.0
      %6061 = vmatpush1.msra.mxu0 %v6040
      %6062 = vmatprep.subr.mxu0 0.0
      %6063 = vmatpush1.msra.mxu0 %v6041
      %6064 = vmatprep.subr.mxu0 0.0
      %6065 = vmatpush1.msra.mxu0 %v6042
      %6066 = vmatprep.subr.mxu0 0.0
      %6067 = vmatpush1.msra.mxu0 %v6043
      %6068 = vmatprep.subr.mxu0 0.0
      %6069 = vmatpush1.msra.mxu0 %v6044
      %6070 = vmatprep.subr.mxu0 0.0
      %6071 = vmatpush1.msra.mxu0 %v6045
      %6072 = vmatprep.subr.mxu0 0.0
      %6073 = vmatpush1.msra.mxu0 %v6046
      %6074 = vmatprep.subr.mxu0 0.0
      %6075 = vmatpush1.msra.mxu0 0.0
      %6076 = vmatprep.subr.mxu0 0.0
      %6077 = vmatpush1.msra.mxu0 0.0
      %6078 = vmatprep.subr.mxu0 0.0
      %6079 = vmatpush1.msra.mxu0 0.0
      %6080 = vmatprep.subr.mxu0 0.0
      %6081 = vmatpush1.msra.mxu0 0.0
      %6082 = vmatprep.subr.mxu0 0.0
      %6083 = vmatpush1.msra.mxu0 0.0
      %6084 = vmatprep.subr.mxu0 0.0
      %6085 = vmatpush1.msra.mxu0 0.0
      %6086 = vmatprep.subr.mxu0 0.0
      %6087 = vmatpush1.msra.mxu0 0.0
      %6088 = vmatprep.subr.mxu0 0.0
      %6089 = vmatpush1.msra.mxu0 0.0
      %6090 = vmatprep.subr.mxu0 0.0
      %6091 = vmatpush1.msra.mxu0 0.0
      %6092 = vmatprep.subr.mxu0 0.0
      %6093 = vmatpush1.msra.mxu0 0.0
      %6094 = vmatprep.subr.mxu0 0.0
      %6095 = vmatpush1.msra.mxu0 0.0
      %6096 = vmatprep.subr.mxu0 0.0
      %6097 = vmatpush1.msra.mxu0 0.0
      %6098 = vmatprep.subr.mxu0 0.0
      %6099 = vmatpush1.msra.mxu0 0.0
      %6100 = vmatprep.subr.mxu0 0.0
      %6101 = vmatpush1.msra.mxu0 0.0
      %6102 = vmatprep.subr.mxu0 0.0
      %6103 = vmatpush1.msra.mxu0 0.0
      %6104 = vmatprep.subr.mxu0 0.0
      %6105 = vmatpush1.msra.mxu0 0.0
      %6106 = vmatprep.subr.mxu0 0.0
      %6107 = vmatpush1.msra.mxu0 0.0
      %6108 = vmatprep.subr.mxu0 0.0
      %6109 = vmatpush1.msra.mxu0 0.0
      %6110 = vmatprep.subr.mxu0 0.0
      %6111 = vmatpush1.msra.mxu0 0.0
      %6112 = vmatprep.subr.mxu0 0.0
      %6113 = vmatpush1.msra.mxu0 0.0
      %6114 = vmatprep.mubr.f32.mxu0 0.0
      %6115 = vmatmul.mubr.f32.gmra.mrb[0].mxu0 %v6048
      %v6116 = vpop.f32.mrb[0].mxu0
      %v6117 = vadd.f32 0.0, %v6116
      %v6118 = vpop.f32.mrb[0].mxu0
      %6119 = vdwg.mxu0
      %v6120 = vadd.f32 %v6031, %v6117
      %v6121 = vld [vmem:[%s10] sm:$0x1]
      %v6123 = vlaneseq
      %v6124 = vshrl.u32 %v6123, 7
      %v6125 = vsub.s32 0, %v6124
      %v6126 = vrot.slane %v6121, %v6125
      %v6128 = vadd.f32 %v6120, %v6126
      %v6129 = vmax.f32 %v6128, 0.0
      %v6130 = vld [vmem:[%s11] sm:$0xff]
      %v6131 = vld [vmem:[%s11 + $0x8] sm:$0xff]
      %v6132 = vld [vmem:[%s11 + $0x10] sm:$0xff]
      %v6133 = vld [vmem:[%s11 + $0x18] sm:$0xff]
      %v6134 = vld [vmem:[%s11 + $0x20] sm:$0xff]
      %v6135 = vld [vmem:[%s11 + $0x28] sm:$0xff]
      %v6136 = vld [vmem:[%s11 + $0x30] sm:$0xff]
      %v6137 = vld [vmem:[%s11 + $0x38] sm:$0xff]
      %v6138 = vld [vmem:[%s11 + $0x40] sm:$0xff]
      %v6139 = vld [vmem:[%s11 + $0x48] sm:$0xff]
      %v6140 = vld [vmem:[%s11 + $0x50] sm:$0xff]
      %v6141 = vld [vmem:[%s11 + $0x58] sm:$0xff]
      %v6142 = vld [vmem:[%s11 + $0x60] sm:$0xff]
      %v6143 = vld [vmem:[%s11 + $0x68] sm:$0xff]
      %v6144 = vld [vmem:[%s11 + $0x70] sm:$0xff]
      %v6145 = vld [vmem:[%s11 + $0x78] sm:$0xff]
      %s6146 = scalar_lea.vmem %s11, 128
      %v6147 = vld [vmem:[%s6146] sm:$0xff]
      %v6148 = vld [vmem:[%s6146 + $0x8] sm:$0xff]
      %v6149 = vld [vmem:[%s6146 + $0x10] sm:$0xff]
      %v6150 = vld [vmem:[%s6146 + $0x18] sm:$0xff]
      %v6151 = vld [vmem:[%s6146 + $0x20] sm:$0xff]
      %v6152 = vld [vmem:[%s6146 + $0x28] sm:$0xff]
      %v6153 = vld [vmem:[%s6146 + $0x30] sm:$0xff]
      %v6154 = vld [vmem:[%s6146 + $0x38] sm:$0xff]
      %v6155 = vld [vmem:[%s6146 + $0x40] sm:$0xff]
      %v6156 = vld [vmem:[%s6146 + $0x48] sm:$0xff]
      %v6157 = vld [vmem:[%s6146 + $0x50] sm:$0xff]
      %v6158 = vld [vmem:[%s6146 + $0x58] sm:$0xff]
      %v6159 = vld [vmem:[%s6146 + $0x60] sm:$0xff]
      %v6160 = vld [vmem:[%s6146 + $0x68] sm:$0xff]
      %v6161 = vld [vmem:[%s6146 + $0x70] sm:$0xff]
      %v6162 = vld [vmem:[%s6146 + $0x78] sm:$0xff]
      %v6164 = vrot.slane %v6129, 1
      %6166 = vmatprep.subr.mxu0 0.0
      %6167 = vmatpush1.msra.mxu0 %v6147
      %6168 = vmatprep.subr.mxu0 0.0
      %6169 = vmatpush1.msra.mxu0 %v6148
      %6170 = vmatprep.subr.mxu0 0.0
      %6171 = vmatpush1.msra.mxu0 %v6149
      %6172 = vmatprep.subr.mxu0 0.0
      %6173 = vmatpush1.msra.mxu0 %v6150
      %6174 = vmatprep.subr.mxu0 0.0
      %6175 = vmatpush1.msra.mxu0 %v6151
      %6176 = vmatprep.subr.mxu0 0.0
      %6177 = vmatpush1.msra.mxu0 %v6152
      %6178 = vmatprep.subr.mxu0 0.0
      %6179 = vmatpush1.msra.mxu0 %v6153
      %6180 = vmatprep.subr.mxu0 0.0
      %6181 = vmatpush1.msra.mxu0 %v6154
      %6182 = vmatprep.subr.mxu0 0.0
      %6183 = vmatpush1.msra.mxu0 %v6155
      %6184 = vmatprep.subr.mxu0 0.0
      %6185 = vmatpush1.msra.mxu0 %v6156
      %6186 = vmatprep.subr.mxu0 0.0
      %6187 = vmatpush1.msra.mxu0 %v6157
      %6188 = vmatprep.subr.mxu0 0.0
      %6189 = vmatpush1.msra.mxu0 %v6158
      %6190 = vmatprep.subr.mxu0 0.0
      %6191 = vmatpush1.msra.mxu0 %v6159
      %6192 = vmatprep.subr.mxu0 0.0
      %6193 = vmatpush1.msra.mxu0 %v6160
      %6194 = vmatprep.subr.mxu0 0.0
      %6195 = vmatpush1.msra.mxu0 %v6161
      %6196 = vmatprep.subr.mxu0 0.0
      %6197 = vmatpush1.msra.mxu0 %v6162
      %6198 = vmatprep.subr.mxu0 0.0
      %6199 = vmatpush1.msra.mxu0 0.0
      %6200 = vmatprep.subr.mxu0 0.0
      %6201 = vmatpush1.msra.mxu0 0.0
      %6202 = vmatprep.subr.mxu0 0.0
      %6203 = vmatpush1.msra.mxu0 0.0
      %6204 = vmatprep.subr.mxu0 0.0
      %6205 = vmatpush1.msra.mxu0 0.0
      %6206 = vmatprep.subr.mxu0 0.0
      %6207 = vmatpush1.msra.mxu0 0.0
      %6208 = vmatprep.subr.mxu0 0.0
      %6209 = vmatpush1.msra.mxu0 0.0
      %6210 = vmatprep.subr.mxu0 0.0
      %6211 = vmatpush1.msra.mxu0 0.0
      %6212 = vmatprep.subr.mxu0 0.0
      %6213 = vmatpush1.msra.mxu0 0.0
      %6214 = vmatprep.subr.mxu0 0.0
      %6215 = vmatpush1.msra.mxu0 0.0
      %6216 = vmatprep.subr.mxu0 0.0
      %6217 = vmatpush1.msra.mxu0 0.0
      %6218 = vmatprep.subr.mxu0 0.0
      %6219 = vmatpush1.msra.mxu0 0.0
      %6220 = vmatprep.subr.mxu0 0.0
      %6221 = vmatpush1.msra.mxu0 0.0
      %6222 = vmatprep.subr.mxu0 0.0
      %6223 = vmatpush1.msra.mxu0 0.0
      %6224 = vmatprep.subr.mxu0 0.0
      %6225 = vmatpush1.msra.mxu0 0.0
      %6226 = vmatprep.subr.mxu0 0.0
      %6227 = vmatpush1.msra.mxu0 0.0
      %6228 = vmatprep.subr.mxu0 0.0
      %6229 = vmatpush1.msra.mxu0 0.0
      %6230 = vmatprep.mubr.f32.mxu0 0.0
      %6231 = vmatmul.mubr.f32.gmra.mrb[0].mxu0 %v6164
      %v6232 = vpop.f32.mrb[0].mxu0
      %v6233 = vadd.f32 0.0, %v6232
      %v6234 = vpop.f32.mrb[0].mxu0
      %6235 = vdwg.mxu0
      %6236 = vmatprep.subr.mxu0 0.0
      %6237 = vmatpush1.msra.mxu0 %v6130
      %6238 = vmatprep.subr.mxu0 0.0
      %6239 = vmatpush1.msra.mxu0 %v6131
      %6240 = vmatprep.subr.mxu0 0.0
      %6241 = vmatpush1.msra.mxu0 %v6132
      %6242 = vmatprep.subr.mxu0 0.0
      %6243 = vmatpush1.msra.mxu0 %v6133
      %6244 = vmatprep.subr.mxu0 0.0
      %6245 = vmatpush1.msra.mxu0 %v6134
      %6246 = vmatprep.subr.mxu0 0.0
      %6247 = vmatpush1.msra.mxu0 %v6135
      %6248 = vmatprep.subr.mxu0 0.0
      %6249 = vmatpush1.msra.mxu0 %v6136
      %6250 = vmatprep.subr.mxu0 0.0
      %6251 = vmatpush1.msra.mxu0 %v6137
      %6252 = vmatprep.subr.mxu0 0.0
      %6253 = vmatpush1.msra.mxu0 %v6138
      %6254 = vmatprep.subr.mxu0 0.0
      %6255 = vmatpush1.msra.mxu0 %v6139
      %6256 = vmatprep.subr.mxu0 0.0
      %6257 = vmatpush1.msra.mxu0 %v6140
      %6258 = vmatprep.subr.mxu0 0.0
      %6259 = vmatpush1.msra.mxu0 %v6141
      %6260 = vmatprep.subr.mxu0 0.0
      %6261 = vmatpush1.msra.mxu0 %v6142
      %6262 = vmatprep.subr.mxu0 0.0
      %6263 = vmatpush1.msra.mxu0 %v6143
      %6264 = vmatprep.subr.mxu0 0.0
      %6265 = vmatpush1.msra.mxu0 %v6144
      %6266 = vmatprep.subr.mxu0 0.0
      %6267 = vmatpush1.msra.mxu0 %v6145
      %6268 = vmatprep.subr.mxu0 0.0
      %6269 = vmatpush1.msra.mxu0 0.0
      %6270 = vmatprep.subr.mxu0 0.0
      %6271 = vmatpush1.msra.mxu0 0.0
      %6272 = vmatprep.subr.mxu0 0.0
      %6273 = vmatpush1.msra.mxu0 0.0
      %6274 = vmatprep.subr.mxu0 0.0
      %6275 = vmatpush1.msra.mxu0 0.0
      %6276 = vmatprep.subr.mxu0 0.0
      %6277 = vmatpush1.msra.mxu0 0.0
      %6278 = vmatprep.subr.mxu0 0.0
      %6279 = vmatpush1.msra.mxu0 0.0
      %6280 = vmatprep.subr.mxu0 0.0
      %6281 = vmatpush1.msra.mxu0 0.0
      %6282 = vmatprep.subr.mxu0 0.0
      %6283 = vmatpush1.msra.mxu0 0.0
      %6284 = vmatprep.subr.mxu0 0.0
      %6285 = vmatpush1.msra.mxu0 0.0
      %6286 = vmatprep.subr.mxu0 0.0
      %6287 = vmatpush1.msra.mxu0 0.0
      %6288 = vmatprep.subr.mxu0 0.0
      %6289 = vmatpush1.msra.mxu0 0.0
      %6290 = vmatprep.subr.mxu0 0.0
      %6291 = vmatpush1.msra.mxu0 0.0
      %6292 = vmatprep.subr.mxu0 0.0
      %6293 = vmatpush1.msra.mxu0 0.0
      %6294 = vmatprep.subr.mxu0 0.0
      %6295 = vmatpush1.msra.mxu0 0.0
      %6296 = vmatprep.subr.mxu0 0.0
      %6297 = vmatpush1.msra.mxu0 0.0
      %6298 = vmatprep.subr.mxu0 0.0
      %6299 = vmatpush1.msra.mxu0 0.0
      %6300 = vmatprep.mubr.f32.mxu0 0.0
      %6301 = vmatmul.mubr.f32.gmra.mrb[0].mxu0 %v6129
      %v6302 = vpop.f32.mrb[0].mxu0
      %v6303 = vadd.f32 %v6233, %v6302
      %v6304 = vpop.f32.mrb[0].mxu0
      %6305 = vdwg.mxu0
      %s6306 = scalar_lea.vmem %s11, 256
      %v6307 = vld [vmem:[%s6306] sm:$0xff]
      %v6308 = vld [vmem:[%s6306 + $0x8] sm:$0xff]
      %v6309 = vld [vmem:[%s6306 + $0x10] sm:$0xff]
      %v6310 = vld [vmem:[%s6306 + $0x18] sm:$0xff]
      %v6311 = vld [vmem:[%s6306 + $0x20] sm:$0xff]
      %v6312 = vld [vmem:[%s6306 + $0x28] sm:$0xff]
      %v6313 = vld [vmem:[%s6306 + $0x30] sm:$0xff]
      %v6314 = vld [vmem:[%s6306 + $0x38] sm:$0xff]
      %v6315 = vld [vmem:[%s6306 + $0x40] sm:$0xff]
      %v6316 = vld [vmem:[%s6306 + $0x48] sm:$0xff]
      %v6317 = vld [vmem:[%s6306 + $0x50] sm:$0xff]
      %v6318 = vld [vmem:[%s6306 + $0x58] sm:$0xff]
      %v6319 = vld [vmem:[%s6306 + $0x60] sm:$0xff]
      %v6320 = vld [vmem:[%s6306 + $0x68] sm:$0xff]
      %v6321 = vld [vmem:[%s6306 + $0x70] sm:$0xff]
      %v6322 = vld [vmem:[%s6306 + $0x78] sm:$0xff]
      %v6323 = vrot.slane %v6129, 2
      %6325 = vmatprep.subr.mxu0 0.0
      %6326 = vmatpush1.msra.mxu0 %v6307
      %6327 = vmatprep.subr.mxu0 0.0
      %6328 = vmatpush1.msra.mxu0 %v6308
      %6329 = vmatprep.subr.mxu0 0.0
      %6330 = vmatpush1.msra.mxu0 %v6309
      %6331 = vmatprep.subr.mxu0 0.0
      %6332 = vmatpush1.msra.mxu0 %v6310
      %6333 = vmatprep.subr.mxu0 0.0
      %6334 = vmatpush1.msra.mxu0 %v6311
      %6335 = vmatprep.subr.mxu0 0.0
      %6336 = vmatpush1.msra.mxu0 %v6312
      %6337 = vmatprep.subr.mxu0 0.0
      %6338 = vmatpush1.msra.mxu0 %v6313
      %6339 = vmatprep.subr.mxu0 0.0
      %6340 = vmatpush1.msra.mxu0 %v6314
      %6341 = vmatprep.subr.mxu0 0.0
      %6342 = vmatpush1.msra.mxu0 %v6315
      %6343 = vmatprep.subr.mxu0 0.0
      %6344 = vmatpush1.msra.mxu0 %v6316
      %6345 = vmatprep.subr.mxu0 0.0
      %6346 = vmatpush1.msra.mxu0 %v6317
      %6347 = vmatprep.subr.mxu0 0.0
      %6348 = vmatpush1.msra.mxu0 %v6318
      %6349 = vmatprep.subr.mxu0 0.0
      %6350 = vmatpush1.msra.mxu0 %v6319
      %6351 = vmatprep.subr.mxu0 0.0
      %6352 = vmatpush1.msra.mxu0 %v6320
      %6353 = vmatprep.subr.mxu0 0.0
      %6354 = vmatpush1.msra.mxu0 %v6321
      %6355 = vmatprep.subr.mxu0 0.0
      %6356 = vmatpush1.msra.mxu0 %v6322
      %6357 = vmatprep.subr.mxu0 0.0
      %6358 = vmatpush1.msra.mxu0 0.0
      %6359 = vmatprep.subr.mxu0 0.0
      %6360 = vmatpush1.msra.mxu0 0.0
      %6361 = vmatprep.subr.mxu0 0.0
      %6362 = vmatpush1.msra.mxu0 0.0
      %6363 = vmatprep.subr.mxu0 0.0
      %6364 = vmatpush1.msra.mxu0 0.0
      %6365 = vmatprep.subr.mxu0 0.0
      %6366 = vmatpush1.msra.mxu0 0.0
      %6367 = vmatprep.subr.mxu0 0.0
      %6368 = vmatpush1.msra.mxu0 0.0
      %6369 = vmatprep.subr.mxu0 0.0
      %6370 = vmatpush1.msra.mxu0 0.0
      %6371 = vmatprep.subr.mxu0 0.0
      %6372 = vmatpush1.msra.mxu0 0.0
      %6373 = vmatprep.subr.mxu0 0.0
      %6374 = vmatpush1.msra.mxu0 0.0
      %6375 = vmatprep.subr.mxu0 0.0
      %6376 = vmatpush1.msra.mxu0 0.0
      %6377 = vmatprep.subr.mxu0 0.0
      %6378 = vmatpush1.msra.mxu0 0.0
      %6379 = vmatprep.subr.mxu0 0.0
      %6380 = vmatpush1.msra.mxu0 0.0
      %6381 = vmatprep.subr.mxu0 0.0
      %6382 = vmatpush1.msra.mxu0 0.0
      %6383 = vmatprep.subr.mxu0 0.0
      %6384 = vmatpush1.msra.mxu0 0.0
      %6385 = vmatprep.subr.mxu0 0.0
      %6386 = vmatpush1.msra.mxu0 0.0
      %6387 = vmatprep.subr.mxu0 0.0
      %6388 = vmatpush1.msra.mxu0 0.0
      %6389 = vmatprep.mubr.f32.mxu0 0.0
      %6390 = vmatmul.mubr.f32.gmra.mrb[0].mxu0 %v6323
      %v6391 = vpop.f32.mrb[0].mxu0
      %v6392 = vadd.f32 0.0, %v6391
      %v6393 = vpop.f32.mrb[0].mxu0
      %6394 = vdwg.mxu0
      %v6395 = vadd.f32 %v6303, %v6392
      %v6396 = vld [vmem:[%s12] sm:$0x1]
      %v6398 = vlaneseq
      %v6399 = vshrl.u32 %v6398, 7
      %v6400 = vsub.s32 0, %v6399
      %v6401 = vrot.slane %v6396, %v6400
      %v6403 = vadd.f32 %v6395, %v6401
      %v6404 = vmax.f32 %v6403, 0.0
      %vm6405 = vcmask 517120
      %6406 = vst.msk [vmem:[%s517] sm:$0x3] %vm6405, %v6404
      %p6407 = scmp.lt.s32.totalorder %s27, 1
      %s6408 = scalar_select %p6407, %s27, 1
      %s6409 = smul.addr %s6408, 8
      %s6410 = smul.addr %s6409, 8
      %s6411 = scalar_lea.vmem %s13, %s6410
      %p6412 = scmp.lt.s32.totalorder %s27, 1
      %s6413 = scalar_select %p6412, %s27, 1
      %s6414 = smul.addr %s6413, 4
      %s6415 = smul.addr %s6414, 8
      %s6416 = scalar_lea.vmem %s14, %s6415
      %p6417 = scmp.lt.s32.totalorder %s27, 1
      %s6418 = scalar_select %p6417, %s27, 1
      %s6419 = smul.addr %s6418, 2
      %s6420 = scalar_lea.vmem %s15, %s6419
      // Predicated region
      $region73: #{forward.1} parent=71 // pred_check
        %p6421 = pneg %p323
      $region74: #{forward.1} parent=71 // pred_check_branch
        %6423 = sbr.rel (%p6421) target = $region76
      $region75: #{forward.1} parent=71 // pred_region
        _
      $region76: #{forward.1} parent=71 // pred_fallthru
        _
      // Predicated region
      $region77: #{forward.1} parent=71 // pred_check
        %p6424 = pneg %p349
      $region78: #{forward.1} parent=71 // pred_check_branch
        %6426 = sbr.rel (%p6424) target = $region80
      $region79: #{forward.1} parent=71 // pred_region
        _
      $region80: #{forward.1} parent=71 // pred_fallthru
        _
      // Predicated region
      $region81: #{forward.1} parent=71 // pred_check
        %p6427 = pneg %p375
      $region82: #{forward.1} parent=71 // pred_check_branch
        %6429 = sbr.rel (%p6427) target = $region84
      $region83: #{forward.1} parent=71 // pred_region
        _
      $region84: #{forward.1} parent=71 // pred_fallthru
        _
    $region72: #{forward.1} parent=5 // pred_fallthru
      _
    %p6430 = scmp.le.s32.totalorder 2, %s22
    // Predicated region
    $region85: #{forward.1} parent=5 // pred_check
      %p6431 = pneg %p6430
    $region86: #{forward.1} parent=5 // pred_check_branch
      %6433 = sbr.rel (%p6431) target = $region88
    $region87: #{forward.1} parent=5 // pred_region
      %s6434 = ssub.s32 %s22, 2
      // Predicated region
      $region89: #{forward.1} parent=87 // pred_check
        %p6435 = pneg %p329
      $region90: #{forward.1} parent=87 // pred_check_branch
        %6437 = sbr.rel (%p6435) target = $region92
      $region91: #{forward.1} parent=87 // pred_region
        %p6438 = scmp.lt.s32.totalorder %s28, 1
        %s6439 = scalar_select %p6438, %s28, 1
        %s6440 = smul.addr %s6439, 8
        %s6441 = smul.addr %s6440, 8
        %s6442 = scalar_lea.vmem %s13, %s6441
      $region92: #{forward.1} parent=87 // pred_fallthru
        _
      // Predicated region
      $region93: #{forward.1} parent=87 // pred_check
        %p6443 = pneg %p355
      $region94: #{forward.1} parent=87 // pred_check_branch
        %6445 = sbr.rel (%p6443) target = $region96
      $region95: #{forward.1} parent=87 // pred_region
        %p6446 = scmp.lt.s32.totalorder %s28, 1
        %s6447 = scalar_select %p6446, %s28, 1
        %s6448 = smul.addr %s6447, 4
        %s6449 = smul.addr %s6448, 8
        %s6450 = scalar_lea.vmem %s14, %s6449
      $region96: #{forward.1} parent=87 // pred_fallthru
        _
      // Predicated region
      $region97: #{forward.1} parent=87 // pred_check
        %p6451 = pneg %p381
      $region98: #{forward.1} parent=87 // pred_check_branch
        %6453 = sbr.rel (%p6451) target = $region100
      $region99: #{forward.1} parent=87 // pred_region
        %p6454 = scmp.lt.s32.totalorder %s28, 1
        %s6455 = scalar_select %p6454, %s28, 1
        %s6456 = smul.addr %s6455, 2
        %s6457 = scalar_lea.vmem %s15, %s6456
      $region100: #{forward.1} parent=87 // pred_fallthru
        _
    $region88: #{forward.1} parent=5 // pred_fallthru
      _
  $region6: #{forward.1} parent=0 // loop_footer
    %s26 = sadd.s32 1, %s22
  $region7: #{forward.1} parent=0 // loop_footer_branch
    %21 = sbr.rel target = $region3
  $region8: #{forward.1} parent=0 // loop_exit
    _

</llo_original>
